<compile_context>
chip_gen: v6e
topology: v6e:2x2x1
jax: 0.10.0
libtpu: 0.0.40
codegen_flags: <defaults>
</compile_context>

<pallas_src>
import functools

import jax
import jax.numpy as jnp
from jax import lax
from jax.experimental import pallas as pl
from jax.experimental.pallas import tpu as pltpu

EPS = 1e-5      # PyTorch BatchNorm2d default eps
C_DEC = 128     # Decoder internal width (512 // 4)


def _round_up(x, m):
    return (x + m - 1) // m * m


def _pick_tm(m, cap=512):
    """Row tile that divides M exactly (no host padding), is sublane-legal (multiple of
    8 or == M) and prefers >= 2 grid steps so both TensorCores get work on v7x."""
    target = min(cap, m // 2 if (m >= 16 and m % 16 == 0) else m)
    start = target - (target % 8) if target % 8 else target
    for tm in range(start, 7, -8):
        if m % tm == 0:
            return tm
    return m


# ---------------------------------------------------------------------------
# Pallas kernels
# ---------------------------------------------------------------------------
def _chain2_kernel(x_ref, w0_ref, b0_ref, w1_ref, b1_ref, *out_refs, emit_first):
    """y0 = relu(x @ w0 + b0); y1 = relu(y0 @ w1 + b1).  Optionally emits y0 too."""
    h = jnp.dot(x_ref[...], w0_ref[...], preferred_element_type=jnp.float32)
    h = jnp.maximum(h + b0_ref[...], 0.0)
    if emit_first:
        out_refs[0][...] = h.astype(out_refs[0].dtype)
    y = jnp.dot(h.astype(w1_ref.dtype), w1_ref[...],
                preferred_element_type=jnp.float32)
    y = jnp.maximum(y + b1_ref[...], 0.0)
    out_refs[-1][...] = y.astype(out_refs[-1].dtype)


def _cls_kernel(x_ref, w_ref, b_ref, o_ref, *, n_valid):
    """relu(x @ w + b) -> mask padded lanes -> log_softmax over the lane (channel) dim."""
    y = jnp.dot(x_ref[...], w_ref[...], preferred_element_type=jnp.float32)
    y = jnp.maximum(y + b_ref[...], 0.0)
    lane = lax.broadcasted_iota(jnp.int32, y.shape, 1)
    y = jnp.where(lane < n_valid, y, -1e30)         # mask AFTER ReLU (keeps normalizer exact)
    m = jnp.max(y, axis=-1, keepdims=True)
    z = y - m
    lse = jnp.log(jnp.sum(jnp.exp(z), axis=-1, keepdims=True))
    o_ref[...] = (z - lse).astype(o_ref.dtype)


# ---------------------------------------------------------------------------
# pallas_call wrappers
# ---------------------------------------------------------------------------
def chain2_matmul(x, w0, b0, w1, b1, *, emit_first=False,
                  first_dtype=jnp.float32, out_dtype=jnp.bfloat16):
    m, k = x.shape
    k0, n0 = w0.shape
    assert k == k0 and w1.shape[0] == n0
    n1 = w1.shape[1]
    tm = _pick_tm(m)
    grid = (m // tm,)
    in_specs = [
        pl.BlockSpec((tm, k), lambda i: (i, 0)),
        pl.BlockSpec((k, n0), lambda i: (0, 0)),
        pl.BlockSpec((1, n0), lambda i: (0, 0)),
        pl.BlockSpec((n0, n1), lambda i: (0, 0)),
        pl.BlockSpec((1, n1), lambda i: (0, 0)),
    ]
    if emit_first:
        out_shape = (jax.ShapeDtypeStruct((m, n0), first_dtype),
                     jax.ShapeDtypeStruct((m, n1), out_dtype))
        out_specs = (pl.BlockSpec((tm, n0), lambda i: (i, 0)),
                     pl.BlockSpec((tm, n1), lambda i: (i, 0)))
    else:
        out_shape = jax.ShapeDtypeStruct((m, n1), out_dtype)
        out_specs = pl.BlockSpec((tm, n1), lambda i: (i, 0))
    flops = 2 * m * k * n0 + 2 * m * n0 * n1
    bytes_accessed = (x.size * x.dtype.itemsize + w0.size * 2 + w1.size * 2
                      + 4 * (n0 + n1)
                      + (m * n0 * 4 if emit_first else 0)
                      + m * n1 * jnp.dtype(out_dtype).itemsize)
    return pl.pallas_call(
        functools.partial(_chain2_kernel, emit_first=emit_first),
        out_shape=out_shape,
        grid=grid,
        in_specs=in_specs,
        out_specs=out_specs,
        compiler_params=pltpu.CompilerParams(dimension_semantics=("parallel",)),
        cost_estimate=pl.CostEstimate(flops=flops, transcendentals=0,
                                      bytes_accessed=bytes_accessed),
    )(x, w0, b0, w1, b1)


def cls_matmul(x, w, b, *, n_valid):
    """Lane-dense classifier head: returns the full padded (M, 128) log-prob slab."""
    m, k = x.shape
    kw_, nl = w.shape
    assert k == kw_
    tm = _pick_tm(m)
    grid = (m // tm,)
    flops = 2 * m * k * nl
    bytes_accessed = x.size * 2 + w.size * 2 + 4 * nl + m * nl * 4
    return pl.pallas_call(
        functools.partial(_cls_kernel, n_valid=n_valid),
        out_shape=jax.ShapeDtypeStruct((m, nl), jnp.float32),
        grid=grid,
        in_specs=[pl.BlockSpec((tm, k), lambda i: (i, 0)),
                  pl.BlockSpec((k, nl), lambda i: (0, 0)),
                  pl.BlockSpec((1, nl), lambda i: (0, 0))],
        out_specs=pl.BlockSpec((tm, nl), lambda i: (i, 0)),
        compiler_params=pltpu.CompilerParams(dimension_semantics=("parallel",)),
        cost_estimate=pl.CostEstimate(flops=flops, transcendentals=m * nl,
                                      bytes_accessed=bytes_accessed),
    )(x, w, b)


# ---------------------------------------------------------------------------
# Plain-JAX glue: im2col (reshape-style data movement only, done in bf16)
# ---------------------------------------------------------------------------
# TODO(synk): pull this im2col into the Pallas pipeline via a 9-tap reduction grid axis
# (BlockSpec over shifted windows + VMEM accumulator) instead of materializing (M, 9*C).
def im2col(x, k, pad, dilation=1):
    """x: (N,H,W,C) NHWC -> (N*Ho*Wo, k*k*C) with columns ordered (kh, kw, ci)."""
    n, h, w, c = x.shape
    (pt, pb), (pl_, pr) = pad
    xp = jnp.pad(x, ((0, 0), (pt, pb), (pl_, pr), (0, 0)))
    ho = h + pt + pb - dilation * (k - 1)
    wo = w + pl_ + pr - dilation * (k - 1)
    cols = []
    for kh in range(k):
        for kw in range(k):
            cols.append(xp[:, kh * dilation:kh * dilation + ho,
                           kw * dilation:kw * dilation + wo, :])
    return jnp.concatenate(cols, axis=-1).reshape(n * ho * wo, k * k * c)


# ---------------------------------------------------------------------------
# Deterministic synthetic parameters (shapes from the module __init__)
# ---------------------------------------------------------------------------
def init_raw_params(key, low_inc, high_inc, outc):
    ks = iter(jax.random.split(key, 32))

    def nrm(shape, s=0.05):
        return jax.random.normal(next(ks), shape, jnp.float32) * s

    def bn(c):
        gamma = 1.0 + 0.1 * jax.random.normal(next(ks), (c,), jnp.float32)
        beta = 0.1 * jax.random.normal(next(ks), (c,), jnp.float32)
        mean = 0.1 * jax.random.normal(next(ks), (c,), jnp.float32)
        var = jax.random.uniform(next(ks), (c,), jnp.float32, 0.5, 1.5)
        return gamma, beta, mean, var

    p = {}
    p['w_low'] = nrm((low_inc, outc))          # low_convbn: 1x1 conv as (Cin, Cout)
    p['bn_low'] = bn(outc)
    p['w_high'] = nrm((3, 3, high_inc, outc))  # high_convbn: 3x3 dil-2 conv, HWIO
    p['bn_high'] = bn(outc)
    p['w_d1'] = nrm((512, C_DEC))              # Decoder.conv1 1x1 (512->128)
    p['bn_d1'] = bn(C_DEC)
    p['w_dT'] = nrm((C_DEC, C_DEC, 3, 3))      # Decoder.deconv, PyTorch (Cin,Cout,kh,kw)
    p['bn_dT'] = bn(C_DEC)
    p['w_d2'] = nrm((C_DEC, C_DEC))            # Decoder.conv2 1x1 (128->128)
    p['bn_d2'] = bn(C_DEC)
    p['w_c2'] = nrm((3, 3, C_DEC, 32))         # conv2_x2: 3x3 (128->32), HWIO
    p['bias_c2'] = nrm((32,))
    p['bn_c2'] = bn(32)
    # NOTE: tp_conv2 (ConvTranspose2d(32, n_classes, 2, 2)) exists in __init__ but is
    # never used in forward(); it is intentionally not materialized here.
    return p


def _fold(bn_p, conv_bias=None):
    gamma, beta, mean, var = bn_p
    scale = gamma / jnp.sqrt(var + EPS)
    shift = beta - mean * scale
    if conv_bias is not None:
        shift = shift + conv_bias * scale
    return scale, shift


def build_kernel_params(raw):
    """Fold BN scales into the (bf16) weight matrices and build the fused operators."""
    low_inc, outc = raw['w_low'].shape
    high_inc = raw['w_high'].shape[2]
    c = C_DEC
    kp = {}

    # (1) fused low_convbn + high_convbn -> one matmul over K = low_inc + 9*high_inc
    s_low, b_low = _fold(raw['bn_low'])
    s_high, b_high = _fold(raw['bn_high'])
    w_low = raw['w_low'] * s_low[None, :]
    w_high = raw['w_high'].reshape(9 * high_inc, outc) * s_high[None, :]
    k = low_inc + 9 * high_inc
    kpad = _round_up(k, 128) - k
    kp['w_fuse'] = jnp.concatenate(
        [w_low, w_high, jnp.zeros((kpad, outc), jnp.float32)], axis=0
    ).astype(jnp.bfloat16)
    kp['b_fuse'] = (b_low + b_high).reshape(1, outc)

    # (2) Decoder.conv1 (1x1, 512->128), chained into kernel 1's epilogue
    s, b = _fold(raw['bn_d1'])
    kp['w_d1'] = (raw['w_d1'] * s[None, :]).astype(jnp.bfloat16)
    kp['b_d1'] = b.reshape(1, c)

    # (3) Decoder.deconv ConvTranspose(k=3,s=2,p=1,op=1) as a 4-phase sub-pixel matmul:
    #     taps   = [y(i,j), y(i,j+1), y(i+1,j), y(i+1,j+1)]
    #     phases = [out(2i,2j), out(2i,2j+1), out(2i+1,2j), out(2i+1,2j+1)]
    s, b = _fold(raw['bn_dT'])
    wt = raw['w_dT']                           # (Cin, Cout, kh, kw)
    w_dc = jnp.zeros((4 * c, 4 * c), jnp.float32)
    sub = {(0, 0): (1, 1),
           (0, 1): (1, 2), (1, 1): (1, 0),
           (0, 2): (2, 1), (2, 2): (0, 1),
           (0, 3): (2, 2), (1, 3): (2, 0), (2, 3): (0, 2), (3, 3): (0, 0)}
    for (t, g), (kh, kw) in sub.items():
        w_dc = w_dc.at[t * c:(t + 1) * c, g * c:(g + 1) * c].set(
            wt[:, :, kh, kw] * s[None, :])
    kp['w_dc'] = w_dc.astype(jnp.bfloat16)
    kp['b_dc'] = jnp.tile(b, 4).reshape(1, 4 * c)

    # (4) Decoder.conv2 (1x1, 128->128) chained per sub-pixel phase as block-diagonal
    s, b = _fold(raw['bn_d2'])
    w_d2 = raw['w_d2'] * s[None, :]
    w_bd = jnp.zeros((4 * c, 4 * c), jnp.float32)
    for g in range(4):
        w_bd = w_bd.at[g * c:(g + 1) * c, g * c:(g + 1) * c].set(w_d2)
    kp['w_d2bd'] = w_bd.astype(jnp.bfloat16)
    kp['b_d2'] = jnp.tile(b, 4).reshape(1, 4 * c)

    # (5) conv2_x2 (3x3, 128->32, bias) + BN: lane-dense output (pad columns to 128)
    s, b = _fold(raw['bn_c2'], conv_bias=raw['bias_c2'])
    w_c2 = raw['w_c2'].reshape(9 * c, 32) * s[None, :]
    kp['w_cls'] = jnp.pad(w_c2, ((0, 0), (0, c - 32))).astype(jnp.bfloat16)
    kp['b_cls'] = jnp.pad(b, (0, c - 32)).reshape(1, c)
    return kp


# ---------------------------------------------------------------------------
# Forward pass (matches multiresolutionFeatureFusion.forward, NHWC)
# ---------------------------------------------------------------------------
def mff_forward(kp, x_low, x_high):
    n, hl, wl, cl = x_low.shape
    c = C_DEC
    outc = kp['w_fuse'].shape[1]

    # fused: low_convbn (1x1 stride-2) + high_convbn (3x3 dil-2 pad-2) + ReLU, then
    # Decoder.conv1 (1x1 512->128 + BN + ReLU) chained in the same kernel.
    x_sub = x_low[:, ::2, ::2, :].astype(jnp.bfloat16)
    h2, w2 = x_sub.shape[1], x_sub.shape[2]
    m = n * h2 * w2
    cols_high = im2col(x_high.astype(jnp.bfloat16), 3, ((2, 2), (2, 2)), dilation=2)
    parts = [x_sub.reshape(m, cl), cols_high]
    kpad = kp['w_fuse'].shape[0] - (cl + cols_high.shape[1])
    if kpad:
        parts.append(jnp.zeros((m, kpad), jnp.bfloat16))
    cols = jnp.concatenate(parts, axis=-1)
    hf, y = chain2_matmul(cols, kp['w_fuse'], kp['b_fuse'], kp['w_d1'], kp['b_d1'],
                          emit_first=True, first_dtype=jnp.float32,
                          out_dtype=jnp.bfloat16)
    high_fused_fm = hf.reshape(n, h2, w2, outc)

    # Decoder.deconv (4-phase sub-pixel, no zero-dilation) + BN + ReLU, chained with
    # Decoder.conv2 (block-diagonal 1x1) + BN + ReLU inside one kernel.
    y = y.reshape(n, h2, w2, c)
    yp = jnp.pad(y, ((0, 0), (0, 1), (0, 1), (0, 0)))
    taps = jnp.concatenate(
        [yp[:, :h2, :w2], yp[:, :h2, 1:], yp[:, 1:, :w2], yp[:, 1:, 1:]], axis=-1)
    y2 = chain2_matmul(taps.reshape(m, 4 * c), kp['w_dc'], kp['b_dc'],
                       kp['w_d2bd'], kp['b_d2'], out_dtype=jnp.bfloat16)
    ho, wo = 2 * h2, 2 * w2
    y2 = (y2.reshape(n, h2, w2, 2, 2, c)
             .transpose(0, 1, 3, 2, 4, 5)
             .reshape(n, ho, wo, c))

    # conv2_x2: 3x3 pad-1 (128->32, bias) + BN + ReLU + LogSoftmax over channels.
    cols = im2col(y2, 3, ((1, 1), (1, 1)), dilation=1)
    cls = cls_matmul(cols, kp['w_cls'], kp['b_cls'], n_valid=32)
    mff_cls = cls[:, :32].reshape(n, ho, wo, 32)
    return high_fused_fm, mff_cls


# ---------------------------------------------------------------------------
# Pure-JAX f32 reference (for a loose bf16-vs-f32 correctness check)
# ---------------------------------------------------------------------------
def reference_forward(raw, x_low, x_high):
    dn = ('NHWC', 'HWIO', 'NHWC')

    def bn(z, p):
        gamma, beta, mean, var = p
        return (z - mean) * (gamma / jnp.sqrt(var + EPS)) + beta

    low = lax.conv_general_dilated(x_low, raw['w_low'][None, None], (2, 2), 'VALID',
                                   dimension_numbers=dn)
    low = bn(low, raw['bn_low'])
    high = lax.conv_general_dilated(x_high, raw['w_high'], (1, 1), [(2, 2), (2, 2)],
                                    rhs_dilation=(2, 2), dimension_numbers=dn)
    high = bn(high, raw['bn_high'])
    hf = jnp.maximum(low + high, 0.0)
    y = lax.conv_general_dilated(hf, raw['w_d1'][None, None], (1, 1), 'VALID',
                                 dimension_numbers=dn)
    y = jnp.maximum(bn(y, raw['bn_d1']), 0.0)
    # ConvTranspose(k=3,s=2,p=1,op=1) == lhs-dilated conv with flipped kernel, pad (1, 2)
    w_flip = jnp.transpose(raw['w_dT'][:, :, ::-1, ::-1], (2, 3, 0, 1))
    y = lax.conv_general_dilated(y, w_flip, (1, 1), [(1, 2), (1, 2)],
                                 lhs_dilation=(2, 2), dimension_numbers=dn)
    y = jnp.maximum(bn(y, raw['bn_dT']), 0.0)
    y = lax.conv_general_dilated(y, raw['w_d2'][None, None], (1, 1), 'VALID',
                                 dimension_numbers=dn)
    y = jnp.maximum(bn(y, raw['bn_d2']), 0.0)
    y = lax.conv_general_dilated(y, raw['w_c2'], (1, 1), [(1, 1), (1, 1)],
                                 dimension_numbers=dn) + raw['bias_c2']
    y = jnp.maximum(bn(y, raw['bn_c2']), 0.0)
    return hf, jax.nn.log_softmax(y, axis=-1)


if __name__ == "__main__":
    key = jax.random.PRNGKey(0)
    k_low, k_high, k_param = jax.random.split(key, 3)
    # Decoder(512, ...) hard-codes 512 fused channels, so outc must be 512.
    N, low_inc, high_inc, outc, n_classes = 2, 8, 16, 512, 4
    x_low = jax.random.normal(k_low, (N, 8, 8, low_inc), jnp.float32)     # NHWC
    x_high = jax.random.normal(k_high, (N, 4, 4, high_inc), jnp.float32)  # NHWC

    raw = init_raw_params(k_param, low_inc, high_inc, outc)
    kparams = build_kernel_params(raw)

    high_fused_fm, mff_cls = jax.jit(mff_forward)(kparams, x_low, x_high)
    jax.block_until_ready((high_fused_fm, mff_cls))

    assert high_fused_fm.shape == (N, 4, 4, outc)
    assert mff_cls.shape == (N, 8, 8, 32)
    # LogSoftmax sanity: per-pixel channel probabilities sum to 1
    assert bool(jnp.allclose(jnp.sum(jnp.exp(mff_cls), axis=-1), 1.0, atol=1e-4))
    # loose bf16-vs-f32 check against a pure-XLA reference of the same forward pass
    ref_hf, ref_cls = reference_forward(raw, x_low, x_high)
    err_hf = float(jnp.max(jnp.abs(high_fused_fm - ref_hf)))
    err_cls = float(jnp.max(jnp.abs(mff_cls - ref_cls)))
    assert err_hf < 0.1, f"high_fused_fm mismatch: {err_hf}"
    assert err_cls < 0.3, f"mff_cls mismatch: {err_cls}"
    print("KERNEL_OK")
</pallas_src>

<mosaic_0001>
module attributes {stable_mosaic.version = 11 : i64} {
  func.func @_chain2_kernel(%arg0: i32, %arg1: memref<16x256xbf16, #tpu.memory_space<vmem>>, %arg2: memref<256x512xbf16, #tpu.memory_space<vmem>>, %arg3: memref<1x512xf32, #tpu.memory_space<vmem>>, %arg4: memref<512x128xbf16, #tpu.memory_space<vmem>>, %arg5: memref<1x128xf32, #tpu.memory_space<vmem>>, %arg6: memref<16x512xf32, #tpu.memory_space<vmem>>, %arg7: memref<16x128xbf16, #tpu.memory_space<vmem>>) attributes {dimension_semantics = [#tpu.dimension_semantics<parallel>], iteration_bounds = array<i64: 2>, scalar_prefetch = 0 : i64, scratch_operands = 0 : i64, tpu.core_type = #tpu.core_type<tc>, window_params = [{transform_indices = @transform_0, window_bounds = array<i64: 16, 256>}, {pipeline_mode = #tpu.pipeline_mode<synchronous>, transform_indices = @transform_1, window_bounds = array<i64: 256, 512>}, {pipeline_mode = #tpu.pipeline_mode<synchronous>, transform_indices = @transform_2, window_bounds = array<i64: 1, 512>}, {pipeline_mode = #tpu.pipeline_mode<synchronous>, transform_indices = @transform_3, window_bounds = array<i64: 512, 128>}, {pipeline_mode = #tpu.pipeline_mode<synchronous>, transform_indices = @transform_4, window_bounds = array<i64: 1, 128>}, {transform_indices = @transform_5, window_bounds = array<i64: 16, 512>}, {transform_indices = @transform_6, window_bounds = array<i64: 16, 128>}]} {
    %c0 = arith.constant 0 : index
    %c0_0 = arith.constant 0 : index
    %0 = vector.load %arg1[%c0, %c0_0] : memref<16x256xbf16, #tpu.memory_space<vmem>>, vector<16x256xbf16>
    %c0_1 = arith.constant 0 : index
    %c0_2 = arith.constant 0 : index
    %1 = vector.load %arg2[%c0_1, %c0_2] : memref<256x512xbf16, #tpu.memory_space<vmem>>, vector<256x512xbf16>
    %cst = arith.constant dense<0.000000e+00> : vector<16x512xf32>
    %2 = tpu.matmul %0, %1, %cst {dimension_numbers = #tpu.dot_dimension_numbers<[1], [0], [0], [1], [0, 0, 1, 1], [], []>} : vector<16x256xbf16>, vector<256x512xbf16>, vector<16x512xf32> -> vector<16x512xf32>
    %c0_3 = arith.constant 0 : index
    %c0_4 = arith.constant 0 : index
    %3 = vector.load %arg3[%c0_3, %c0_4] : memref<1x512xf32, #tpu.memory_space<vmem>>, vector<1x512xf32>
    %4 = vector.broadcast %3 : vector<1x512xf32> to vector<16x512xf32>
    %5 = arith.addf %2, %4 : vector<16x512xf32>
    %cst_5 = arith.constant 0.000000e+00 : f32
    %6 = vector.broadcast %cst_5 : f32 to vector<16x512xf32>
    %7 = arith.maximumf %5, %6 : vector<16x512xf32>
    %c0_6 = arith.constant 0 : index
    %c0_7 = arith.constant 0 : index
    %8 = vector.load %arg6[%c0_6, %c0_7] : memref<16x512xf32, #tpu.memory_space<vmem>>, vector<16x512xf32>
    tpu.vector_store %arg6[%c0_6, %c0_7], %7 {strides = array<i32>} : memref<16x512xf32, #tpu.memory_space<vmem>>, vector<16x512xf32>,
    %9 = arith.truncf %7 : vector<16x512xf32> to vector<16x512xbf16>
    %c0_8 = arith.constant 0 : index
    %c0_9 = arith.constant 0 : index
    %10 = vector.load %arg4[%c0_8, %c0_9] : memref<512x128xbf16, #tpu.memory_space<vmem>>, vector<512x128xbf16>
    %cst_10 = arith.constant dense<0.000000e+00> : vector<16x128xf32>
    %11 = tpu.matmul %9, %10, %cst_10 {dimension_numbers = #tpu.dot_dimension_numbers<[1], [0], [0], [1], [0, 0, 1, 1], [], []>} : vector<16x512xbf16>, vector<512x128xbf16>, vector<16x128xf32> -> vector<16x128xf32>
    %c0_11 = arith.constant 0 : index
    %c0_12 = arith.constant 0 : index
    %12 = vector.load %arg5[%c0_11, %c0_12] : memref<1x128xf32, #tpu.memory_space<vmem>>, vector<1x128xf32>
    %13 = vector.broadcast %12 : vector<1x128xf32> to vector<16x128xf32>
    %14 = arith.addf %11, %13 : vector<16x128xf32>
    %cst_13 = arith.constant 0.000000e+00 : f32
    %15 = vector.broadcast %cst_13 : f32 to vector<16x128xf32>
    %16 = arith.maximumf %14, %15 : vector<16x128xf32>
    %17 = arith.truncf %16 : vector<16x128xf32> to vector<16x128xbf16>
    %c0_14 = arith.constant 0 : index
    %c0_15 = arith.constant 0 : index
    %18 = vector.load %arg7[%c0_14, %c0_15] : memref<16x128xbf16, #tpu.memory_space<vmem>>, vector<16x128xbf16>
    tpu.vector_store %arg7[%c0_14, %c0_15], %17 {strides = array<i32>} : memref<16x128xbf16, #tpu.memory_space<vmem>>, vector<16x128xbf16>,
    return
  }
  func.func @transform_0(%arg0: i32) -> (i32, i32) {
    %c0_i32 = arith.constant 0 : i32
    %c0_i32_0 = arith.constant 0 : i32
    return %arg0, %c0_i32 : i32, i32
  }
  func.func @transform_1(%arg0: i32) -> (i32, i32) {
    %c0_i32 = arith.constant 0 : i32
    %c0_i32_0 = arith.constant 0 : i32
    %c0_i32_1 = arith.constant 0 : i32
    return %c0_i32, %c0_i32_0 : i32, i32
  }
  func.func @transform_2(%arg0: i32) -> (i32, i32) {
    %c0_i32 = arith.constant 0 : i32
    %c0_i32_0 = arith.constant 0 : i32
    %c0_i32_1 = arith.constant 0 : i32
    return %c0_i32, %c0_i32_0 : i32, i32
  }
  func.func @transform_3(%arg0: i32) -> (i32, i32) {
    %c0_i32 = arith.constant 0 : i32
    %c0_i32_0 = arith.constant 0 : i32
    %c0_i32_1 = arith.constant 0 : i32
    return %c0_i32, %c0_i32_0 : i32, i32
  }
  func.func @transform_4(%arg0: i32) -> (i32, i32) {
    %c0_i32 = arith.constant 0 : i32
    %c0_i32_0 = arith.constant 0 : i32
    %c0_i32_1 = arith.constant 0 : i32
    return %c0_i32, %c0_i32_0 : i32, i32
  }
  func.func @transform_5(%arg0: i32) -> (i32, i32) {
    %c0_i32 = arith.constant 0 : i32
    %c0_i32_0 = arith.constant 0 : i32
    return %arg0, %c0_i32 : i32, i32
  }
  func.func @transform_6(%arg0: i32) -> (i32, i32) {
    %c0_i32 = arith.constant 0 : i32
    %c0_i32_0 = arith.constant 0 : i32
    return %arg0, %c0_i32 : i32, i32
  }
}

module attributes {stable_mosaic.version = 11 : i64} {
  func.func @_chain2_kernel(%arg0: i32, %arg1: memref<16x512xbf16, #tpu.memory_space<vmem>>, %arg2: memref<512x512xbf16, #tpu.memory_space<vmem>>, %arg3: memref<1x512xf32, #tpu.memory_space<vmem>>, %arg4: memref<512x512xbf16, #tpu.memory_space<vmem>>, %arg5: memref<1x512xf32, #tpu.memory_space<vmem>>, %arg6: memref<16x512xbf16, #tpu.memory_space<vmem>>) attributes {dimension_semantics = [#tpu.dimension_semantics<parallel>], iteration_bounds = array<i64: 2>, scalar_prefetch = 0 : i64, scratch_operands = 0 : i64, tpu.core_type = #tpu.core_type<tc>, window_params = [{transform_indices = @transform_0, window_bounds = array<i64: 16, 512>}, {pipeline_mode = #tpu.pipeline_mode<synchronous>, transform_indices = @transform_1, window_bounds = array<i64: 512, 512>}, {pipeline_mode = #tpu.pipeline_mode<synchronous>, transform_indices = @transform_2, window_bounds = array<i64: 1, 512>}, {pipeline_mode = #tpu.pipeline_mode<synchronous>, transform_indices = @transform_3, window_bounds = array<i64: 512, 512>}, {pipeline_mode = #tpu.pipeline_mode<synchronous>, transform_indices = @transform_4, window_bounds = array<i64: 1, 512>}, {transform_indices = @transform_5, window_bounds = array<i64: 16, 512>}]} {
    %c0 = arith.constant 0 : index
    %c0_0 = arith.constant 0 : index
    %0 = vector.load %arg1[%c0, %c0_0] : memref<16x512xbf16, #tpu.memory_space<vmem>>, vector<16x512xbf16>
    %c0_1 = arith.constant 0 : index
    %c0_2 = arith.constant 0 : index
    %1 = vector.load %arg2[%c0_1, %c0_2] : memref<512x512xbf16, #tpu.memory_space<vmem>>, vector<512x512xbf16>
    %cst = arith.constant dense<0.000000e+00> : vector<16x512xf32>
    %2 = tpu.matmul %0, %1, %cst {dimension_numbers = #tpu.dot_dimension_numbers<[1], [0], [0], [1], [0, 0, 1, 1], [], []>} : vector<16x512xbf16>, vector<512x512xbf16>, vector<16x512xf32> -> vector<16x512xf32>
    %c0_3 = arith.constant 0 : index
    %c0_4 = arith.constant 0 : index
    %3 = vector.load %arg3[%c0_3, %c0_4] : memref<1x512xf32, #tpu.memory_space<vmem>>, vector<1x512xf32>
    %4 = vector.broadcast %3 : vector<1x512xf32> to vector<16x512xf32>
    %5 = arith.addf %2, %4 : vector<16x512xf32>
    %cst_5 = arith.constant 0.000000e+00 : f32
    %6 = vector.broadcast %cst_5 : f32 to vector<16x512xf32>
    %7 = arith.maximumf %5, %6 : vector<16x512xf32>
    %8 = arith.truncf %7 : vector<16x512xf32> to vector<16x512xbf16>
    %c0_6 = arith.constant 0 : index
    %c0_7 = arith.constant 0 : index
    %9 = vector.load %arg4[%c0_6, %c0_7] : memref<512x512xbf16, #tpu.memory_space<vmem>>, vector<512x512xbf16>
    %cst_8 = arith.constant dense<0.000000e+00> : vector<16x512xf32>
    %10 = tpu.matmul %8, %9, %cst_8 {dimension_numbers = #tpu.dot_dimension_numbers<[1], [0], [0], [1], [0, 0, 1, 1], [], []>} : vector<16x512xbf16>, vector<512x512xbf16>, vector<16x512xf32> -> vector<16x512xf32>
    %c0_9 = arith.constant 0 : index
    %c0_10 = arith.constant 0 : index
    %11 = vector.load %arg5[%c0_9, %c0_10] : memref<1x512xf32, #tpu.memory_space<vmem>>, vector<1x512xf32>
    %12 = vector.broadcast %11 : vector<1x512xf32> to vector<16x512xf32>
    %13 = arith.addf %10, %12 : vector<16x512xf32>
    %cst_11 = arith.constant 0.000000e+00 : f32
    %14 = vector.broadcast %cst_11 : f32 to vector<16x512xf32>
    %15 = arith.maximumf %13, %14 : vector<16x512xf32>
    %16 = arith.truncf %15 : vector<16x512xf32> to vector<16x512xbf16>
    %c0_12 = arith.constant 0 : index
    %c0_13 = arith.constant 0 : index
    %17 = vector.load %arg6[%c0_12, %c0_13] : memref<16x512xbf16, #tpu.memory_space<vmem>>, vector<16x512xbf16>
    tpu.vector_store %arg6[%c0_12, %c0_13], %16 {strides = array<i32>} : memref<16x512xbf16, #tpu.memory_space<vmem>>, vector<16x512xbf16>,
    return
  }
  func.func @transform_0(%arg0: i32) -> (i32, i32) {
    %c0_i32 = arith.constant 0 : i32
    %c0_i32_0 = arith.constant 0 : i32
    return %arg0, %c0_i32 : i32, i32
  }
  func.func @transform_1(%arg0: i32) -> (i32, i32) {
    %c0_i32 = arith.constant 0 : i32
    %c0_i32_0 = arith.constant 0 : i32
    %c0_i32_1 = arith.constant 0 : i32
    return %c0_i32, %c0_i32_0 : i32, i32
  }
  func.func @transform_2(%arg0: i32) -> (i32, i32) {
    %c0_i32 = arith.constant 0 : i32
    %c0_i32_0 = arith.constant 0 : i32
    %c0_i32_1 = arith.constant 0 : i32
    return %c0_i32, %c0_i32_0 : i32, i32
  }
  func.func @transform_3(%arg0: i32) -> (i32, i32) {
    %c0_i32 = arith.constant 0 : i32
    %c0_i32_0 = arith.constant 0 : i32
    %c0_i32_1 = arith.constant 0 : i32
    return %c0_i32, %c0_i32_0 : i32, i32
  }
  func.func @transform_4(%arg0: i32) -> (i32, i32) {
    %c0_i32 = arith.constant 0 : i32
    %c0_i32_0 = arith.constant 0 : i32
    %c0_i32_1 = arith.constant 0 : i32
    return %c0_i32, %c0_i32_0 : i32, i32
  }
  func.func @transform_5(%arg0: i32) -> (i32, i32) {
    %c0_i32 = arith.constant 0 : i32
    %c0_i32_0 = arith.constant 0 : i32
    return %arg0, %c0_i32 : i32, i32
  }
}

module attributes {stable_mosaic.version = 11 : i64} {
  func.func @_cls_kernel(%arg0: i32, %arg1: memref<64x1152xbf16, #tpu.memory_space<vmem>>, %arg2: memref<1152x128xbf16, #tpu.memory_space<vmem>>, %arg3: memref<1x128xf32, #tpu.memory_space<vmem>>, %arg4: memref<64x128xf32, #tpu.memory_space<vmem>>) attributes {dimension_semantics = [#tpu.dimension_semantics<parallel>], iteration_bounds = array<i64: 2>, scalar_prefetch = 0 : i64, scratch_operands = 0 : i64, tpu.core_type = #tpu.core_type<tc>, window_params = [{transform_indices = @transform_0, window_bounds = array<i64: 64, 1152>}, {pipeline_mode = #tpu.pipeline_mode<synchronous>, transform_indices = @transform_1, window_bounds = array<i64: 1152, 128>}, {pipeline_mode = #tpu.pipeline_mode<synchronous>, transform_indices = @transform_2, window_bounds = array<i64: 1, 128>}, {transform_indices = @transform_3, window_bounds = array<i64: 64, 128>}]} {
    %c0 = arith.constant 0 : index
    %c0_0 = arith.constant 0 : index
    %0 = vector.load %arg1[%c0, %c0_0] : memref<64x1152xbf16, #tpu.memory_space<vmem>>, vector<64x1152xbf16>
    %c0_1 = arith.constant 0 : index
    %c0_2 = arith.constant 0 : index
    %1 = vector.load %arg2[%c0_1, %c0_2] : memref<1152x128xbf16, #tpu.memory_space<vmem>>, vector<1152x128xbf16>
    %cst = arith.constant dense<0.000000e+00> : vector<64x128xf32>
    %2 = tpu.matmul %0, %1, %cst {dimension_numbers = #tpu.dot_dimension_numbers<[1], [0], [0], [1], [0, 0, 1, 1], [], []>} : vector<64x1152xbf16>, vector<1152x128xbf16>, vector<64x128xf32> -> vector<64x128xf32>
    %c0_3 = arith.constant 0 : index
    %c0_4 = arith.constant 0 : index
    %3 = vector.load %arg3[%c0_3, %c0_4] : memref<1x128xf32, #tpu.memory_space<vmem>>, vector<1x128xf32>
    %4 = vector.broadcast %3 : vector<1x128xf32> to vector<64x128xf32>
    %5 = arith.addf %2, %4 : vector<64x128xf32>
    %cst_5 = arith.constant 0.000000e+00 : f32
    %6 = vector.broadcast %cst_5 : f32 to vector<64x128xf32>
    %7 = arith.maximumf %5, %6 : vector<64x128xf32>
    %8 = tpu.iota {dimensions = array<i32: 1>} : vector<64x128xi32>
    %c32_i32 = arith.constant 32 : i32
    %9 = vector.broadcast %c32_i32 : i32 to vector<64x128xi32>
    %10 = arith.cmpi slt, %8, %9 : vector<64x128xi32>
    %cst_6 = arith.constant -1.000000e+30 : f32
    %11 = vector.broadcast %cst_6 : f32 to vector<64x128xf32>
    %12 = arith.select %10, %7, %11 : vector<64x128xi1>, vector<64x128xf32>
    %cst_7 = arith.constant dense<0xFF800000> : vector<64xf32>
    %13 = vector.multi_reduction <maximumf>, %12, %cst_7 [1] : vector<64x128xf32> to vector<64xf32>
    %14 = vector.shape_cast %13 : vector<64xf32> to vector<64x1xf32>
    %15 = vector.broadcast %14 : vector<64x1xf32> to vector<64x128xf32>
    %16 = arith.subf %12, %15 : vector<64x128xf32>
    %17 = math.exp %16 : vector<64x128xf32>
    %cst_8 = arith.constant dense<0.000000e+00> : vector<64xf32>
    %18 = vector.multi_reduction <add>, %17, %cst_8 [1] : vector<64x128xf32> to vector<64xf32>
    %19 = vector.shape_cast %18 : vector<64xf32> to vector<64x1xf32>
    %20 = math.log %19 : vector<64x1xf32>
    %21 = vector.broadcast %20 : vector<64x1xf32> to vector<64x128xf32>
    %22 = arith.subf %16, %21 : vector<64x128xf32>
    %c0_9 = arith.constant 0 : index
    %c0_10 = arith.constant 0 : index
    %23 = vector.load %arg4[%c0_9, %c0_10] : memref<64x128xf32, #tpu.memory_space<vmem>>, vector<64x128xf32>
    tpu.vector_store %arg4[%c0_9, %c0_10], %22 {strides = array<i32>} : memref<64x128xf32, #tpu.memory_space<vmem>>, vector<64x128xf32>,
    return
  }
  func.func @transform_0(%arg0: i32) -> (i32, i32) {
    %c0_i32 = arith.constant 0 : i32
    %c0_i32_0 = arith.constant 0 : i32
    return %arg0, %c0_i32 : i32, i32
  }
  func.func @transform_1(%arg0: i32) -> (i32, i32) {
    %c0_i32 = arith.constant 0 : i32
    %c0_i32_0 = arith.constant 0 : i32
    %c0_i32_1 = arith.constant 0 : i32
    return %c0_i32, %c0_i32_0 : i32, i32
  }
  func.func @transform_2(%arg0: i32) -> (i32, i32) {
    %c0_i32 = arith.constant 0 : i32
    %c0_i32_0 = arith.constant 0 : i32
    %c0_i32_1 = arith.constant 0 : i32
    return %c0_i32, %c0_i32_0 : i32, i32
  }
  func.func @transform_3(%arg0: i32) -> (i32, i32) {
    %c0_i32 = arith.constant 0 : i32
    %c0_i32_0 = arith.constant 0 : i32
    return %arg0, %c0_i32 : i32, i32
  }
}

</mosaic_0001>

<llo_original>
// kernel: mff_forward.3
$region0: #{mff_forward.3}
  #allocation0 [shape = 'u32[]', space=smem, size = 0x4, offset = 0x4, fixed_abs, tag = 'smem constant byte address 0x4 - core index']
  #allocation1 [shape = 'u32[144,128]{1,0:T(1,128)}', space=vmem, size = 0x12000, scoped, tag = 'internal scratch']
  %s0 = inlined_call_operand.vmem [shape: bf16[32,256], index: 0, kind: input, shape index: {}]
  %s1 = inlined_call_operand.vmem [shape: bf16[256,512], index: 1, kind: input, shape index: {}]
  %s2 = inlined_call_operand.hbm [shape: f32[1,512], index: 2, kind: input, shape index: {}]
  %s3 = inlined_call_operand.hbm [shape: bf16[512,128], index: 3, kind: input, shape index: {}]
  %s4 = inlined_call_operand.hbm [shape: f32[1,128], index: 4, kind: input, shape index: {}]
  %s5 = inlined_call_operand.vmem [shape: f32[32,512], index: 5, kind: output, shape index: {0}]
  %s6 = inlined_call_operand.vmem [shape: bf16[32,128], index: 6, kind: output, shape index: {1}]
  %7 = xla_tuple %s5, %s6
  %s8 = sld [smem:[#allocation0]]
  $region73: #{mff_forward.3} parent=0
    _
  %s10 = ssub.s32 1, %s8
  %s11 = scalar_select 0, %s10, %s8
  $region1: #{mff_forward.3} parent=0
    #allocation2 [shape = 'u8[2048]{0}', space=vmem, size = 0x800, scoped, tag = 'input window, operand 2, single buffered']
    #allocation3 [shape = 's32[2]{0}', space=sflag, size = 0x8, scoped, tag = 'scoped memory for mff_forward.3']
    #allocation4 [shape = 'u8[131072]{0}', space=vmem, size = 0x20000, scoped, tag = 'input window, operand 3, single buffered']
    #allocation5 [shape = 's32[1]{0}', space=sflag, size = 0x4, scoped, tag = 'scoped memory for mff_forward.3']
    #allocation6 [shape = 'u8[512]{0}', space=vmem, size = 0x400, scoped, tag = 'input window, operand 4, single buffered']
    %12 = vsyncpa [#allocation3], 0
    %13 = vsyncpa [#allocation5], 0
    loop: start=0, step=1, limit=4
    $region2: #{mff_forward.3} parent=1 // loop_pre_header
      _
    $region3: #{mff_forward.3} parent=1 // loop_header
      %s15 = sphi 0, %s19
      %p16 = scmp.ge.s32.totalorder %s15, 4
      %s25 = sphi 0, %s27
      %s28 = sphi 0, %s25
      %s29 = sphi 0, %s28
      %s45 = sphi 0, %s29
      %s49 = sphi 0, %s49
      %s51 = sphi 0, %s49
      %s52 = sphi 0, %s51
      %s66 = sphi 0, %s52
      %s70 = sphi 0, %s70
      %s72 = sphi 0, %s70
      %s73 = sphi 0, %s72
      %s87 = sphi 0, %s73
      %s91 = sphi 0, %s91
      %s93 = sphi 0, %s91
      %s94 = sphi 0, %s93
      %s108 = sphi 0, %s94
      %s112 = sphi 0, %s112
      %s114 = sphi 0, %s112
      %s115 = sphi 0, %s114
      %s129 = sphi 0, %s115
      %s135 = sphi 0, %s137
      %s138 = sphi 0, %s135
      %s139 = sphi 0, %s138
      %s155 = sphi 0, %s139
      %s161 = sphi 0, %s163
      %s164 = sphi 0, %s161
      %s165 = sphi 0, %s164
      %s181 = sphi 0, %s165
    $region4: #{mff_forward.3} parent=1 // loop_header_branch
      %18 = sbr.rel (%p16) target = $region8
    $region5: #{mff_forward.3} parent=1 // loop_body
      %s20 = ssub.s32 %s15, 1
      %s21 = ssub.s32 %s15, 2
      %s22 = sadd.s32 %s15, 1
      %s23 = ssub.s32 %s15, %s22
      %p24 = scmp.eq.s32.totalorder %s23, 0
      %s26 = sadd.s32 %s25, 1
      %s27 = scalar_select %p24, %s25, %s26
      %p30 = pneg %p24
      %p31 = scmp.eq.s32.totalorder %s15, 1
      %p32 = por %p30, %p31
      %p33 = scmp.ne.s32.totalorder %s25, %s28
      %p34 = scmp.eq.s32.totalorder %s15, 0
      %p35 = por %p33, %p34
      %p36 = scmp.ne.s32.totalorder %s25, %s28
      %p37 = scmp.eq.s32.totalorder %s20, 1
      %p38 = por %p36, %p37
      %p39 = scmp.ne.s32.totalorder %s28, %s29
      %p40 = scmp.eq.s32.totalorder %s20, 0
      %p41 = por %p39, %p40
      %p42 = scmp.ne.s32.totalorder %s28, %s29
      %p43 = scmp.eq.s32.totalorder %s21, 1
      %p44 = por %p42, %p43
      %p46 = scmp.ne.s32.totalorder %s29, %s45
      %p47 = scmp.eq.s32.totalorder %s21, 0
      %p48 = por %p46, %p47
      %s50 = sadd.s32 %s49, 1
      %p53 = scmp.eq.s32.totalorder %s15, 1
      %p54 = scmp.ne.s32.totalorder %s49, %s51
      %p55 = scmp.eq.s32.totalorder %s15, 0
      %p56 = por %p54, %p55
      %p57 = scmp.ne.s32.totalorder %s49, %s51
      %p58 = scmp.eq.s32.totalorder %s20, 1
      %p59 = por %p57, %p58
      %p60 = scmp.ne.s32.totalorder %s51, %s52
      %p61 = scmp.eq.s32.totalorder %s20, 0
      %p62 = por %p60, %p61
      %p63 = scmp.ne.s32.totalorder %s51, %s52
      %p64 = scmp.eq.s32.totalorder %s21, 1
      %p65 = por %p63, %p64
      %p67 = scmp.ne.s32.totalorder %s52, %s66
      %p68 = scmp.eq.s32.totalorder %s21, 0
      %p69 = por %p67, %p68
      %s71 = sadd.s32 %s70, 1
      %p74 = scmp.eq.s32.totalorder %s15, 1
      %p75 = scmp.ne.s32.totalorder %s70, %s72
      %p76 = scmp.eq.s32.totalorder %s15, 0
      %p77 = por %p75, %p76
      %p78 = scmp.ne.s32.totalorder %s70, %s72
      %p79 = scmp.eq.s32.totalorder %s20, 1
      %p80 = por %p78, %p79
      %p81 = scmp.ne.s32.totalorder %s72, %s73
      %p82 = scmp.eq.s32.totalorder %s20, 0
      %p83 = por %p81, %p82
      %p84 = scmp.ne.s32.totalorder %s72, %s73
      %p85 = scmp.eq.s32.totalorder %s21, 1
      %p86 = por %p84, %p85
      %p88 = scmp.ne.s32.totalorder %s73, %s87
      %p89 = scmp.eq.s32.totalorder %s21, 0
      %p90 = por %p88, %p89
      %s92 = sadd.s32 %s91, 1
      %p95 = scmp.eq.s32.totalorder %s15, 1
      %p96 = scmp.ne.s32.totalorder %s91, %s93
      %p97 = scmp.eq.s32.totalorder %s15, 0
      %p98 = por %p96, %p97
      %p99 = scmp.ne.s32.totalorder %s91, %s93
      %p100 = scmp.eq.s32.totalorder %s20, 1
      %p101 = por %p99, %p100
      %p102 = scmp.ne.s32.totalorder %s93, %s94
      %p103 = scmp.eq.s32.totalorder %s20, 0
      %p104 = por %p102, %p103
      %p105 = scmp.ne.s32.totalorder %s93, %s94
      %p106 = scmp.eq.s32.totalorder %s21, 1
      %p107 = por %p105, %p106
      %p109 = scmp.ne.s32.totalorder %s94, %s108
      %p110 = scmp.eq.s32.totalorder %s21, 0
      %p111 = por %p109, %p110
      %s113 = sadd.s32 %s112, 1
      %p116 = scmp.eq.s32.totalorder %s15, 1
      %p117 = scmp.ne.s32.totalorder %s112, %s114
      %p118 = scmp.eq.s32.totalorder %s15, 0
      %p119 = por %p117, %p118
      %p120 = scmp.ne.s32.totalorder %s112, %s114
      %p121 = scmp.eq.s32.totalorder %s20, 1
      %p122 = por %p120, %p121
      %p123 = scmp.ne.s32.totalorder %s114, %s115
      %p124 = scmp.eq.s32.totalorder %s20, 0
      %p125 = por %p123, %p124
      %p126 = scmp.ne.s32.totalorder %s114, %s115
      %p127 = scmp.eq.s32.totalorder %s21, 1
      %p128 = por %p126, %p127
      %p130 = scmp.ne.s32.totalorder %s115, %s129
      %p131 = scmp.eq.s32.totalorder %s21, 0
      %p132 = por %p130, %p131
      %s133 = ssub.s32 %s15, %s22
      %p134 = scmp.eq.s32.totalorder %s133, 0
      %s136 = sadd.s32 %s135, 1
      %s137 = scalar_select %p134, %s135, %s136
      %p140 = pneg %p134
      %p141 = scmp.eq.s32.totalorder %s15, 1
      %p142 = por %p140, %p141
      %p143 = scmp.ne.s32.totalorder %s135, %s138
      %p144 = scmp.eq.s32.totalorder %s15, 0
      %p145 = por %p143, %p144
      %p146 = scmp.ne.s32.totalorder %s135, %s138
      %p147 = scmp.eq.s32.totalorder %s20, 1
      %p148 = por %p146, %p147
      %p149 = scmp.ne.s32.totalorder %s138, %s139
      %p150 = scmp.eq.s32.totalorder %s20, 0
      %p151 = por %p149, %p150
      %p152 = scmp.ne.s32.totalorder %s138, %s139
      %p153 = scmp.eq.s32.totalorder %s21, 1
      %p154 = por %p152, %p153
      %p156 = scmp.ne.s32.totalorder %s139, %s155
      %p157 = scmp.eq.s32.totalorder %s21, 0
      %p158 = por %p156, %p157
      %s159 = ssub.s32 %s15, %s22
      %p160 = scmp.eq.s32.totalorder %s159, 0
      %s162 = sadd.s32 %s161, 1
      %s163 = scalar_select %p160, %s161, %s162
      %p166 = pneg %p160
      %p167 = scmp.eq.s32.totalorder %s15, 1
      %p168 = por %p166, %p167
      %p169 = scmp.ne.s32.totalorder %s161, %s164
      %p170 = scmp.eq.s32.totalorder %s15, 0
      %p171 = por %p169, %p170
      %p172 = scmp.ne.s32.totalorder %s161, %s164
      %p173 = scmp.eq.s32.totalorder %s20, 1
      %p174 = por %p172, %p173
      %p175 = scmp.ne.s32.totalorder %s164, %s165
      %p176 = scmp.eq.s32.totalorder %s20, 0
      %p177 = por %p175, %p176
      %p178 = scmp.ne.s32.totalorder %s164, %s165
      %p179 = scmp.eq.s32.totalorder %s21, 1
      %p180 = por %p178, %p179
      %p182 = scmp.ne.s32.totalorder %s165, %s181
      %p183 = scmp.eq.s32.totalorder %s21, 0
      %p184 = por %p182, %p183
      %p185 = scmp.le.s32.totalorder 1, %s15
      %p186 = scmp.lt.s32.totalorder %s15, 3
      %p187 = pnand %p185, %p186
      %p188 = pneg %p187
      // Predicated region
      $region9: #{mff_forward.3} parent=5 // pred_check
        _
      $region10: #{mff_forward.3} parent=5 // pred_check_branch
        %190 = sbr.rel (%p187) target = $region12
      $region11: #{mff_forward.3} parent=5 // pred_region
        %s191 = ssub.s32 %s15, 1
        // Predicated region
        $region13: #{mff_forward.3} parent=11 // pred_check
          %p192 = pneg %p62
        $region14: #{mff_forward.3} parent=11 // pred_check_branch
          %194 = sbr.rel (%p192) target = $region16
        $region15: #{mff_forward.3} parent=11 // pred_region
          _
        $region16: #{mff_forward.3} parent=11 // pred_fallthru
          _
        // Predicated region
        $region17: #{mff_forward.3} parent=11 // pred_check
          %p195 = pneg %p83
        $region18: #{mff_forward.3} parent=11 // pred_check_branch
          %197 = sbr.rel (%p195) target = $region20
        $region19: #{mff_forward.3} parent=11 // pred_region
          %s199 = ssub.s32 64, 64
          %200 = vsyncadd [#allocation3], %s199
          %s202 = sshll.u32 [#allocation2], 4
          %s203 = int_to_ptr.vmem [resolvable:$true] %s202
          %205 = dma.hbm_to_vmem [thread:$0]  %s2, 64, %s203, [#allocation3]
        $region20: #{mff_forward.3} parent=11 // pred_fallthru
          _
        // Predicated region
        $region21: #{mff_forward.3} parent=11 // pred_check
          %p206 = pneg %p104
        $region22: #{mff_forward.3} parent=11 // pred_check_branch
          %208 = sbr.rel (%p206) target = $region24
        $region23: #{mff_forward.3} parent=11 // pred_region
          %s210 = ssub.s32 4096, 4096
          %211 = vsyncadd [#allocation5], %s210
          %s212 = sshll.u32 [#allocation4], 4
          %s213 = int_to_ptr.vmem [resolvable:$true] %s212
          %218 = dma.hbm_to_vmem [thread:$0]  %s3, 4096, %s213, [#allocation5], 64, 64, 4
        $region24: #{mff_forward.3} parent=11 // pred_fallthru
          _
        // Predicated region
        $region25: #{mff_forward.3} parent=11 // pred_check
          %p219 = pneg %p125
        $region26: #{mff_forward.3} parent=11 // pred_check_branch
          %221 = sbr.rel (%p219) target = $region28
        $region27: #{mff_forward.3} parent=11 // pred_region
          %s223 = ssub.s32 16, 16
          %224 = vsyncadd [#allocation5], %s223
          %s226 = sshll.u32 [#allocation6], 4
          %s227 = int_to_ptr.vmem [resolvable:$true] %s226
          %229 = dma.hbm_to_vmem [thread:$0]  %s4, 16, %s227, [#allocation5]
        $region28: #{mff_forward.3} parent=11 // pred_fallthru
          _
      $region12: #{mff_forward.3} parent=5 // pred_fallthru
        _
      %p230 = scmp.lt.s32.totalorder %s15, 2
      // Predicated region
      $region29: #{mff_forward.3} parent=5 // pred_check
        %p231 = pneg %p230
      $region30: #{mff_forward.3} parent=5 // pred_check_branch
        %233 = sbr.rel (%p231) target = $region32
      $region31: #{mff_forward.3} parent=5 // pred_region
        // Predicated region
        $region33: #{mff_forward.3} parent=31 // pred_check
          %p234 = pneg %p35
        $region34: #{mff_forward.3} parent=31 // pred_check_branch
          %236 = sbr.rel (%p234) target = $region36
        $region35: #{mff_forward.3} parent=31 // pred_region
          %s237 = smul.u32 2, %s15
          %p238 = scmp.lt.s32.totalorder %s237, 3
          %s239 = scalar_select %p238, %s237, 3
          %s240 = smul.addr %s239, 2
          %s241 = smul.addr %s240, 4
          %s242 = scalar_lea.vmem %s0, %s241
          %s243 = smul.u32 2, %s15
        $region36: #{mff_forward.3} parent=31 // pred_fallthru
          _
      $region32: #{mff_forward.3} parent=5 // pred_fallthru
        _
      %p244 = scmp.le.s32.totalorder 1, %s15
      %p245 = scmp.lt.s32.totalorder %s15, 3
      %p246 = pnand %p244, %p245
      %p247 = pneg %p246
      // Predicated region
      $region37: #{mff_forward.3} parent=5 // pred_check
        _
      $region38: #{mff_forward.3} parent=5 // pred_check_branch
        %249 = sbr.rel (%p246) target = $region40
      $region39: #{mff_forward.3} parent=5 // pred_region
        %s250 = ssub.s32 %s15, 1
        // Predicated region
        $region41: #{mff_forward.3} parent=39 // pred_check
          %p251 = pneg %p83
        $region42: #{mff_forward.3} parent=39 // pred_check_branch
          %253 = sbr.rel (%p251) target = $region44
        $region43: #{mff_forward.3} parent=39 // pred_region
          %254 = dma.done [#allocation3], 64
        $region44: #{mff_forward.3} parent=39 // pred_fallthru
          _
        // Predicated region
        $region45: #{mff_forward.3} parent=39 // pred_check
          %p255 = pneg %p104
        $region46: #{mff_forward.3} parent=39 // pred_check_branch
          %257 = sbr.rel (%p255) target = $region48
        $region47: #{mff_forward.3} parent=39 // pred_region
          %258 = dma.done [#allocation5], 4096
        $region48: #{mff_forward.3} parent=39 // pred_fallthru
          _
        // Predicated region
        $region49: #{mff_forward.3} parent=39 // pred_check
          %p259 = pneg %p125
        $region50: #{mff_forward.3} parent=39 // pred_check_branch
          %261 = sbr.rel (%p259) target = $region52
        $region51: #{mff_forward.3} parent=39 // pred_region
          %262 = dma.done [#allocation5], 16
        $region52: #{mff_forward.3} parent=39 // pred_fallthru
          _
        %s263 = smul.u32 2, %s20
        %p264 = scmp.lt.s32.totalorder %s263, 3
        %s265 = scalar_select %p264, %s263, 3
        %s266 = smul.addr %s265, 2
        %s267 = smul.addr %s266, 4
        %s268 = scalar_lea.vmem %s0, %s267
        %p269 = pneg %p41
        %p270 = pneg %p38
        %p271 = pneg %p62
        %p272 = pneg %p59
        %p273 = pneg %p83
        %p274 = pneg %p80
        %p275 = pneg %p104
        %p276 = pneg %p101
        %p277 = pneg %p125
        %p278 = pneg %p122
        %p279 = pneg %p151
        %p280 = pneg %p148
        %s281 = smul.u32 2, %s20
        %p282 = scmp.lt.s32.totalorder %s281, 3
        %s283 = scalar_select %p282, %s281, 3
        %s284 = smul.addr %s283, 4
        %s285 = smul.addr %s284, 8
        %s286 = scalar_lea.vmem %s5, %s285
        %p287 = pneg %p177
        %p288 = pneg %p174
        %s289 = smul.u32 2, %s20
        %p290 = scmp.lt.s32.totalorder %s289, 3
        %s291 = scalar_select %p290, %s289, 3
        %s292 = smul.addr %s291, 4
        %s293 = scalar_lea.vmem %s6, %s292
        %s294 = smul.u32 2, %s20
        %p295 = scmp.lt.s32.totalorder %s294, 3
        %s296 = scalar_select %p295, %s294, 3
        %s297 = smul.addr %s296, 2
        %s298 = smul.addr %s297, 4
        %s299 = scalar_lea.vmem %s0, %s298
        %s300 = smul.u32 2, %s20
        %s301 = smul.u32 2, %s20
        %p302 = scmp.lt.s32.totalorder %s301, 3
        %s303 = scalar_select %p302, %s301, 3
        %s304 = smul.addr %s303, 4
        %s305 = smul.addr %s304, 8
        %s306 = scalar_lea.vmem %s5, %s305
        %s307 = smul.u32 2, %s20
        %s308 = smul.u32 2, %s20
        %p309 = scmp.lt.s32.totalorder %s308, 3
        %s310 = scalar_select %p309, %s308, 3
        %s311 = smul.addr %s310, 4
        %s312 = scalar_lea.vmem %s6, %s311
        %s313 = smul.u32 2, %s20
        %v315 = vld [vmem:[%s299] sm:$0xff]
        %v316 = vld [vmem:[%s299 + $0x8] sm:$0xff]
        %v317 = vld [vmem:[%s1] sm:$0xff]
        %v318 = vld [vmem:[%s1 + $0x8] sm:$0xff]
        %v319 = vld [vmem:[%s1 + $0x10] sm:$0xff]
        %v320 = vld [vmem:[%s1 + $0x18] sm:$0xff]
        %v321 = vld [vmem:[%s1 + $0x20] sm:$0xff]
        %v322 = vld [vmem:[%s1 + $0x28] sm:$0xff]
        %v323 = vld [vmem:[%s1 + $0x30] sm:$0xff]
        %v324 = vld [vmem:[%s1 + $0x38] sm:$0xff]
        %v325 = vld [vmem:[%s1 + $0x40] sm:$0xff]
        %v326 = vld [vmem:[%s1 + $0x48] sm:$0xff]
        %v327 = vld [vmem:[%s1 + $0x50] sm:$0xff]
        %v328 = vld [vmem:[%s1 + $0x58] sm:$0xff]
        %v329 = vld [vmem:[%s1 + $0x60] sm:$0xff]
        %v330 = vld [vmem:[%s1 + $0x68] sm:$0xff]
        %v331 = vld [vmem:[%s1 + $0x70] sm:$0xff]
        %v332 = vld [vmem:[%s1 + $0x78] sm:$0xff]
        %v333 = vld [vmem:[%s1 + $0x80] sm:$0xff]
        %v334 = vld [vmem:[%s1 + $0x88] sm:$0xff]
        %v335 = vld [vmem:[%s1 + $0x90] sm:$0xff]
        %v336 = vld [vmem:[%s1 + $0x98] sm:$0xff]
        %v337 = vld [vmem:[%s1 + $0xa0] sm:$0xff]
        %v338 = vld [vmem:[%s1 + $0xa8] sm:$0xff]
        %v339 = vld [vmem:[%s1 + $0xb0] sm:$0xff]
        %v340 = vld [vmem:[%s1 + $0xb8] sm:$0xff]
        %v341 = vld [vmem:[%s1 + $0xc0] sm:$0xff]
        %v342 = vld [vmem:[%s1 + $0xc8] sm:$0xff]
        %v343 = vld [vmem:[%s1 + $0xd0] sm:$0xff]
        %v344 = vld [vmem:[%s1 + $0xd8] sm:$0xff]
        %v345 = vld [vmem:[%s1 + $0xe0] sm:$0xff]
        %v346 = vld [vmem:[%s1 + $0xe8] sm:$0xff]
        %v347 = vld [vmem:[%s1 + $0xf0] sm:$0xff]
        %v348 = vld [vmem:[%s1 + $0xf8] sm:$0xff]
        %v349 = vld [vmem:[%s1 + $0x100] sm:$0xff]
        %v350 = vld [vmem:[%s1 + $0x108] sm:$0xff]
        %v351 = vld [vmem:[%s1 + $0x110] sm:$0xff]
        %v352 = vld [vmem:[%s1 + $0x118] sm:$0xff]
        %v353 = vld [vmem:[%s1 + $0x120] sm:$0xff]
        %v354 = vld [vmem:[%s1 + $0x128] sm:$0xff]
        %v355 = vld [vmem:[%s1 + $0x130] sm:$0xff]
        %v356 = vld [vmem:[%s1 + $0x138] sm:$0xff]
        %v357 = vld [vmem:[%s1 + $0x140] sm:$0xff]
        %v358 = vld [vmem:[%s1 + $0x148] sm:$0xff]
        %v359 = vld [vmem:[%s1 + $0x150] sm:$0xff]
        %v360 = vld [vmem:[%s1 + $0x158] sm:$0xff]
        %v361 = vld [vmem:[%s1 + $0x160] sm:$0xff]
        %v362 = vld [vmem:[%s1 + $0x168] sm:$0xff]
        %v363 = vld [vmem:[%s1 + $0x170] sm:$0xff]
        %v364 = vld [vmem:[%s1 + $0x178] sm:$0xff]
        %v365 = vld [vmem:[%s1 + $0x180] sm:$0xff]
        %v366 = vld [vmem:[%s1 + $0x188] sm:$0xff]
        %v367 = vld [vmem:[%s1 + $0x190] sm:$0xff]
        %v368 = vld [vmem:[%s1 + $0x198] sm:$0xff]
        %v369 = vld [vmem:[%s1 + $0x1a0] sm:$0xff]
        %v370 = vld [vmem:[%s1 + $0x1a8] sm:$0xff]
        %v371 = vld [vmem:[%s1 + $0x1b0] sm:$0xff]
        %v372 = vld [vmem:[%s1 + $0x1b8] sm:$0xff]
        %v373 = vld [vmem:[%s1 + $0x1c0] sm:$0xff]
        %v374 = vld [vmem:[%s1 + $0x1c8] sm:$0xff]
        %v375 = vld [vmem:[%s1 + $0x1d0] sm:$0xff]
        %v376 = vld [vmem:[%s1 + $0x1d8] sm:$0xff]
        %v377 = vld [vmem:[%s1 + $0x1e0] sm:$0xff]
        %v378 = vld [vmem:[%s1 + $0x1e8] sm:$0xff]
        %v379 = vld [vmem:[%s1 + $0x1f0] sm:$0xff]
        %v380 = vld [vmem:[%s1 + $0x1f8] sm:$0xff]
        %v381 = vld [vmem:[#allocation2] sm:$0xf]
        %v383 = vlaneseq
        %v384 = vshrl.u32 %v383, 7
        %v385 = vsub.s32 0, %v384
        %v386 = vrot.slane %v381, %v385
        %v387 = vlaneseq
        %v388 = vshrl.u32 %v387, 7
        %v389 = vsub.s32 1, %v388
        %v390 = vrot.slane %v381, %v389
        %v391 = vlaneseq
        %v392 = vshrl.u32 %v391, 7
        %v393 = vsub.s32 2, %v392
        %v394 = vrot.slane %v381, %v393
        %v395 = vlaneseq
        %v396 = vshrl.u32 %v395, 7
        %v397 = vsub.s32 3, %v396
        %v398 = vrot.slane %v381, %v397
        %v405 = vunpack.c.l.b16 %v315
        %v406 = vunpack.c.h.b16 %v315
        %v407 = vunpack.c.l.b16 %v316
        %v408 = vunpack.c.h.b16 %v316
        %v409 = vpack.c.b16 %v407, %v405
        %v410 = vpack.c.b16 %v408, %v406
        %v477 = vunpack.c.l.b16 %v317
        %v478 = vunpack.c.h.b16 %v317
        %v479 = vunpack.c.l.b16 %v318
        %v480 = vunpack.c.h.b16 %v318
        %v481 = vunpack.c.l.b16 %v319
        %v482 = vunpack.c.h.b16 %v319
        %v483 = vunpack.c.l.b16 %v320
        %v484 = vunpack.c.h.b16 %v320
        %v485 = vunpack.c.l.b16 %v321
        %v486 = vunpack.c.h.b16 %v321
        %v487 = vunpack.c.l.b16 %v322
        %v488 = vunpack.c.h.b16 %v322
        %v489 = vunpack.c.l.b16 %v323
        %v490 = vunpack.c.h.b16 %v323
        %v491 = vunpack.c.l.b16 %v324
        %v492 = vunpack.c.h.b16 %v324
        %v493 = vunpack.c.l.b16 %v325
        %v494 = vunpack.c.h.b16 %v325
        %v495 = vunpack.c.l.b16 %v326
        %v496 = vunpack.c.h.b16 %v326
        %v497 = vunpack.c.l.b16 %v327
        %v498 = vunpack.c.h.b16 %v327
        %v499 = vunpack.c.l.b16 %v328
        %v500 = vunpack.c.h.b16 %v328
        %v501 = vunpack.c.l.b16 %v329
        %v502 = vunpack.c.h.b16 %v329
        %v503 = vunpack.c.l.b16 %v330
        %v504 = vunpack.c.h.b16 %v330
        %v505 = vunpack.c.l.b16 %v331
        %v506 = vunpack.c.h.b16 %v331
        %v507 = vunpack.c.l.b16 %v332
        %v508 = vunpack.c.h.b16 %v332
        %v509 = vunpack.c.l.b16 %v333
        %v510 = vunpack.c.h.b16 %v333
        %v511 = vunpack.c.l.b16 %v334
        %v512 = vunpack.c.h.b16 %v334
        %v513 = vunpack.c.l.b16 %v335
        %v514 = vunpack.c.h.b16 %v335
        %v515 = vunpack.c.l.b16 %v336
        %v516 = vunpack.c.h.b16 %v336
        %v517 = vunpack.c.l.b16 %v337
        %v518 = vunpack.c.h.b16 %v337
        %v519 = vunpack.c.l.b16 %v338
        %v520 = vunpack.c.h.b16 %v338
        %v521 = vunpack.c.l.b16 %v339
        %v522 = vunpack.c.h.b16 %v339
        %v523 = vunpack.c.l.b16 %v340
        %v524 = vunpack.c.h.b16 %v340
        %v525 = vunpack.c.l.b16 %v341
        %v526 = vunpack.c.h.b16 %v341
        %v527 = vunpack.c.l.b16 %v342
        %v528 = vunpack.c.h.b16 %v342
        %v529 = vunpack.c.l.b16 %v343
        %v530 = vunpack.c.h.b16 %v343
        %v531 = vunpack.c.l.b16 %v344
        %v532 = vunpack.c.h.b16 %v344
        %v533 = vunpack.c.l.b16 %v345
        %v534 = vunpack.c.h.b16 %v345
        %v535 = vunpack.c.l.b16 %v346
        %v536 = vunpack.c.h.b16 %v346
        %v537 = vunpack.c.l.b16 %v347
        %v538 = vunpack.c.h.b16 %v347
        %v539 = vunpack.c.l.b16 %v348
        %v540 = vunpack.c.h.b16 %v348
        %v541 = vunpack.c.l.b16 %v349
        %v542 = vunpack.c.h.b16 %v349
        %v543 = vunpack.c.l.b16 %v350
        %v544 = vunpack.c.h.b16 %v350
        %v545 = vunpack.c.l.b16 %v351
        %v546 = vunpack.c.h.b16 %v351
        %v547 = vunpack.c.l.b16 %v352
        %v548 = vunpack.c.h.b16 %v352
        %v549 = vunpack.c.l.b16 %v353
        %v550 = vunpack.c.h.b16 %v353
        %v551 = vunpack.c.l.b16 %v354
        %v552 = vunpack.c.h.b16 %v354
        %v553 = vunpack.c.l.b16 %v355
        %v554 = vunpack.c.h.b16 %v355
        %v555 = vunpack.c.l.b16 %v356
        %v556 = vunpack.c.h.b16 %v356
        %v557 = vunpack.c.l.b16 %v357
        %v558 = vunpack.c.h.b16 %v357
        %v559 = vunpack.c.l.b16 %v358
        %v560 = vunpack.c.h.b16 %v358
        %v561 = vunpack.c.l.b16 %v359
        %v562 = vunpack.c.h.b16 %v359
        %v563 = vunpack.c.l.b16 %v360
        %v564 = vunpack.c.h.b16 %v360
        %v565 = vunpack.c.l.b16 %v361
        %v566 = vunpack.c.h.b16 %v361
        %v567 = vunpack.c.l.b16 %v362
        %v568 = vunpack.c.h.b16 %v362
        %v569 = vunpack.c.l.b16 %v363
        %v570 = vunpack.c.h.b16 %v363
        %v571 = vunpack.c.l.b16 %v364
        %v572 = vunpack.c.h.b16 %v364
        %v573 = vunpack.c.l.b16 %v365
        %v574 = vunpack.c.h.b16 %v365
        %v575 = vunpack.c.l.b16 %v366
        %v576 = vunpack.c.h.b16 %v366
        %v577 = vunpack.c.l.b16 %v367
        %v578 = vunpack.c.h.b16 %v367
        %v579 = vunpack.c.l.b16 %v368
        %v580 = vunpack.c.h.b16 %v368
        %v581 = vunpack.c.l.b16 %v369
        %v582 = vunpack.c.h.b16 %v369
        %v583 = vunpack.c.l.b16 %v370
        %v584 = vunpack.c.h.b16 %v370
        %v585 = vunpack.c.l.b16 %v371
        %v586 = vunpack.c.h.b16 %v371
        %v587 = vunpack.c.l.b16 %v372
        %v588 = vunpack.c.h.b16 %v372
        %v589 = vunpack.c.l.b16 %v373
        %v590 = vunpack.c.h.b16 %v373
        %v591 = vunpack.c.l.b16 %v374
        %v592 = vunpack.c.h.b16 %v374
        %v593 = vunpack.c.l.b16 %v375
        %v594 = vunpack.c.h.b16 %v375
        %v595 = vunpack.c.l.b16 %v376
        %v596 = vunpack.c.h.b16 %v376
        %v597 = vunpack.c.l.b16 %v377
        %v598 = vunpack.c.h.b16 %v377
        %v599 = vunpack.c.l.b16 %v378
        %v600 = vunpack.c.h.b16 %v378
        %v601 = vunpack.c.l.b16 %v379
        %v602 = vunpack.c.h.b16 %v379
        %v603 = vunpack.c.l.b16 %v380
        %v604 = vunpack.c.h.b16 %v380
        %v605 = vpack.c.b16 %v481, %v477
        %v606 = vpack.c.b16 %v482, %v478
        %v607 = vpack.c.b16 %v483, %v479
        %v608 = vpack.c.b16 %v484, %v480
        %v609 = vpack.c.b16 %v489, %v485
        %v610 = vpack.c.b16 %v490, %v486
        %v611 = vpack.c.b16 %v491, %v487
        %v612 = vpack.c.b16 %v492, %v488
        %v613 = vpack.c.b16 %v497, %v493
        %v614 = vpack.c.b16 %v498, %v494
        %v615 = vpack.c.b16 %v499, %v495
        %v616 = vpack.c.b16 %v500, %v496
        %v617 = vpack.c.b16 %v505, %v501
        %v618 = vpack.c.b16 %v506, %v502
        %v619 = vpack.c.b16 %v507, %v503
        %v620 = vpack.c.b16 %v508, %v504
        %v621 = vpack.c.b16 %v513, %v509
        %v622 = vpack.c.b16 %v514, %v510
        %v623 = vpack.c.b16 %v515, %v511
        %v624 = vpack.c.b16 %v516, %v512
        %v625 = vpack.c.b16 %v521, %v517
        %v626 = vpack.c.b16 %v522, %v518
        %v627 = vpack.c.b16 %v523, %v519
        %v628 = vpack.c.b16 %v524, %v520
        %v629 = vpack.c.b16 %v529, %v525
        %v630 = vpack.c.b16 %v530, %v526
        %v631 = vpack.c.b16 %v531, %v527
        %v632 = vpack.c.b16 %v532, %v528
        %v633 = vpack.c.b16 %v537, %v533
        %v634 = vpack.c.b16 %v538, %v534
        %v635 = vpack.c.b16 %v539, %v535
        %v636 = vpack.c.b16 %v540, %v536
        %v637 = vpack.c.b16 %v545, %v541
        %v638 = vpack.c.b16 %v546, %v542
        %v639 = vpack.c.b16 %v547, %v543
        %v640 = vpack.c.b16 %v548, %v544
        %v641 = vpack.c.b16 %v553, %v549
        %v642 = vpack.c.b16 %v554, %v550
        %v643 = vpack.c.b16 %v555, %v551
        %v644 = vpack.c.b16 %v556, %v552
        %v645 = vpack.c.b16 %v561, %v557
        %v646 = vpack.c.b16 %v562, %v558
        %v647 = vpack.c.b16 %v563, %v559
        %v648 = vpack.c.b16 %v564, %v560
        %v649 = vpack.c.b16 %v569, %v565
        %v650 = vpack.c.b16 %v570, %v566
        %v651 = vpack.c.b16 %v571, %v567
        %v652 = vpack.c.b16 %v572, %v568
        %v653 = vpack.c.b16 %v577, %v573
        %v654 = vpack.c.b16 %v578, %v574
        %v655 = vpack.c.b16 %v579, %v575
        %v656 = vpack.c.b16 %v580, %v576
        %v657 = vpack.c.b16 %v585, %v581
        %v658 = vpack.c.b16 %v586, %v582
        %v659 = vpack.c.b16 %v587, %v583
        %v660 = vpack.c.b16 %v588, %v584
        %v661 = vpack.c.b16 %v593, %v589
        %v662 = vpack.c.b16 %v594, %v590
        %v663 = vpack.c.b16 %v595, %v591
        %v664 = vpack.c.b16 %v596, %v592
        %v665 = vpack.c.b16 %v601, %v597
        %v666 = vpack.c.b16 %v602, %v598
        %v667 = vpack.c.b16 %v603, %v599
        %v668 = vpack.c.b16 %v604, %v600
        %733 = vmatprep.subr.bf16.mxu0 %v634
        %734 = vmatpush1.bf16.msra.mxu0 %v633
        %735 = vmatprep.subr.bf16.mxu0 %v630
        %736 = vmatpush1.bf16.msra.mxu0 %v629
        %737 = vmatprep.subr.bf16.mxu0 %v626
        %738 = vmatpush1.bf16.msra.mxu0 %v625
        %739 = vmatprep.subr.bf16.mxu0 %v622
        %740 = vmatpush1.bf16.msra.mxu0 %v621
        %741 = vmatprep.subr.bf16.mxu0 %v618
        %742 = vmatpush1.bf16.msra.mxu0 %v617
        %743 = vmatprep.subr.bf16.mxu0 %v614
        %744 = vmatpush1.bf16.msra.mxu0 %v613
        %745 = vmatprep.subr.bf16.mxu0 %v610
        %746 = vmatpush1.bf16.msra.mxu0 %v609
        %747 = vmatprep.subr.bf16.mxu0 %v606
        %748 = vmatpush1.bf16.msra.mxu0 %v605
        %749 = vmatprep.subr.bf16.mxu0 %v666
        %750 = vmatpush2.bf16.msra.mxu0 %v665
        %751 = vmatprep.subr.bf16.mxu0 %v662
        %752 = vmatpush2.bf16.msra.mxu0 %v661
        %753 = vmatprep.subr.bf16.mxu0 %v658
        %754 = vmatpush2.bf16.msra.mxu0 %v657
        %755 = vmatprep.subr.bf16.mxu0 %v654
        %756 = vmatpush2.bf16.msra.mxu0 %v653
        %757 = vmatprep.subr.bf16.mxu0 %v650
        %758 = vmatpush2.bf16.msra.mxu0 %v649
        %759 = vmatprep.subr.bf16.mxu0 %v646
        %760 = vmatpush2.bf16.msra.mxu0 %v645
        %761 = vmatprep.subr.bf16.mxu0 %v642
        %762 = vmatpush2.bf16.msra.mxu0 %v641
        %763 = vmatprep.subr.bf16.mxu0 %v638
        %764 = vmatpush2.bf16.msra.mxu0 %v637
        %765 = vmatprep.mubr.bf16.mxu0 %v410
        %766 = vmatmul.mubr.bf16.gmra.mxu0 %v409
        %v767 = vpop.f32.mrf.mxu0
        %v768 = vadd.f32 %v386, %v767
        %v769 = vpop.f32.mrf.mxu0
        %v770 = vadd.f32 %v390, %v769
        %v771 = vpop.f32.mrf.mxu0
        %v772 = vadd.f32 %v386, %v771
        %v773 = vpop.f32.mrf.mxu0
        %v774 = vadd.f32 %v390, %v773
        %775 = vdwg.mxu0
        %776 = vmatprep.subr.bf16.mxu0 %v636
        %777 = vmatpush1.bf16.msra.mxu0 %v635
        %778 = vmatprep.subr.bf16.mxu0 %v632
        %779 = vmatpush1.bf16.msra.mxu0 %v631
        %780 = vmatprep.subr.bf16.mxu0 %v628
        %781 = vmatpush1.bf16.msra.mxu0 %v627
        %782 = vmatprep.subr.bf16.mxu0 %v624
        %783 = vmatpush1.bf16.msra.mxu0 %v623
        %784 = vmatprep.subr.bf16.mxu0 %v620
        %785 = vmatpush1.bf16.msra.mxu0 %v619
        %786 = vmatprep.subr.bf16.mxu0 %v616
        %787 = vmatpush1.bf16.msra.mxu0 %v615
        %788 = vmatprep.subr.bf16.mxu0 %v612
        %789 = vmatpush1.bf16.msra.mxu0 %v611
        %790 = vmatprep.subr.bf16.mxu0 %v608
        %791 = vmatpush1.bf16.msra.mxu0 %v607
        %792 = vmatprep.subr.bf16.mxu0 %v668
        %793 = vmatpush2.bf16.msra.mxu0 %v667
        %794 = vmatprep.subr.bf16.mxu0 %v664
        %795 = vmatpush2.bf16.msra.mxu0 %v663
        %796 = vmatprep.subr.bf16.mxu0 %v660
        %797 = vmatpush2.bf16.msra.mxu0 %v659
        %798 = vmatprep.subr.bf16.mxu0 %v656
        %799 = vmatpush2.bf16.msra.mxu0 %v655
        %800 = vmatprep.subr.bf16.mxu0 %v652
        %801 = vmatpush2.bf16.msra.mxu0 %v651
        %802 = vmatprep.subr.bf16.mxu0 %v648
        %803 = vmatpush2.bf16.msra.mxu0 %v647
        %804 = vmatprep.subr.bf16.mxu0 %v644
        %805 = vmatpush2.bf16.msra.mxu0 %v643
        %806 = vmatprep.subr.bf16.mxu0 %v640
        %807 = vmatpush2.bf16.msra.mxu0 %v639
        %808 = vmatprep.mubr.bf16.mxu0 %v410
        %809 = vmatmul.mubr.bf16.gmra.mxu0 %v409
        %v810 = vpop.f32.mrf.mxu0
        %v811 = vadd.f32 %v394, %v810
        %v812 = vpop.f32.mrf.mxu0
        %v813 = vadd.f32 %v398, %v812
        %v814 = vpop.f32.mrf.mxu0
        %v815 = vadd.f32 %v394, %v814
        %v816 = vpop.f32.mrf.mxu0
        %v817 = vadd.f32 %v398, %v816
        %818 = vdwg.mxu0
        %v819 = vmax.f32 %v768, 0.0
        %v820 = vmax.f32 %v770, 0.0
        %v821 = vmax.f32 %v811, 0.0
        %v822 = vmax.f32 %v813, 0.0
        %v823 = vmax.f32 %v772, 0.0
        %v824 = vmax.f32 %v774, 0.0
        %v825 = vmax.f32 %v815, 0.0
        %v826 = vmax.f32 %v817, 0.0
        %827 = vst [vmem:[%s306] sm:$0xff] %v819
        %828 = vst [vmem:[%s306 + $0x8] sm:$0xff] %v820
        %829 = vst [vmem:[%s306 + $0x10] sm:$0xff] %v821
        %830 = vst [vmem:[%s306 + $0x18] sm:$0xff] %v822
        %831 = vst [vmem:[%s306 + $0x20] sm:$0xff] %v823
        %832 = vst [vmem:[%s306 + $0x28] sm:$0xff] %v824
        %833 = vst [vmem:[%s306 + $0x30] sm:$0xff] %v825
        %834 = vst [vmem:[%s306 + $0x38] sm:$0xff] %v826
        %v835 = vpack.c.bf16 %v823, %v819
        %v836 = vpack.c.bf16 %v824, %v820
        %v837 = vpack.c.bf16 %v825, %v821
        %v838 = vpack.c.bf16 %v826, %v822
        %v839 = vld [vmem:[#allocation4] sm:$0xf]
        %v840 = vld [vmem:[#allocation4 + $0x4] sm:$0xf]
        %v841 = vld [vmem:[#allocation4 + $0x8] sm:$0xf]
        %v842 = vld [vmem:[#allocation4 + $0xc] sm:$0xf]
        %v843 = vld [vmem:[#allocation4 + $0x10] sm:$0xf]
        %v844 = vld [vmem:[#allocation4 + $0x14] sm:$0xf]
        %v845 = vld [vmem:[#allocation4 + $0x18] sm:$0xf]
        %v846 = vld [vmem:[#allocation4 + $0x1c] sm:$0xf]
        %v847 = vld [vmem:[#allocation4 + $0x20] sm:$0xf]
        %v848 = vld [vmem:[#allocation4 + $0x24] sm:$0xf]
        %v849 = vld [vmem:[#allocation4 + $0x28] sm:$0xf]
        %v850 = vld [vmem:[#allocation4 + $0x2c] sm:$0xf]
        %v851 = vld [vmem:[#allocation4 + $0x30] sm:$0xf]
        %v852 = vld [vmem:[#allocation4 + $0x34] sm:$0xf]
        %v853 = vld [vmem:[#allocation4 + $0x38] sm:$0xf]
        %v854 = vld [vmem:[#allocation4 + $0x3c] sm:$0xf]
        %v855 = vld [vmem:[#allocation4 + $0x40] sm:$0xf]
        %v856 = vld [vmem:[#allocation4 + $0x44] sm:$0xf]
        %v857 = vld [vmem:[#allocation4 + $0x48] sm:$0xf]
        %v858 = vld [vmem:[#allocation4 + $0x4c] sm:$0xf]
        %v859 = vld [vmem:[#allocation4 + $0x50] sm:$0xf]
        %v860 = vld [vmem:[#allocation4 + $0x54] sm:$0xf]
        %v861 = vld [vmem:[#allocation4 + $0x58] sm:$0xf]
        %v862 = vld [vmem:[#allocation4 + $0x5c] sm:$0xf]
        %v863 = vld [vmem:[#allocation4 + $0x60] sm:$0xf]
        %v864 = vld [vmem:[#allocation4 + $0x64] sm:$0xf]
        %v865 = vld [vmem:[#allocation4 + $0x68] sm:$0xf]
        %v866 = vld [vmem:[#allocation4 + $0x6c] sm:$0xf]
        %v867 = vld [vmem:[#allocation4 + $0x70] sm:$0xf]
        %v868 = vld [vmem:[#allocation4 + $0x74] sm:$0xf]
        %v869 = vld [vmem:[#allocation4 + $0x78] sm:$0xf]
        %v870 = vld [vmem:[#allocation4 + $0x7c] sm:$0xf]
        %v871 = vld [vmem:[#allocation4 + $0x80] sm:$0xf]
        %v872 = vld [vmem:[#allocation4 + $0x84] sm:$0xf]
        %v873 = vld [vmem:[#allocation4 + $0x88] sm:$0xf]
        %v874 = vld [vmem:[#allocation4 + $0x8c] sm:$0xf]
        %v875 = vld [vmem:[#allocation4 + $0x90] sm:$0xf]
        %v876 = vld [vmem:[#allocation4 + $0x94] sm:$0xf]
        %v877 = vld [vmem:[#allocation4 + $0x98] sm:$0xf]
        %v878 = vld [vmem:[#allocation4 + $0x9c] sm:$0xf]
        %v879 = vld [vmem:[#allocation4 + $0xa0] sm:$0xf]
        %v880 = vld [vmem:[#allocation4 + $0xa4] sm:$0xf]
        %v881 = vld [vmem:[#allocation4 + $0xa8] sm:$0xf]
        %v882 = vld [vmem:[#allocation4 + $0xac] sm:$0xf]
        %v883 = vld [vmem:[#allocation4 + $0xb0] sm:$0xf]
        %v884 = vld [vmem:[#allocation4 + $0xb4] sm:$0xf]
        %v885 = vld [vmem:[#allocation4 + $0xb8] sm:$0xf]
        %v886 = vld [vmem:[#allocation4 + $0xbc] sm:$0xf]
        %v887 = vld [vmem:[#allocation4 + $0xc0] sm:$0xf]
        %v888 = vld [vmem:[#allocation4 + $0xc4] sm:$0xf]
        %v889 = vld [vmem:[#allocation4 + $0xc8] sm:$0xf]
        %v890 = vld [vmem:[#allocation4 + $0xcc] sm:$0xf]
        %v891 = vld [vmem:[#allocation4 + $0xd0] sm:$0xf]
        %v892 = vld [vmem:[#allocation4 + $0xd4] sm:$0xf]
        %v893 = vld [vmem:[#allocation4 + $0xd8] sm:$0xf]
        %v894 = vld [vmem:[#allocation4 + $0xdc] sm:$0xf]
        %v895 = vld [vmem:[#allocation4 + $0xe0] sm:$0xf]
        %v896 = vld [vmem:[#allocation4 + $0xe4] sm:$0xf]
        %v897 = vld [vmem:[#allocation4 + $0xe8] sm:$0xf]
        %v898 = vld [vmem:[#allocation4 + $0xec] sm:$0xf]
        %v899 = vld [vmem:[#allocation4 + $0xf0] sm:$0xf]
        %v900 = vld [vmem:[#allocation4 + $0xf4] sm:$0xf]
        %v901 = vld [vmem:[#allocation4 + $0xf8] sm:$0xf]
        %v902 = vld [vmem:[#allocation4 + $0xfc] sm:$0xf]
        %v903 = vld [vmem:[#allocation6] sm:$0x1]
        %v905 = vlaneseq
        %v906 = vshrl.u32 %v905, 7
        %v907 = vsub.s32 0, %v906
        %v908 = vrot.slane %v903, %v907
        %v974 = vunpack.c.l.b16 %v839
        %v975 = vunpack.c.l.b16 %v840
        %v976 = vunpack.c.l.b16 %v841
        %v977 = vunpack.c.l.b16 %v842
        %v978 = vunpack.c.l.b16 %v843
        %v979 = vunpack.c.l.b16 %v844
        %v980 = vunpack.c.l.b16 %v845
        %v981 = vunpack.c.l.b16 %v846
        %v982 = vunpack.c.l.b16 %v847
        %v983 = vunpack.c.l.b16 %v848
        %v984 = vunpack.c.l.b16 %v849
        %v985 = vunpack.c.l.b16 %v850
        %v986 = vunpack.c.l.b16 %v851
        %v987 = vunpack.c.l.b16 %v852
        %v988 = vunpack.c.l.b16 %v853
        %v989 = vunpack.c.l.b16 %v854
        %v990 = vunpack.c.l.b16 %v855
        %v991 = vunpack.c.l.b16 %v856
        %v992 = vunpack.c.l.b16 %v857
        %v993 = vunpack.c.l.b16 %v858
        %v994 = vunpack.c.l.b16 %v859
        %v995 = vunpack.c.l.b16 %v860
        %v996 = vunpack.c.l.b16 %v861
        %v997 = vunpack.c.l.b16 %v862
        %v998 = vunpack.c.l.b16 %v863
        %v999 = vunpack.c.l.b16 %v864
        %v1000 = vunpack.c.l.b16 %v865
        %v1001 = vunpack.c.l.b16 %v866
        %v1002 = vunpack.c.l.b16 %v867
        %v1003 = vunpack.c.l.b16 %v868
        %v1004 = vunpack.c.l.b16 %v869
        %v1005 = vunpack.c.l.b16 %v870
        %v1006 = vunpack.c.l.b16 %v871
        %v1007 = vunpack.c.l.b16 %v872
        %v1008 = vunpack.c.l.b16 %v873
        %v1009 = vunpack.c.l.b16 %v874
        %v1010 = vunpack.c.l.b16 %v875
        %v1011 = vunpack.c.l.b16 %v876
        %v1012 = vunpack.c.l.b16 %v877
        %v1013 = vunpack.c.l.b16 %v878
        %v1014 = vunpack.c.l.b16 %v879
        %v1015 = vunpack.c.l.b16 %v880
        %v1016 = vunpack.c.l.b16 %v881
        %v1017 = vunpack.c.l.b16 %v882
        %v1018 = vunpack.c.l.b16 %v883
        %v1019 = vunpack.c.l.b16 %v884
        %v1020 = vunpack.c.l.b16 %v885
        %v1021 = vunpack.c.l.b16 %v886
        %v1022 = vunpack.c.l.b16 %v887
        %v1023 = vunpack.c.l.b16 %v888
        %v1024 = vunpack.c.l.b16 %v889
        %v1025 = vunpack.c.l.b16 %v890
        %v1026 = vunpack.c.l.b16 %v891
        %v1027 = vunpack.c.l.b16 %v892
        %v1028 = vunpack.c.l.b16 %v893
        %v1029 = vunpack.c.l.b16 %v894
        %v1030 = vunpack.c.l.b16 %v895
        %v1031 = vunpack.c.l.b16 %v896
        %v1032 = vunpack.c.l.b16 %v897
        %v1033 = vunpack.c.l.b16 %v898
        %v1034 = vunpack.c.l.b16 %v899
        %v1035 = vunpack.c.l.b16 %v900
        %v1036 = vunpack.c.l.b16 %v901
        %v1037 = vunpack.c.l.b16 %v902
        %v1038 = vpack.c.b16 %v975, %v974
        %v1039 = vpack.c.b16 %v977, %v976
        %v1040 = vpack.c.b16 %v979, %v978
        %v1041 = vpack.c.b16 %v981, %v980
        %v1042 = vpack.c.b16 %v983, %v982
        %v1043 = vpack.c.b16 %v985, %v984
        %v1044 = vpack.c.b16 %v987, %v986
        %v1045 = vpack.c.b16 %v989, %v988
        %v1046 = vpack.c.b16 %v991, %v990
        %v1047 = vpack.c.b16 %v993, %v992
        %v1048 = vpack.c.b16 %v995, %v994
        %v1049 = vpack.c.b16 %v997, %v996
        %v1050 = vpack.c.b16 %v999, %v998
        %v1051 = vpack.c.b16 %v1001, %v1000
        %v1052 = vpack.c.b16 %v1003, %v1002
        %v1053 = vpack.c.b16 %v1005, %v1004
        %v1054 = vpack.c.b16 %v1007, %v1006
        %v1055 = vpack.c.b16 %v1009, %v1008
        %v1056 = vpack.c.b16 %v1011, %v1010
        %v1057 = vpack.c.b16 %v1013, %v1012
        %v1058 = vpack.c.b16 %v1015, %v1014
        %v1059 = vpack.c.b16 %v1017, %v1016
        %v1060 = vpack.c.b16 %v1019, %v1018
        %v1061 = vpack.c.b16 %v1021, %v1020
        %v1062 = vpack.c.b16 %v1023, %v1022
        %v1063 = vpack.c.b16 %v1025, %v1024
        %v1064 = vpack.c.b16 %v1027, %v1026
        %v1065 = vpack.c.b16 %v1029, %v1028
        %v1066 = vpack.c.b16 %v1031, %v1030
        %v1067 = vpack.c.b16 %v1033, %v1032
        %v1068 = vpack.c.b16 %v1035, %v1034
        %v1069 = vpack.c.b16 %v1037, %v1036
        %1102 = vmatprep.subr.bf16.mxu0 0
        %1103 = vmatpush1.bf16.msra.mxu0 %v1045
        %1104 = vmatprep.subr.bf16.mxu0 0
        %1105 = vmatpush1.bf16.msra.mxu0 %v1044
        %1106 = vmatprep.subr.bf16.mxu0 0
        %1107 = vmatpush1.bf16.msra.mxu0 %v1043
        %1108 = vmatprep.subr.bf16.mxu0 0
        %1109 = vmatpush1.bf16.msra.mxu0 %v1042
        %1110 = vmatprep.subr.bf16.mxu0 0
        %1111 = vmatpush1.bf16.msra.mxu0 %v1041
        %1112 = vmatprep.subr.bf16.mxu0 0
        %1113 = vmatpush1.bf16.msra.mxu0 %v1040
        %1114 = vmatprep.subr.bf16.mxu0 0
        %1115 = vmatpush1.bf16.msra.mxu0 %v1039
        %1116 = vmatprep.subr.bf16.mxu0 0
        %1117 = vmatpush1.bf16.msra.mxu0 %v1038
        %1118 = vmatprep.subr.bf16.mxu0 0
        %1119 = vmatpush2.bf16.msra.mxu0 %v1053
        %1120 = vmatprep.subr.bf16.mxu0 0
        %1121 = vmatpush2.bf16.msra.mxu0 %v1052
        %1122 = vmatprep.subr.bf16.mxu0 0
        %1123 = vmatpush2.bf16.msra.mxu0 %v1051
        %1124 = vmatprep.subr.bf16.mxu0 0
        %1125 = vmatpush2.bf16.msra.mxu0 %v1050
        %1126 = vmatprep.subr.bf16.mxu0 0
        %1127 = vmatpush2.bf16.msra.mxu0 %v1049
        %1128 = vmatprep.subr.bf16.mxu0 0
        %1129 = vmatpush2.bf16.msra.mxu0 %v1048
        %1130 = vmatprep.subr.bf16.mxu0 0
        %1131 = vmatpush2.bf16.msra.mxu0 %v1047
        %1132 = vmatprep.subr.bf16.mxu0 0
        %1133 = vmatpush2.bf16.msra.mxu0 %v1046
        %1134 = vmatprep.mubr.bf16.mxu0 %v836
        %1135 = vmatmul.mubr.bf16.gmra.mxu0 %v835
        %v1136 = vpop.f32.mrf.mxu0
        %v1137 = vadd.f32 %v908, %v1136
        %v1138 = vpop.f32.mrf.mxu0
        %v1139 = vpop.f32.mrf.mxu0
        %v1140 = vadd.f32 %v908, %v1139
        %v1141 = vpop.f32.mrf.mxu0
        %1142 = vdwg.mxu0
        %1143 = vmatprep.subr.bf16.mxu0 0
        %1144 = vmatpush1.bf16.msra.mxu0 %v1061
        %1145 = vmatprep.subr.bf16.mxu0 0
        %1146 = vmatpush1.bf16.msra.mxu0 %v1060
        %1147 = vmatprep.subr.bf16.mxu0 0
        %1148 = vmatpush1.bf16.msra.mxu0 %v1059
        %1149 = vmatprep.subr.bf16.mxu0 0
        %1150 = vmatpush1.bf16.msra.mxu0 %v1058
        %1151 = vmatprep.subr.bf16.mxu0 0
        %1152 = vmatpush1.bf16.msra.mxu0 %v1057
        %1153 = vmatprep.subr.bf16.mxu0 0
        %1154 = vmatpush1.bf16.msra.mxu0 %v1056
        %1155 = vmatprep.subr.bf16.mxu0 0
        %1156 = vmatpush1.bf16.msra.mxu0 %v1055
        %1157 = vmatprep.subr.bf16.mxu0 0
        %1158 = vmatpush1.bf16.msra.mxu0 %v1054
        %1159 = vmatprep.subr.bf16.mxu0 0
        %1160 = vmatpush2.bf16.msra.mxu0 %v1069
        %1161 = vmatprep.subr.bf16.mxu0 0
        %1162 = vmatpush2.bf16.msra.mxu0 %v1068
        %1163 = vmatprep.subr.bf16.mxu0 0
        %1164 = vmatpush2.bf16.msra.mxu0 %v1067
        %1165 = vmatprep.subr.bf16.mxu0 0
        %1166 = vmatpush2.bf16.msra.mxu0 %v1066
        %1167 = vmatprep.subr.bf16.mxu0 0
        %1168 = vmatpush2.bf16.msra.mxu0 %v1065
        %1169 = vmatprep.subr.bf16.mxu0 0
        %1170 = vmatpush2.bf16.msra.mxu0 %v1064
        %1171 = vmatprep.subr.bf16.mxu0 0
        %1172 = vmatpush2.bf16.msra.mxu0 %v1063
        %1173 = vmatprep.subr.bf16.mxu0 0
        %1174 = vmatpush2.bf16.msra.mxu0 %v1062
        %1175 = vmatprep.mubr.bf16.mxu0 %v838
        %1176 = vmatmul.mubr.bf16.gmra.mxu0 %v837
        %v1177 = vpop.f32.mrf.mxu0
        %v1178 = vadd.f32 %v1137, %v1177
        %v1179 = vpop.f32.mrf.mxu0
        %v1180 = vpop.f32.mrf.mxu0
        %v1181 = vadd.f32 %v1140, %v1180
        %v1182 = vpop.f32.mrf.mxu0
        %1183 = vdwg.mxu0
        %v1184 = vmax.f32 %v1178, 0.0
        %v1185 = vmax.f32 %v1181, 0.0
        %v1186 = vpack.c.bf16 %v1185, %v1184
        %v1188 = vunpack.c.l.b16 %v1186
        %v1189 = vunpack.c.h.b16 %v1186
        %v1190 = vpack.c.b16 %v1188, %v1188
        %v1191 = vpack.c.b16 %v1189, %v1189
        %1194 = vst [vmem:[%s312] sm:$0xf] %v1190
        %1195 = vst [vmem:[%s312 + $0x4] sm:$0xf] %v1191
        %s1196 = smul.u32 2, %s20
        %p1197 = scmp.lt.s32.totalorder %s1196, 3
        %s1198 = scalar_select %p1197, %s1196, 3
        %s1199 = smul.addr %s1198, 4
        %s1200 = smul.addr %s1199, 8
        %s1201 = scalar_lea.vmem %s5, %s1200
        %s1202 = smul.u32 2, %s20
        %p1203 = scmp.lt.s32.totalorder %s1202, 3
        %s1204 = scalar_select %p1203, %s1202, 3
        %s1205 = smul.addr %s1204, 4
        %s1206 = scalar_lea.vmem %s6, %s1205
        // Predicated region
        $region53: #{mff_forward.3} parent=39 // pred_check
          %p1207 = pneg %p148
        $region54: #{mff_forward.3} parent=39 // pred_check_branch
          %1209 = sbr.rel (%p1207) target = $region56
        $region55: #{mff_forward.3} parent=39 // pred_region
          %s1210 = smul.u32 2, %s20
        $region56: #{mff_forward.3} parent=39 // pred_fallthru
          _
        // Predicated region
        $region57: #{mff_forward.3} parent=39 // pred_check
          %p1211 = pneg %p174
        $region58: #{mff_forward.3} parent=39 // pred_check_branch
          %1213 = sbr.rel (%p1211) target = $region60
        $region59: #{mff_forward.3} parent=39 // pred_region
          %s1214 = smul.u32 2, %s20
        $region60: #{mff_forward.3} parent=39 // pred_fallthru
          _
      $region40: #{mff_forward.3} parent=5 // pred_fallthru
        _
      %p1215 = scmp.le.s32.totalorder 2, %s15
      // Predicated region
      $region61: #{mff_forward.3} parent=5 // pred_check
        %p1216 = pneg %p1215
      $region62: #{mff_forward.3} parent=5 // pred_check_branch
        %1218 = sbr.rel (%p1216) target = $region64
      $region63: #{mff_forward.3} parent=5 // pred_region
        %s1219 = ssub.s32 %s15, 2
        // Predicated region
        $region65: #{mff_forward.3} parent=63 // pred_check
          %p1220 = pneg %p154
        $region66: #{mff_forward.3} parent=63 // pred_check_branch
          %1222 = sbr.rel (%p1220) target = $region68
        $region67: #{mff_forward.3} parent=63 // pred_region
          %s1223 = smul.u32 2, %s21
          %p1224 = scmp.lt.s32.totalorder %s1223, 3
          %s1225 = scalar_select %p1224, %s1223, 3
          %s1226 = smul.addr %s1225, 4
          %s1227 = smul.addr %s1226, 8
          %s1228 = scalar_lea.vmem %s5, %s1227
        $region68: #{mff_forward.3} parent=63 // pred_fallthru
          _
        // Predicated region
        $region69: #{mff_forward.3} parent=63 // pred_check
          %p1229 = pneg %p180
        $region70: #{mff_forward.3} parent=63 // pred_check_branch
          %1231 = sbr.rel (%p1229) target = $region72
        $region71: #{mff_forward.3} parent=63 // pred_region
          %s1232 = smul.u32 2, %s21
          %p1233 = scmp.lt.s32.totalorder %s1232, 3
          %s1234 = scalar_select %p1233, %s1232, 3
          %s1235 = smul.addr %s1234, 4
          %s1236 = scalar_lea.vmem %s6, %s1235
        $region72: #{mff_forward.3} parent=63 // pred_fallthru
          _
      $region64: #{mff_forward.3} parent=5 // pred_fallthru
        _
    $region6: #{mff_forward.3} parent=1 // loop_footer
      %s19 = sadd.s32 1, %s15
    $region7: #{mff_forward.3} parent=1 // loop_footer_branch
      %14 = sbr.rel target = $region3
    $region8: #{mff_forward.3} parent=1 // loop_exit
      _
    %1237 = vsyncpa [#allocation3], 1
    %s1238 = scalar_lea.sflag [#allocation3], 1
    %1239 = vsyncpa %s1238, 1
    %1240 = vsyncpa [#allocation5], 1

// kernel: mff_forward.4
$region0: #{mff_forward.4}
  #allocation0 [shape = 'u32[]', space=smem, size = 0x4, offset = 0x4, fixed_abs, tag = 'smem constant byte address 0x4 - core index']
  #allocation1 [shape = 'u32[144,128]{1,0:T(1,128)}', space=vmem, size = 0x12000, scoped, tag = 'internal scratch']
  %s0 = inlined_call_operand.vmem [shape: bf16[32,512], index: 0, kind: input, shape index: {}]
  %s1 = inlined_call_operand.vmem [shape: bf16[512,512], index: 1, kind: input, shape index: {}]
  %s2 = inlined_call_operand.vmem [shape: f32[1,512], index: 2, kind: input, shape index: {}]
  %s3 = inlined_call_operand.hbm [shape: bf16[512,512], index: 3, kind: input, shape index: {}]
  %s4 = inlined_call_operand.vmem [shape: f32[1,512], index: 4, kind: input, shape index: {}]
  %s5 = inlined_call_operand.vmem [shape: bf16[32,512], index: 5, kind: output, shape index: {}]
  %s6 = sld [smem:[#allocation0]]
  $region57: #{mff_forward.4} parent=0
    _
  %s8 = ssub.s32 1, %s6
  %s9 = scalar_select 0, %s8, %s6
  $region1: #{mff_forward.4} parent=0
    #allocation2 [shape = 'u8[524288]{0}', space=vmem, size = 0x80000, scoped, tag = 'input window, operand 3, single buffered']
    #allocation3 [shape = 's32[2]{0}', space=sflag, size = 0x8, scoped, tag = 'scoped memory for mff_forward.4']
    %10 = vsyncpa [#allocation3], 0
    loop: start=0, step=1, limit=4
    $region2: #{mff_forward.4} parent=1 // loop_pre_header
      _
    $region3: #{mff_forward.4} parent=1 // loop_header
      %s12 = sphi 0, %s16
      %p13 = scmp.ge.s32.totalorder %s12, 4
      %s22 = sphi 0, %s24
      %s25 = sphi 0, %s22
      %s26 = sphi 0, %s25
      %s42 = sphi 0, %s26
      %s46 = sphi 0, %s46
      %s48 = sphi 0, %s46
      %s49 = sphi 0, %s48
      %s63 = sphi 0, %s49
      %s67 = sphi 0, %s67
      %s69 = sphi 0, %s67
      %s70 = sphi 0, %s69
      %s84 = sphi 0, %s70
      %s88 = sphi 0, %s88
      %s90 = sphi 0, %s88
      %s91 = sphi 0, %s90
      %s105 = sphi 0, %s91
      %s109 = sphi 0, %s109
      %s111 = sphi 0, %s109
      %s112 = sphi 0, %s111
      %s126 = sphi 0, %s112
      %s132 = sphi 0, %s134
      %s135 = sphi 0, %s132
      %s136 = sphi 0, %s135
      %s152 = sphi 0, %s136
    $region4: #{mff_forward.4} parent=1 // loop_header_branch
      %15 = sbr.rel (%p13) target = $region8
    $region5: #{mff_forward.4} parent=1 // loop_body
      %s17 = ssub.s32 %s12, 1
      %s18 = ssub.s32 %s12, 2
      %s19 = sadd.s32 %s12, 1
      %s20 = ssub.s32 %s12, %s19
      %p21 = scmp.eq.s32.totalorder %s20, 0
      %s23 = sadd.s32 %s22, 1
      %s24 = scalar_select %p21, %s22, %s23
      %p27 = pneg %p21
      %p28 = scmp.eq.s32.totalorder %s12, 1
      %p29 = por %p27, %p28
      %p30 = scmp.ne.s32.totalorder %s22, %s25
      %p31 = scmp.eq.s32.totalorder %s12, 0
      %p32 = por %p30, %p31
      %p33 = scmp.ne.s32.totalorder %s22, %s25
      %p34 = scmp.eq.s32.totalorder %s17, 1
      %p35 = por %p33, %p34
      %p36 = scmp.ne.s32.totalorder %s25, %s26
      %p37 = scmp.eq.s32.totalorder %s17, 0
      %p38 = por %p36, %p37
      %p39 = scmp.ne.s32.totalorder %s25, %s26
      %p40 = scmp.eq.s32.totalorder %s18, 1
      %p41 = por %p39, %p40
      %p43 = scmp.ne.s32.totalorder %s26, %s42
      %p44 = scmp.eq.s32.totalorder %s18, 0
      %p45 = por %p43, %p44
      %s47 = sadd.s32 %s46, 1
      %p50 = scmp.eq.s32.totalorder %s12, 1
      %p51 = scmp.ne.s32.totalorder %s46, %s48
      %p52 = scmp.eq.s32.totalorder %s12, 0
      %p53 = por %p51, %p52
      %p54 = scmp.ne.s32.totalorder %s46, %s48
      %p55 = scmp.eq.s32.totalorder %s17, 1
      %p56 = por %p54, %p55
      %p57 = scmp.ne.s32.totalorder %s48, %s49
      %p58 = scmp.eq.s32.totalorder %s17, 0
      %p59 = por %p57, %p58
      %p60 = scmp.ne.s32.totalorder %s48, %s49
      %p61 = scmp.eq.s32.totalorder %s18, 1
      %p62 = por %p60, %p61
      %p64 = scmp.ne.s32.totalorder %s49, %s63
      %p65 = scmp.eq.s32.totalorder %s18, 0
      %p66 = por %p64, %p65
      %s68 = sadd.s32 %s67, 1
      %p71 = scmp.eq.s32.totalorder %s12, 1
      %p72 = scmp.ne.s32.totalorder %s67, %s69
      %p73 = scmp.eq.s32.totalorder %s12, 0
      %p74 = por %p72, %p73
      %p75 = scmp.ne.s32.totalorder %s67, %s69
      %p76 = scmp.eq.s32.totalorder %s17, 1
      %p77 = por %p75, %p76
      %p78 = scmp.ne.s32.totalorder %s69, %s70
      %p79 = scmp.eq.s32.totalorder %s17, 0
      %p80 = por %p78, %p79
      %p81 = scmp.ne.s32.totalorder %s69, %s70
      %p82 = scmp.eq.s32.totalorder %s18, 1
      %p83 = por %p81, %p82
      %p85 = scmp.ne.s32.totalorder %s70, %s84
      %p86 = scmp.eq.s32.totalorder %s18, 0
      %p87 = por %p85, %p86
      %s89 = sadd.s32 %s88, 1
      %p92 = scmp.eq.s32.totalorder %s12, 1
      %p93 = scmp.ne.s32.totalorder %s88, %s90
      %p94 = scmp.eq.s32.totalorder %s12, 0
      %p95 = por %p93, %p94
      %p96 = scmp.ne.s32.totalorder %s88, %s90
      %p97 = scmp.eq.s32.totalorder %s17, 1
      %p98 = por %p96, %p97
      %p99 = scmp.ne.s32.totalorder %s90, %s91
      %p100 = scmp.eq.s32.totalorder %s17, 0
      %p101 = por %p99, %p100
      %p102 = scmp.ne.s32.totalorder %s90, %s91
      %p103 = scmp.eq.s32.totalorder %s18, 1
      %p104 = por %p102, %p103
      %p106 = scmp.ne.s32.totalorder %s91, %s105
      %p107 = scmp.eq.s32.totalorder %s18, 0
      %p108 = por %p106, %p107
      %s110 = sadd.s32 %s109, 1
      %p113 = scmp.eq.s32.totalorder %s12, 1
      %p114 = scmp.ne.s32.totalorder %s109, %s111
      %p115 = scmp.eq.s32.totalorder %s12, 0
      %p116 = por %p114, %p115
      %p117 = scmp.ne.s32.totalorder %s109, %s111
      %p118 = scmp.eq.s32.totalorder %s17, 1
      %p119 = por %p117, %p118
      %p120 = scmp.ne.s32.totalorder %s111, %s112
      %p121 = scmp.eq.s32.totalorder %s17, 0
      %p122 = por %p120, %p121
      %p123 = scmp.ne.s32.totalorder %s111, %s112
      %p124 = scmp.eq.s32.totalorder %s18, 1
      %p125 = por %p123, %p124
      %p127 = scmp.ne.s32.totalorder %s112, %s126
      %p128 = scmp.eq.s32.totalorder %s18, 0
      %p129 = por %p127, %p128
      %s130 = ssub.s32 %s12, %s19
      %p131 = scmp.eq.s32.totalorder %s130, 0
      %s133 = sadd.s32 %s132, 1
      %s134 = scalar_select %p131, %s132, %s133
      %p137 = pneg %p131
      %p138 = scmp.eq.s32.totalorder %s12, 1
      %p139 = por %p137, %p138
      %p140 = scmp.ne.s32.totalorder %s132, %s135
      %p141 = scmp.eq.s32.totalorder %s12, 0
      %p142 = por %p140, %p141
      %p143 = scmp.ne.s32.totalorder %s132, %s135
      %p144 = scmp.eq.s32.totalorder %s17, 1
      %p145 = por %p143, %p144
      %p146 = scmp.ne.s32.totalorder %s135, %s136
      %p147 = scmp.eq.s32.totalorder %s17, 0
      %p148 = por %p146, %p147
      %p149 = scmp.ne.s32.totalorder %s135, %s136
      %p150 = scmp.eq.s32.totalorder %s18, 1
      %p151 = por %p149, %p150
      %p153 = scmp.ne.s32.totalorder %s136, %s152
      %p154 = scmp.eq.s32.totalorder %s18, 0
      %p155 = por %p153, %p154
      %p156 = scmp.le.s32.totalorder 1, %s12
      %p157 = scmp.lt.s32.totalorder %s12, 3
      %p158 = pnand %p156, %p157
      %p159 = pneg %p158
      // Predicated region
      $region9: #{mff_forward.4} parent=5 // pred_check
        _
      $region10: #{mff_forward.4} parent=5 // pred_check_branch
        %161 = sbr.rel (%p158) target = $region12
      $region11: #{mff_forward.4} parent=5 // pred_region
        %s162 = ssub.s32 %s12, 1
        // Predicated region
        $region13: #{mff_forward.4} parent=11 // pred_check
          %p163 = pneg %p59
        $region14: #{mff_forward.4} parent=11 // pred_check_branch
          %165 = sbr.rel (%p163) target = $region16
        $region15: #{mff_forward.4} parent=11 // pred_region
          _
        $region16: #{mff_forward.4} parent=11 // pred_fallthru
          _
        // Predicated region
        $region17: #{mff_forward.4} parent=11 // pred_check
          %p166 = pneg %p80
        $region18: #{mff_forward.4} parent=11 // pred_check_branch
          %168 = sbr.rel (%p166) target = $region20
        $region19: #{mff_forward.4} parent=11 // pred_region
          _
        $region20: #{mff_forward.4} parent=11 // pred_fallthru
          _
        // Predicated region
        $region21: #{mff_forward.4} parent=11 // pred_check
          %p169 = pneg %p101
        $region22: #{mff_forward.4} parent=11 // pred_check_branch
          %171 = sbr.rel (%p169) target = $region24
        $region23: #{mff_forward.4} parent=11 // pred_region
          %s173 = ssub.s32 16384, 16384
          %174 = vsyncadd [#allocation3], %s173
          %s175 = sshll.u32 [#allocation2], 4
          %s176 = int_to_ptr.vmem [resolvable:$true] %s175
          %181 = dma.hbm_to_vmem [thread:$0]  %s3, 16384, %s176, [#allocation3], 256, 256, 16
        $region24: #{mff_forward.4} parent=11 // pred_fallthru
          _
        // Predicated region
        $region25: #{mff_forward.4} parent=11 // pred_check
          %p182 = pneg %p122
        $region26: #{mff_forward.4} parent=11 // pred_check_branch
          %184 = sbr.rel (%p182) target = $region28
        $region27: #{mff_forward.4} parent=11 // pred_region
          _
        $region28: #{mff_forward.4} parent=11 // pred_fallthru
          _
      $region12: #{mff_forward.4} parent=5 // pred_fallthru
        _
      %p185 = scmp.lt.s32.totalorder %s12, 2
      // Predicated region
      $region29: #{mff_forward.4} parent=5 // pred_check
        %p186 = pneg %p185
      $region30: #{mff_forward.4} parent=5 // pred_check_branch
        %188 = sbr.rel (%p186) target = $region32
      $region31: #{mff_forward.4} parent=5 // pred_region
        // Predicated region
        $region33: #{mff_forward.4} parent=31 // pred_check
          %p189 = pneg %p32
        $region34: #{mff_forward.4} parent=31 // pred_check_branch
          %191 = sbr.rel (%p189) target = $region36
        $region35: #{mff_forward.4} parent=31 // pred_region
          %s192 = smul.u32 2, %s12
          %p193 = scmp.lt.s32.totalorder %s192, 3
          %s194 = scalar_select %p193, %s192, 3
          %s195 = smul.addr %s194, 4
          %s196 = smul.addr %s195, 4
          %s197 = scalar_lea.vmem %s0, %s196
          %s198 = smul.u32 2, %s12
        $region36: #{mff_forward.4} parent=31 // pred_fallthru
          _
      $region32: #{mff_forward.4} parent=5 // pred_fallthru
        _
      %p199 = scmp.le.s32.totalorder 1, %s12
      %p200 = scmp.lt.s32.totalorder %s12, 3
      %p201 = pnand %p199, %p200
      %p202 = pneg %p201
      // Predicated region
      $region37: #{mff_forward.4} parent=5 // pred_check
        _
      $region38: #{mff_forward.4} parent=5 // pred_check_branch
        %204 = sbr.rel (%p201) target = $region40
      $region39: #{mff_forward.4} parent=5 // pred_region
        %s205 = ssub.s32 %s12, 1
        // Predicated region
        $region41: #{mff_forward.4} parent=39 // pred_check
          %p206 = pneg %p101
        $region42: #{mff_forward.4} parent=39 // pred_check_branch
          %208 = sbr.rel (%p206) target = $region44
        $region43: #{mff_forward.4} parent=39 // pred_region
          %209 = dma.done [#allocation3], 16384
        $region44: #{mff_forward.4} parent=39 // pred_fallthru
          _
        %s210 = smul.u32 2, %s17
        %p211 = scmp.lt.s32.totalorder %s210, 3
        %s212 = scalar_select %p211, %s210, 3
        %s213 = smul.addr %s212, 4
        %s214 = smul.addr %s213, 4
        %s215 = scalar_lea.vmem %s0, %s214
        %p216 = pneg %p38
        %p217 = pneg %p35
        %p218 = pneg %p59
        %p219 = pneg %p56
        %p220 = pneg %p80
        %p221 = pneg %p77
        %p222 = pneg %p101
        %p223 = pneg %p98
        %p224 = pneg %p122
        %p225 = pneg %p119
        %p226 = pneg %p148
        %p227 = pneg %p145
        %s228 = smul.u32 2, %s17
        %p229 = scmp.lt.s32.totalorder %s228, 3
        %s230 = scalar_select %p229, %s228, 3
        %s231 = smul.addr %s230, 4
        %s232 = smul.addr %s231, 4
        %s233 = scalar_lea.vmem %s5, %s232
        %s234 = smul.u32 2, %s17
        %p235 = scmp.lt.s32.totalorder %s234, 3
        %s236 = scalar_select %p235, %s234, 3
        %s237 = smul.addr %s236, 4
        %s238 = smul.addr %s237, 4
        %s239 = scalar_lea.vmem %s0, %s238
        %s240 = smul.u32 2, %s17
        %s241 = smul.u32 2, %s17
        %p242 = scmp.lt.s32.totalorder %s241, 3
        %s243 = scalar_select %p242, %s241, 3
        %s244 = smul.addr %s243, 4
        %s245 = smul.addr %s244, 4
        %s246 = scalar_lea.vmem %s5, %s245
        %s247 = smul.u32 2, %s17
        %v248 = vld [vmem:[%s239] sm:$0xff]
        %v249 = vld [vmem:[%s239 + $0x8] sm:$0xff]
        %v250 = vld [vmem:[%s239 + $0x10] sm:$0xff]
        %v251 = vld [vmem:[%s239 + $0x18] sm:$0xff]
        %v252 = vld [vmem:[%s1] sm:$0xff]
        %v253 = vld [vmem:[%s1 + $0x8] sm:$0xff]
        %v254 = vld [vmem:[%s1 + $0x10] sm:$0xff]
        %v255 = vld [vmem:[%s1 + $0x18] sm:$0xff]
        %v256 = vld [vmem:[%s1 + $0x20] sm:$0xff]
        %v257 = vld [vmem:[%s1 + $0x28] sm:$0xff]
        %v258 = vld [vmem:[%s1 + $0x30] sm:$0xff]
        %v259 = vld [vmem:[%s1 + $0x38] sm:$0xff]
        %v260 = vld [vmem:[%s1 + $0x40] sm:$0xff]
        %v261 = vld [vmem:[%s1 + $0x48] sm:$0xff]
        %v262 = vld [vmem:[%s1 + $0x50] sm:$0xff]
        %v263 = vld [vmem:[%s1 + $0x58] sm:$0xff]
        %v264 = vld [vmem:[%s1 + $0x60] sm:$0xff]
        %v265 = vld [vmem:[%s1 + $0x68] sm:$0xff]
        %v266 = vld [vmem:[%s1 + $0x70] sm:$0xff]
        %v267 = vld [vmem:[%s1 + $0x78] sm:$0xff]
        %v268 = vld [vmem:[%s1 + $0x80] sm:$0xff]
        %v269 = vld [vmem:[%s1 + $0x88] sm:$0xff]
        %v270 = vld [vmem:[%s1 + $0x90] sm:$0xff]
        %v271 = vld [vmem:[%s1 + $0x98] sm:$0xff]
        %v272 = vld [vmem:[%s1 + $0xa0] sm:$0xff]
        %v273 = vld [vmem:[%s1 + $0xa8] sm:$0xff]
        %v274 = vld [vmem:[%s1 + $0xb0] sm:$0xff]
        %v275 = vld [vmem:[%s1 + $0xb8] sm:$0xff]
        %v276 = vld [vmem:[%s1 + $0xc0] sm:$0xff]
        %v277 = vld [vmem:[%s1 + $0xc8] sm:$0xff]
        %v278 = vld [vmem:[%s1 + $0xd0] sm:$0xff]
        %v279 = vld [vmem:[%s1 + $0xd8] sm:$0xff]
        %v280 = vld [vmem:[%s1 + $0xe0] sm:$0xff]
        %v281 = vld [vmem:[%s1 + $0xe8] sm:$0xff]
        %v282 = vld [vmem:[%s1 + $0xf0] sm:$0xff]
        %v283 = vld [vmem:[%s1 + $0xf8] sm:$0xff]
        %v284 = vld [vmem:[%s1 + $0x100] sm:$0xff]
        %v285 = vld [vmem:[%s1 + $0x108] sm:$0xff]
        %v286 = vld [vmem:[%s1 + $0x110] sm:$0xff]
        %v287 = vld [vmem:[%s1 + $0x118] sm:$0xff]
        %v288 = vld [vmem:[%s1 + $0x120] sm:$0xff]
        %v289 = vld [vmem:[%s1 + $0x128] sm:$0xff]
        %v290 = vld [vmem:[%s1 + $0x130] sm:$0xff]
        %v291 = vld [vmem:[%s1 + $0x138] sm:$0xff]
        %v292 = vld [vmem:[%s1 + $0x140] sm:$0xff]
        %v293 = vld [vmem:[%s1 + $0x148] sm:$0xff]
        %v294 = vld [vmem:[%s1 + $0x150] sm:$0xff]
        %v295 = vld [vmem:[%s1 + $0x158] sm:$0xff]
        %v296 = vld [vmem:[%s1 + $0x160] sm:$0xff]
        %v297 = vld [vmem:[%s1 + $0x168] sm:$0xff]
        %v298 = vld [vmem:[%s1 + $0x170] sm:$0xff]
        %v299 = vld [vmem:[%s1 + $0x178] sm:$0xff]
        %v300 = vld [vmem:[%s1 + $0x180] sm:$0xff]
        %v301 = vld [vmem:[%s1 + $0x188] sm:$0xff]
        %v302 = vld [vmem:[%s1 + $0x190] sm:$0xff]
        %v303 = vld [vmem:[%s1 + $0x198] sm:$0xff]
        %v304 = vld [vmem:[%s1 + $0x1a0] sm:$0xff]
        %v305 = vld [vmem:[%s1 + $0x1a8] sm:$0xff]
        %v306 = vld [vmem:[%s1 + $0x1b0] sm:$0xff]
        %v307 = vld [vmem:[%s1 + $0x1b8] sm:$0xff]
        %v308 = vld [vmem:[%s1 + $0x1c0] sm:$0xff]
        %v309 = vld [vmem:[%s1 + $0x1c8] sm:$0xff]
        %v310 = vld [vmem:[%s1 + $0x1d0] sm:$0xff]
        %v311 = vld [vmem:[%s1 + $0x1d8] sm:$0xff]
        %v312 = vld [vmem:[%s1 + $0x1e0] sm:$0xff]
        %v313 = vld [vmem:[%s1 + $0x1e8] sm:$0xff]
        %v314 = vld [vmem:[%s1 + $0x1f0] sm:$0xff]
        %v315 = vld [vmem:[%s1 + $0x1f8] sm:$0xff]
        %v316 = vld [vmem:[%s1 + $0x200] sm:$0xff]
        %v317 = vld [vmem:[%s1 + $0x208] sm:$0xff]
        %v318 = vld [vmem:[%s1 + $0x210] sm:$0xff]
        %v319 = vld [vmem:[%s1 + $0x218] sm:$0xff]
        %v320 = vld [vmem:[%s1 + $0x220] sm:$0xff]
        %v321 = vld [vmem:[%s1 + $0x228] sm:$0xff]
        %v322 = vld [vmem:[%s1 + $0x230] sm:$0xff]
        %v323 = vld [vmem:[%s1 + $0x238] sm:$0xff]
        %v324 = vld [vmem:[%s1 + $0x240] sm:$0xff]
        %v325 = vld [vmem:[%s1 + $0x248] sm:$0xff]
        %v326 = vld [vmem:[%s1 + $0x250] sm:$0xff]
        %v327 = vld [vmem:[%s1 + $0x258] sm:$0xff]
        %v328 = vld [vmem:[%s1 + $0x260] sm:$0xff]
        %v329 = vld [vmem:[%s1 + $0x268] sm:$0xff]
        %v330 = vld [vmem:[%s1 + $0x270] sm:$0xff]
        %v331 = vld [vmem:[%s1 + $0x278] sm:$0xff]
        %v332 = vld [vmem:[%s1 + $0x280] sm:$0xff]
        %v333 = vld [vmem:[%s1 + $0x288] sm:$0xff]
        %v334 = vld [vmem:[%s1 + $0x290] sm:$0xff]
        %v335 = vld [vmem:[%s1 + $0x298] sm:$0xff]
        %v336 = vld [vmem:[%s1 + $0x2a0] sm:$0xff]
        %v337 = vld [vmem:[%s1 + $0x2a8] sm:$0xff]
        %v338 = vld [vmem:[%s1 + $0x2b0] sm:$0xff]
        %v339 = vld [vmem:[%s1 + $0x2b8] sm:$0xff]
        %v340 = vld [vmem:[%s1 + $0x2c0] sm:$0xff]
        %v341 = vld [vmem:[%s1 + $0x2c8] sm:$0xff]
        %v342 = vld [vmem:[%s1 + $0x2d0] sm:$0xff]
        %v343 = vld [vmem:[%s1 + $0x2d8] sm:$0xff]
        %v344 = vld [vmem:[%s1 + $0x2e0] sm:$0xff]
        %v345 = vld [vmem:[%s1 + $0x2e8] sm:$0xff]
        %v346 = vld [vmem:[%s1 + $0x2f0] sm:$0xff]
        %v347 = vld [vmem:[%s1 + $0x2f8] sm:$0xff]
        %v348 = vld [vmem:[%s1 + $0x300] sm:$0xff]
        %v349 = vld [vmem:[%s1 + $0x308] sm:$0xff]
        %v350 = vld [vmem:[%s1 + $0x310] sm:$0xff]
        %v351 = vld [vmem:[%s1 + $0x318] sm:$0xff]
        %v352 = vld [vmem:[%s1 + $0x320] sm:$0xff]
        %v353 = vld [vmem:[%s1 + $0x328] sm:$0xff]
        %v354 = vld [vmem:[%s1 + $0x330] sm:$0xff]
        %v355 = vld [vmem:[%s1 + $0x338] sm:$0xff]
        %v356 = vld [vmem:[%s1 + $0x340] sm:$0xff]
        %v357 = vld [vmem:[%s1 + $0x348] sm:$0xff]
        %v358 = vld [vmem:[%s1 + $0x350] sm:$0xff]
        %v359 = vld [vmem:[%s1 + $0x358] sm:$0xff]
        %v360 = vld [vmem:[%s1 + $0x360] sm:$0xff]
        %v361 = vld [vmem:[%s1 + $0x368] sm:$0xff]
        %v362 = vld [vmem:[%s1 + $0x370] sm:$0xff]
        %v363 = vld [vmem:[%s1 + $0x378] sm:$0xff]
        %v364 = vld [vmem:[%s1 + $0x380] sm:$0xff]
        %v365 = vld [vmem:[%s1 + $0x388] sm:$0xff]
        %v366 = vld [vmem:[%s1 + $0x390] sm:$0xff]
        %v367 = vld [vmem:[%s1 + $0x398] sm:$0xff]
        %v368 = vld [vmem:[%s1 + $0x3a0] sm:$0xff]
        %v369 = vld [vmem:[%s1 + $0x3a8] sm:$0xff]
        %v370 = vld [vmem:[%s1 + $0x3b0] sm:$0xff]
        %v371 = vld [vmem:[%s1 + $0x3b8] sm:$0xff]
        %v372 = vld [vmem:[%s1 + $0x3c0] sm:$0xff]
        %v373 = vld [vmem:[%s1 + $0x3c8] sm:$0xff]
        %v374 = vld [vmem:[%s1 + $0x3d0] sm:$0xff]
        %v375 = vld [vmem:[%s1 + $0x3d8] sm:$0xff]
        %v376 = vld [vmem:[%s1 + $0x3e0] sm:$0xff]
        %v377 = vld [vmem:[%s1 + $0x3e8] sm:$0xff]
        %v378 = vld [vmem:[%s1 + $0x3f0] sm:$0xff]
        %v379 = vld [vmem:[%s1 + $0x3f8] sm:$0xff]
        %v380 = vld [vmem:[%s2] sm:$0xf]
        %v382 = vlaneseq
        %v383 = vshrl.u32 %v382, 7
        %v384 = vsub.s32 0, %v383
        %v385 = vrot.slane %v380, %v384
        %v386 = vlaneseq
        %v387 = vshrl.u32 %v386, 7
        %v388 = vsub.s32 1, %v387
        %v389 = vrot.slane %v380, %v388
        %v390 = vlaneseq
        %v391 = vshrl.u32 %v390, 7
        %v392 = vsub.s32 2, %v391
        %v393 = vrot.slane %v380, %v392
        %v394 = vlaneseq
        %v395 = vshrl.u32 %v394, 7
        %v396 = vsub.s32 3, %v395
        %v397 = vrot.slane %v380, %v396
        %v406 = vunpack.c.l.b16 %v248
        %v407 = vunpack.c.h.b16 %v248
        %v408 = vunpack.c.l.b16 %v249
        %v409 = vunpack.c.h.b16 %v249
        %v410 = vunpack.c.l.b16 %v250
        %v411 = vunpack.c.h.b16 %v250
        %v412 = vunpack.c.l.b16 %v251
        %v413 = vunpack.c.h.b16 %v251
        %v414 = vpack.c.b16 %v410, %v406
        %v415 = vpack.c.b16 %v411, %v407
        %v416 = vpack.c.b16 %v412, %v408
        %v417 = vpack.c.b16 %v413, %v409
        %v550 = vunpack.c.l.b16 %v252
        %v551 = vunpack.c.h.b16 %v252
        %v552 = vunpack.c.l.b16 %v253
        %v553 = vunpack.c.h.b16 %v253
        %v554 = vunpack.c.l.b16 %v254
        %v555 = vunpack.c.h.b16 %v254
        %v556 = vunpack.c.l.b16 %v255
        %v557 = vunpack.c.h.b16 %v255
        %v558 = vunpack.c.l.b16 %v256
        %v559 = vunpack.c.h.b16 %v256
        %v560 = vunpack.c.l.b16 %v257
        %v561 = vunpack.c.h.b16 %v257
        %v562 = vunpack.c.l.b16 %v258
        %v563 = vunpack.c.h.b16 %v258
        %v564 = vunpack.c.l.b16 %v259
        %v565 = vunpack.c.h.b16 %v259
        %v566 = vunpack.c.l.b16 %v260
        %v567 = vunpack.c.h.b16 %v260
        %v568 = vunpack.c.l.b16 %v261
        %v569 = vunpack.c.h.b16 %v261
        %v570 = vunpack.c.l.b16 %v262
        %v571 = vunpack.c.h.b16 %v262
        %v572 = vunpack.c.l.b16 %v263
        %v573 = vunpack.c.h.b16 %v263
        %v574 = vunpack.c.l.b16 %v264
        %v575 = vunpack.c.h.b16 %v264
        %v576 = vunpack.c.l.b16 %v265
        %v577 = vunpack.c.h.b16 %v265
        %v578 = vunpack.c.l.b16 %v266
        %v579 = vunpack.c.h.b16 %v266
        %v580 = vunpack.c.l.b16 %v267
        %v581 = vunpack.c.h.b16 %v267
        %v582 = vunpack.c.l.b16 %v268
        %v583 = vunpack.c.h.b16 %v268
        %v584 = vunpack.c.l.b16 %v269
        %v585 = vunpack.c.h.b16 %v269
        %v586 = vunpack.c.l.b16 %v270
        %v587 = vunpack.c.h.b16 %v270
        %v588 = vunpack.c.l.b16 %v271
        %v589 = vunpack.c.h.b16 %v271
        %v590 = vunpack.c.l.b16 %v272
        %v591 = vunpack.c.h.b16 %v272
        %v592 = vunpack.c.l.b16 %v273
        %v593 = vunpack.c.h.b16 %v273
        %v594 = vunpack.c.l.b16 %v274
        %v595 = vunpack.c.h.b16 %v274
        %v596 = vunpack.c.l.b16 %v275
        %v597 = vunpack.c.h.b16 %v275
        %v598 = vunpack.c.l.b16 %v276
        %v599 = vunpack.c.h.b16 %v276
        %v600 = vunpack.c.l.b16 %v277
        %v601 = vunpack.c.h.b16 %v277
        %v602 = vunpack.c.l.b16 %v278
        %v603 = vunpack.c.h.b16 %v278
        %v604 = vunpack.c.l.b16 %v279
        %v605 = vunpack.c.h.b16 %v279
        %v606 = vunpack.c.l.b16 %v280
        %v607 = vunpack.c.h.b16 %v280
        %v608 = vunpack.c.l.b16 %v281
        %v609 = vunpack.c.h.b16 %v281
        %v610 = vunpack.c.l.b16 %v282
        %v611 = vunpack.c.h.b16 %v282
        %v612 = vunpack.c.l.b16 %v283
        %v613 = vunpack.c.h.b16 %v283
        %v614 = vunpack.c.l.b16 %v284
        %v615 = vunpack.c.h.b16 %v284
        %v616 = vunpack.c.l.b16 %v285
        %v617 = vunpack.c.h.b16 %v285
        %v618 = vunpack.c.l.b16 %v286
        %v619 = vunpack.c.h.b16 %v286
        %v620 = vunpack.c.l.b16 %v287
        %v621 = vunpack.c.h.b16 %v287
        %v622 = vunpack.c.l.b16 %v288
        %v623 = vunpack.c.h.b16 %v288
        %v624 = vunpack.c.l.b16 %v289
        %v625 = vunpack.c.h.b16 %v289
        %v626 = vunpack.c.l.b16 %v290
        %v627 = vunpack.c.h.b16 %v290
        %v628 = vunpack.c.l.b16 %v291
        %v629 = vunpack.c.h.b16 %v291
        %v630 = vunpack.c.l.b16 %v292
        %v631 = vunpack.c.h.b16 %v292
        %v632 = vunpack.c.l.b16 %v293
        %v633 = vunpack.c.h.b16 %v293
        %v634 = vunpack.c.l.b16 %v294
        %v635 = vunpack.c.h.b16 %v294
        %v636 = vunpack.c.l.b16 %v295
        %v637 = vunpack.c.h.b16 %v295
        %v638 = vunpack.c.l.b16 %v296
        %v639 = vunpack.c.h.b16 %v296
        %v640 = vunpack.c.l.b16 %v297
        %v641 = vunpack.c.h.b16 %v297
        %v642 = vunpack.c.l.b16 %v298
        %v643 = vunpack.c.h.b16 %v298
        %v644 = vunpack.c.l.b16 %v299
        %v645 = vunpack.c.h.b16 %v299
        %v646 = vunpack.c.l.b16 %v300
        %v647 = vunpack.c.h.b16 %v300
        %v648 = vunpack.c.l.b16 %v301
        %v649 = vunpack.c.h.b16 %v301
        %v650 = vunpack.c.l.b16 %v302
        %v651 = vunpack.c.h.b16 %v302
        %v652 = vunpack.c.l.b16 %v303
        %v653 = vunpack.c.h.b16 %v303
        %v654 = vunpack.c.l.b16 %v304
        %v655 = vunpack.c.h.b16 %v304
        %v656 = vunpack.c.l.b16 %v305
        %v657 = vunpack.c.h.b16 %v305
        %v658 = vunpack.c.l.b16 %v306
        %v659 = vunpack.c.h.b16 %v306
        %v660 = vunpack.c.l.b16 %v307
        %v661 = vunpack.c.h.b16 %v307
        %v662 = vunpack.c.l.b16 %v308
        %v663 = vunpack.c.h.b16 %v308
        %v664 = vunpack.c.l.b16 %v309
        %v665 = vunpack.c.h.b16 %v309
        %v666 = vunpack.c.l.b16 %v310
        %v667 = vunpack.c.h.b16 %v310
        %v668 = vunpack.c.l.b16 %v311
        %v669 = vunpack.c.h.b16 %v311
        %v670 = vunpack.c.l.b16 %v312
        %v671 = vunpack.c.h.b16 %v312
        %v672 = vunpack.c.l.b16 %v313
        %v673 = vunpack.c.h.b16 %v313
        %v674 = vunpack.c.l.b16 %v314
        %v675 = vunpack.c.h.b16 %v314
        %v676 = vunpack.c.l.b16 %v315
        %v677 = vunpack.c.h.b16 %v315
        %v678 = vunpack.c.l.b16 %v316
        %v679 = vunpack.c.h.b16 %v316
        %v680 = vunpack.c.l.b16 %v317
        %v681 = vunpack.c.h.b16 %v317
        %v682 = vunpack.c.l.b16 %v318
        %v683 = vunpack.c.h.b16 %v318
        %v684 = vunpack.c.l.b16 %v319
        %v685 = vunpack.c.h.b16 %v319
        %v686 = vunpack.c.l.b16 %v320
        %v687 = vunpack.c.h.b16 %v320
        %v688 = vunpack.c.l.b16 %v321
        %v689 = vunpack.c.h.b16 %v321
        %v690 = vunpack.c.l.b16 %v322
        %v691 = vunpack.c.h.b16 %v322
        %v692 = vunpack.c.l.b16 %v323
        %v693 = vunpack.c.h.b16 %v323
        %v694 = vunpack.c.l.b16 %v324
        %v695 = vunpack.c.h.b16 %v324
        %v696 = vunpack.c.l.b16 %v325
        %v697 = vunpack.c.h.b16 %v325
        %v698 = vunpack.c.l.b16 %v326
        %v699 = vunpack.c.h.b16 %v326
        %v700 = vunpack.c.l.b16 %v327
        %v701 = vunpack.c.h.b16 %v327
        %v702 = vunpack.c.l.b16 %v328
        %v703 = vunpack.c.h.b16 %v328
        %v704 = vunpack.c.l.b16 %v329
        %v705 = vunpack.c.h.b16 %v329
        %v706 = vunpack.c.l.b16 %v330
        %v707 = vunpack.c.h.b16 %v330
        %v708 = vunpack.c.l.b16 %v331
        %v709 = vunpack.c.h.b16 %v331
        %v710 = vunpack.c.l.b16 %v332
        %v711 = vunpack.c.h.b16 %v332
        %v712 = vunpack.c.l.b16 %v333
        %v713 = vunpack.c.h.b16 %v333
        %v714 = vunpack.c.l.b16 %v334
        %v715 = vunpack.c.h.b16 %v334
        %v716 = vunpack.c.l.b16 %v335
        %v717 = vunpack.c.h.b16 %v335
        %v718 = vunpack.c.l.b16 %v336
        %v719 = vunpack.c.h.b16 %v336
        %v720 = vunpack.c.l.b16 %v337
        %v721 = vunpack.c.h.b16 %v337
        %v722 = vunpack.c.l.b16 %v338
        %v723 = vunpack.c.h.b16 %v338
        %v724 = vunpack.c.l.b16 %v339
        %v725 = vunpack.c.h.b16 %v339
        %v726 = vunpack.c.l.b16 %v340
        %v727 = vunpack.c.h.b16 %v340
        %v728 = vunpack.c.l.b16 %v341
        %v729 = vunpack.c.h.b16 %v341
        %v730 = vunpack.c.l.b16 %v342
        %v731 = vunpack.c.h.b16 %v342
        %v732 = vunpack.c.l.b16 %v343
        %v733 = vunpack.c.h.b16 %v343
        %v734 = vunpack.c.l.b16 %v344
        %v735 = vunpack.c.h.b16 %v344
        %v736 = vunpack.c.l.b16 %v345
        %v737 = vunpack.c.h.b16 %v345
        %v738 = vunpack.c.l.b16 %v346
        %v739 = vunpack.c.h.b16 %v346
        %v740 = vunpack.c.l.b16 %v347
        %v741 = vunpack.c.h.b16 %v347
        %v742 = vunpack.c.l.b16 %v348
        %v743 = vunpack.c.h.b16 %v348
        %v744 = vunpack.c.l.b16 %v349
        %v745 = vunpack.c.h.b16 %v349
        %v746 = vunpack.c.l.b16 %v350
        %v747 = vunpack.c.h.b16 %v350
        %v748 = vunpack.c.l.b16 %v351
        %v749 = vunpack.c.h.b16 %v351
        %v750 = vunpack.c.l.b16 %v352
        %v751 = vunpack.c.h.b16 %v352
        %v752 = vunpack.c.l.b16 %v353
        %v753 = vunpack.c.h.b16 %v353
        %v754 = vunpack.c.l.b16 %v354
        %v755 = vunpack.c.h.b16 %v354
        %v756 = vunpack.c.l.b16 %v355
        %v757 = vunpack.c.h.b16 %v355
        %v758 = vunpack.c.l.b16 %v356
        %v759 = vunpack.c.h.b16 %v356
        %v760 = vunpack.c.l.b16 %v357
        %v761 = vunpack.c.h.b16 %v357
        %v762 = vunpack.c.l.b16 %v358
        %v763 = vunpack.c.h.b16 %v358
        %v764 = vunpack.c.l.b16 %v359
        %v765 = vunpack.c.h.b16 %v359
        %v766 = vunpack.c.l.b16 %v360
        %v767 = vunpack.c.h.b16 %v360
        %v768 = vunpack.c.l.b16 %v361
        %v769 = vunpack.c.h.b16 %v361
        %v770 = vunpack.c.l.b16 %v362
        %v771 = vunpack.c.h.b16 %v362
        %v772 = vunpack.c.l.b16 %v363
        %v773 = vunpack.c.h.b16 %v363
        %v774 = vunpack.c.l.b16 %v364
        %v775 = vunpack.c.h.b16 %v364
        %v776 = vunpack.c.l.b16 %v365
        %v777 = vunpack.c.h.b16 %v365
        %v778 = vunpack.c.l.b16 %v366
        %v779 = vunpack.c.h.b16 %v366
        %v780 = vunpack.c.l.b16 %v367
        %v781 = vunpack.c.h.b16 %v367
        %v782 = vunpack.c.l.b16 %v368
        %v783 = vunpack.c.h.b16 %v368
        %v784 = vunpack.c.l.b16 %v369
        %v785 = vunpack.c.h.b16 %v369
        %v786 = vunpack.c.l.b16 %v370
        %v787 = vunpack.c.h.b16 %v370
        %v788 = vunpack.c.l.b16 %v371
        %v789 = vunpack.c.h.b16 %v371
        %v790 = vunpack.c.l.b16 %v372
        %v791 = vunpack.c.h.b16 %v372
        %v792 = vunpack.c.l.b16 %v373
        %v793 = vunpack.c.h.b16 %v373
        %v794 = vunpack.c.l.b16 %v374
        %v795 = vunpack.c.h.b16 %v374
        %v796 = vunpack.c.l.b16 %v375
        %v797 = vunpack.c.h.b16 %v375
        %v798 = vunpack.c.l.b16 %v376
        %v799 = vunpack.c.h.b16 %v376
        %v800 = vunpack.c.l.b16 %v377
        %v801 = vunpack.c.h.b16 %v377
        %v802 = vunpack.c.l.b16 %v378
        %v803 = vunpack.c.h.b16 %v378
        %v804 = vunpack.c.l.b16 %v379
        %v805 = vunpack.c.h.b16 %v379
        %v806 = vpack.c.b16 %v554, %v550
        %v807 = vpack.c.b16 %v555, %v551
        %v808 = vpack.c.b16 %v556, %v552
        %v809 = vpack.c.b16 %v557, %v553
        %v810 = vpack.c.b16 %v562, %v558
        %v811 = vpack.c.b16 %v563, %v559
        %v812 = vpack.c.b16 %v564, %v560
        %v813 = vpack.c.b16 %v565, %v561
        %v814 = vpack.c.b16 %v570, %v566
        %v815 = vpack.c.b16 %v571, %v567
        %v816 = vpack.c.b16 %v572, %v568
        %v817 = vpack.c.b16 %v573, %v569
        %v818 = vpack.c.b16 %v578, %v574
        %v819 = vpack.c.b16 %v579, %v575
        %v820 = vpack.c.b16 %v580, %v576
        %v821 = vpack.c.b16 %v581, %v577
        %v822 = vpack.c.b16 %v586, %v582
        %v823 = vpack.c.b16 %v587, %v583
        %v824 = vpack.c.b16 %v588, %v584
        %v825 = vpack.c.b16 %v589, %v585
        %v826 = vpack.c.b16 %v594, %v590
        %v827 = vpack.c.b16 %v595, %v591
        %v828 = vpack.c.b16 %v596, %v592
        %v829 = vpack.c.b16 %v597, %v593
        %v830 = vpack.c.b16 %v602, %v598
        %v831 = vpack.c.b16 %v603, %v599
        %v832 = vpack.c.b16 %v604, %v600
        %v833 = vpack.c.b16 %v605, %v601
        %v834 = vpack.c.b16 %v610, %v606
        %v835 = vpack.c.b16 %v611, %v607
        %v836 = vpack.c.b16 %v612, %v608
        %v837 = vpack.c.b16 %v613, %v609
        %v838 = vpack.c.b16 %v618, %v614
        %v839 = vpack.c.b16 %v619, %v615
        %v840 = vpack.c.b16 %v620, %v616
        %v841 = vpack.c.b16 %v621, %v617
        %v842 = vpack.c.b16 %v626, %v622
        %v843 = vpack.c.b16 %v627, %v623
        %v844 = vpack.c.b16 %v628, %v624
        %v845 = vpack.c.b16 %v629, %v625
        %v846 = vpack.c.b16 %v634, %v630
        %v847 = vpack.c.b16 %v635, %v631
        %v848 = vpack.c.b16 %v636, %v632
        %v849 = vpack.c.b16 %v637, %v633
        %v850 = vpack.c.b16 %v642, %v638
        %v851 = vpack.c.b16 %v643, %v639
        %v852 = vpack.c.b16 %v644, %v640
        %v853 = vpack.c.b16 %v645, %v641
        %v854 = vpack.c.b16 %v650, %v646
        %v855 = vpack.c.b16 %v651, %v647
        %v856 = vpack.c.b16 %v652, %v648
        %v857 = vpack.c.b16 %v653, %v649
        %v858 = vpack.c.b16 %v658, %v654
        %v859 = vpack.c.b16 %v659, %v655
        %v860 = vpack.c.b16 %v660, %v656
        %v861 = vpack.c.b16 %v661, %v657
        %v862 = vpack.c.b16 %v666, %v662
        %v863 = vpack.c.b16 %v667, %v663
        %v864 = vpack.c.b16 %v668, %v664
        %v865 = vpack.c.b16 %v669, %v665
        %v866 = vpack.c.b16 %v674, %v670
        %v867 = vpack.c.b16 %v675, %v671
        %v868 = vpack.c.b16 %v676, %v672
        %v869 = vpack.c.b16 %v677, %v673
        %v870 = vpack.c.b16 %v682, %v678
        %v871 = vpack.c.b16 %v683, %v679
        %v872 = vpack.c.b16 %v684, %v680
        %v873 = vpack.c.b16 %v685, %v681
        %v874 = vpack.c.b16 %v690, %v686
        %v875 = vpack.c.b16 %v691, %v687
        %v876 = vpack.c.b16 %v692, %v688
        %v877 = vpack.c.b16 %v693, %v689
        %v878 = vpack.c.b16 %v698, %v694
        %v879 = vpack.c.b16 %v699, %v695
        %v880 = vpack.c.b16 %v700, %v696
        %v881 = vpack.c.b16 %v701, %v697
        %v882 = vpack.c.b16 %v706, %v702
        %v883 = vpack.c.b16 %v707, %v703
        %v884 = vpack.c.b16 %v708, %v704
        %v885 = vpack.c.b16 %v709, %v705
        %v886 = vpack.c.b16 %v714, %v710
        %v887 = vpack.c.b16 %v715, %v711
        %v888 = vpack.c.b16 %v716, %v712
        %v889 = vpack.c.b16 %v717, %v713
        %v890 = vpack.c.b16 %v722, %v718
        %v891 = vpack.c.b16 %v723, %v719
        %v892 = vpack.c.b16 %v724, %v720
        %v893 = vpack.c.b16 %v725, %v721
        %v894 = vpack.c.b16 %v730, %v726
        %v895 = vpack.c.b16 %v731, %v727
        %v896 = vpack.c.b16 %v732, %v728
        %v897 = vpack.c.b16 %v733, %v729
        %v898 = vpack.c.b16 %v738, %v734
        %v899 = vpack.c.b16 %v739, %v735
        %v900 = vpack.c.b16 %v740, %v736
        %v901 = vpack.c.b16 %v741, %v737
        %v902 = vpack.c.b16 %v746, %v742
        %v903 = vpack.c.b16 %v747, %v743
        %v904 = vpack.c.b16 %v748, %v744
        %v905 = vpack.c.b16 %v749, %v745
        %v906 = vpack.c.b16 %v754, %v750
        %v907 = vpack.c.b16 %v755, %v751
        %v908 = vpack.c.b16 %v756, %v752
        %v909 = vpack.c.b16 %v757, %v753
        %v910 = vpack.c.b16 %v762, %v758
        %v911 = vpack.c.b16 %v763, %v759
        %v912 = vpack.c.b16 %v764, %v760
        %v913 = vpack.c.b16 %v765, %v761
        %v914 = vpack.c.b16 %v770, %v766
        %v915 = vpack.c.b16 %v771, %v767
        %v916 = vpack.c.b16 %v772, %v768
        %v917 = vpack.c.b16 %v773, %v769
        %v918 = vpack.c.b16 %v778, %v774
        %v919 = vpack.c.b16 %v779, %v775
        %v920 = vpack.c.b16 %v780, %v776
        %v921 = vpack.c.b16 %v781, %v777
        %v922 = vpack.c.b16 %v786, %v782
        %v923 = vpack.c.b16 %v787, %v783
        %v924 = vpack.c.b16 %v788, %v784
        %v925 = vpack.c.b16 %v789, %v785
        %v926 = vpack.c.b16 %v794, %v790
        %v927 = vpack.c.b16 %v795, %v791
        %v928 = vpack.c.b16 %v796, %v792
        %v929 = vpack.c.b16 %v797, %v793
        %v930 = vpack.c.b16 %v802, %v798
        %v931 = vpack.c.b16 %v803, %v799
        %v932 = vpack.c.b16 %v804, %v800
        %v933 = vpack.c.b16 %v805, %v801
        %1062 = vmatprep.subr.bf16.mxu0 %v835
        %1063 = vmatpush1.bf16.msra.mxu0 %v834
        %1064 = vmatprep.subr.bf16.mxu0 %v831
        %1065 = vmatpush1.bf16.msra.mxu0 %v830
        %1066 = vmatprep.subr.bf16.mxu0 %v827
        %1067 = vmatpush1.bf16.msra.mxu0 %v826
        %1068 = vmatprep.subr.bf16.mxu0 %v823
        %1069 = vmatpush1.bf16.msra.mxu0 %v822
        %1070 = vmatprep.subr.bf16.mxu0 %v819
        %1071 = vmatpush1.bf16.msra.mxu0 %v818
        %1072 = vmatprep.subr.bf16.mxu0 %v815
        %1073 = vmatpush1.bf16.msra.mxu0 %v814
        %1074 = vmatprep.subr.bf16.mxu0 %v811
        %1075 = vmatpush1.bf16.msra.mxu0 %v810
        %1076 = vmatprep.subr.bf16.mxu0 %v807
        %1077 = vmatpush1.bf16.msra.mxu0 %v806
        %1078 = vmatprep.subr.bf16.mxu0 %v867
        %1079 = vmatpush2.bf16.msra.mxu0 %v866
        %1080 = vmatprep.subr.bf16.mxu0 %v863
        %1081 = vmatpush2.bf16.msra.mxu0 %v862
        %1082 = vmatprep.subr.bf16.mxu0 %v859
        %1083 = vmatpush2.bf16.msra.mxu0 %v858
        %1084 = vmatprep.subr.bf16.mxu0 %v855
        %1085 = vmatpush2.bf16.msra.mxu0 %v854
        %1086 = vmatprep.subr.bf16.mxu0 %v851
        %1087 = vmatpush2.bf16.msra.mxu0 %v850
        %1088 = vmatprep.subr.bf16.mxu0 %v847
        %1089 = vmatpush2.bf16.msra.mxu0 %v846
        %1090 = vmatprep.subr.bf16.mxu0 %v843
        %1091 = vmatpush2.bf16.msra.mxu0 %v842
        %1092 = vmatprep.subr.bf16.mxu0 %v839
        %1093 = vmatpush2.bf16.msra.mxu0 %v838
        %1094 = vmatprep.mubr.bf16.mxu0 %v415
        %1095 = vmatmul.mubr.bf16.gmra.mxu0 %v414
        %v1096 = vpop.f32.mrf.mxu0
        %v1097 = vadd.f32 %v385, %v1096
        %v1098 = vpop.f32.mrf.mxu0
        %v1099 = vadd.f32 %v389, %v1098
        %v1100 = vpop.f32.mrf.mxu0
        %v1101 = vadd.f32 %v385, %v1100
        %v1102 = vpop.f32.mrf.mxu0
        %v1103 = vadd.f32 %v389, %v1102
        %1104 = vdwg.mxu0
        %1105 = vmatprep.subr.bf16.mxu0 %v899
        %1106 = vmatpush1.bf16.msra.mxu0 %v898
        %1107 = vmatprep.subr.bf16.mxu0 %v895
        %1108 = vmatpush1.bf16.msra.mxu0 %v894
        %1109 = vmatprep.subr.bf16.mxu0 %v891
        %1110 = vmatpush1.bf16.msra.mxu0 %v890
        %1111 = vmatprep.subr.bf16.mxu0 %v887
        %1112 = vmatpush1.bf16.msra.mxu0 %v886
        %1113 = vmatprep.subr.bf16.mxu0 %v883
        %1114 = vmatpush1.bf16.msra.mxu0 %v882
        %1115 = vmatprep.subr.bf16.mxu0 %v879
        %1116 = vmatpush1.bf16.msra.mxu0 %v878
        %1117 = vmatprep.subr.bf16.mxu0 %v875
        %1118 = vmatpush1.bf16.msra.mxu0 %v874
        %1119 = vmatprep.subr.bf16.mxu0 %v871
        %1120 = vmatpush1.bf16.msra.mxu0 %v870
        %1121 = vmatprep.subr.bf16.mxu0 %v931
        %1122 = vmatpush2.bf16.msra.mxu0 %v930
        %1123 = vmatprep.subr.bf16.mxu0 %v927
        %1124 = vmatpush2.bf16.msra.mxu0 %v926
        %1125 = vmatprep.subr.bf16.mxu0 %v923
        %1126 = vmatpush2.bf16.msra.mxu0 %v922
        %1127 = vmatprep.subr.bf16.mxu0 %v919
        %1128 = vmatpush2.bf16.msra.mxu0 %v918
        %1129 = vmatprep.subr.bf16.mxu0 %v915
        %1130 = vmatpush2.bf16.msra.mxu0 %v914
        %1131 = vmatprep.subr.bf16.mxu0 %v911
        %1132 = vmatpush2.bf16.msra.mxu0 %v910
        %1133 = vmatprep.subr.bf16.mxu0 %v907
        %1134 = vmatpush2.bf16.msra.mxu0 %v906
        %1135 = vmatprep.subr.bf16.mxu0 %v903
        %1136 = vmatpush2.bf16.msra.mxu0 %v902
        %1137 = vmatprep.mubr.bf16.mxu0 %v417
        %1138 = vmatmul.mubr.bf16.gmra.mxu0 %v416
        %v1139 = vpop.f32.mrf.mxu0
        %v1140 = vadd.f32 %v1097, %v1139
        %v1141 = vpop.f32.mrf.mxu0
        %v1142 = vadd.f32 %v1099, %v1141
        %v1143 = vpop.f32.mrf.mxu0
        %v1144 = vadd.f32 %v1101, %v1143
        %v1145 = vpop.f32.mrf.mxu0
        %v1146 = vadd.f32 %v1103, %v1145
        %1147 = vdwg.mxu0
        %1148 = vmatprep.subr.bf16.mxu0 %v837
        %1149 = vmatpush1.bf16.msra.mxu0 %v836
        %1150 = vmatprep.subr.bf16.mxu0 %v833
        %1151 = vmatpush1.bf16.msra.mxu0 %v832
        %1152 = vmatprep.subr.bf16.mxu0 %v829
        %1153 = vmatpush1.bf16.msra.mxu0 %v828
        %1154 = vmatprep.subr.bf16.mxu0 %v825
        %1155 = vmatpush1.bf16.msra.mxu0 %v824
        %1156 = vmatprep.subr.bf16.mxu0 %v821
        %1157 = vmatpush1.bf16.msra.mxu0 %v820
        %1158 = vmatprep.subr.bf16.mxu0 %v817
        %1159 = vmatpush1.bf16.msra.mxu0 %v816
        %1160 = vmatprep.subr.bf16.mxu0 %v813
        %1161 = vmatpush1.bf16.msra.mxu0 %v812
        %1162 = vmatprep.subr.bf16.mxu0 %v809
        %1163 = vmatpush1.bf16.msra.mxu0 %v808
        %1164 = vmatprep.subr.bf16.mxu0 %v869
        %1165 = vmatpush2.bf16.msra.mxu0 %v868
        %1166 = vmatprep.subr.bf16.mxu0 %v865
        %1167 = vmatpush2.bf16.msra.mxu0 %v864
        %1168 = vmatprep.subr.bf16.mxu0 %v861
        %1169 = vmatpush2.bf16.msra.mxu0 %v860
        %1170 = vmatprep.subr.bf16.mxu0 %v857
        %1171 = vmatpush2.bf16.msra.mxu0 %v856
        %1172 = vmatprep.subr.bf16.mxu0 %v853
        %1173 = vmatpush2.bf16.msra.mxu0 %v852
        %1174 = vmatprep.subr.bf16.mxu0 %v849
        %1175 = vmatpush2.bf16.msra.mxu0 %v848
        %1176 = vmatprep.subr.bf16.mxu0 %v845
        %1177 = vmatpush2.bf16.msra.mxu0 %v844
        %1178 = vmatprep.subr.bf16.mxu0 %v841
        %1179 = vmatpush2.bf16.msra.mxu0 %v840
        %1180 = vmatprep.mubr.bf16.mxu0 %v415
        %1181 = vmatmul.mubr.bf16.gmra.mxu0 %v414
        %v1182 = vpop.f32.mrf.mxu0
        %v1183 = vadd.f32 %v393, %v1182
        %v1184 = vpop.f32.mrf.mxu0
        %v1185 = vadd.f32 %v397, %v1184
        %v1186 = vpop.f32.mrf.mxu0
        %v1187 = vadd.f32 %v393, %v1186
        %v1188 = vpop.f32.mrf.mxu0
        %v1189 = vadd.f32 %v397, %v1188
        %1190 = vdwg.mxu0
        %1191 = vmatprep.subr.bf16.mxu0 %v901
        %1192 = vmatpush1.bf16.msra.mxu0 %v900
        %1193 = vmatprep.subr.bf16.mxu0 %v897
        %1194 = vmatpush1.bf16.msra.mxu0 %v896
        %1195 = vmatprep.subr.bf16.mxu0 %v893
        %1196 = vmatpush1.bf16.msra.mxu0 %v892
        %1197 = vmatprep.subr.bf16.mxu0 %v889
        %1198 = vmatpush1.bf16.msra.mxu0 %v888
        %1199 = vmatprep.subr.bf16.mxu0 %v885
        %1200 = vmatpush1.bf16.msra.mxu0 %v884
        %1201 = vmatprep.subr.bf16.mxu0 %v881
        %1202 = vmatpush1.bf16.msra.mxu0 %v880
        %1203 = vmatprep.subr.bf16.mxu0 %v877
        %1204 = vmatpush1.bf16.msra.mxu0 %v876
        %1205 = vmatprep.subr.bf16.mxu0 %v873
        %1206 = vmatpush1.bf16.msra.mxu0 %v872
        %1207 = vmatprep.subr.bf16.mxu0 %v933
        %1208 = vmatpush2.bf16.msra.mxu0 %v932
        %1209 = vmatprep.subr.bf16.mxu0 %v929
        %1210 = vmatpush2.bf16.msra.mxu0 %v928
        %1211 = vmatprep.subr.bf16.mxu0 %v925
        %1212 = vmatpush2.bf16.msra.mxu0 %v924
        %1213 = vmatprep.subr.bf16.mxu0 %v921
        %1214 = vmatpush2.bf16.msra.mxu0 %v920
        %1215 = vmatprep.subr.bf16.mxu0 %v917
        %1216 = vmatpush2.bf16.msra.mxu0 %v916
        %1217 = vmatprep.subr.bf16.mxu0 %v913
        %1218 = vmatpush2.bf16.msra.mxu0 %v912
        %1219 = vmatprep.subr.bf16.mxu0 %v909
        %1220 = vmatpush2.bf16.msra.mxu0 %v908
        %1221 = vmatprep.subr.bf16.mxu0 %v905
        %1222 = vmatpush2.bf16.msra.mxu0 %v904
        %1223 = vmatprep.mubr.bf16.mxu0 %v417
        %1224 = vmatmul.mubr.bf16.gmra.mxu0 %v416
        %v1225 = vpop.f32.mrf.mxu0
        %v1226 = vadd.f32 %v1183, %v1225
        %v1227 = vpop.f32.mrf.mxu0
        %v1228 = vadd.f32 %v1185, %v1227
        %v1229 = vpop.f32.mrf.mxu0
        %v1230 = vadd.f32 %v1187, %v1229
        %v1231 = vpop.f32.mrf.mxu0
        %v1232 = vadd.f32 %v1189, %v1231
        %1233 = vdwg.mxu0
        %v1234 = vmax.f32 %v1140, 0.0
        %v1235 = vmax.f32 %v1142, 0.0
        %v1236 = vmax.f32 %v1226, 0.0
        %v1237 = vmax.f32 %v1228, 0.0
        %v1238 = vmax.f32 %v1144, 0.0
        %v1239 = vmax.f32 %v1146, 0.0
        %v1240 = vmax.f32 %v1230, 0.0
        %v1241 = vmax.f32 %v1232, 0.0
        %v1242 = vpack.c.bf16 %v1238, %v1234
        %v1243 = vpack.c.bf16 %v1239, %v1235
        %v1244 = vpack.c.bf16 %v1240, %v1236
        %v1245 = vpack.c.bf16 %v1241, %v1237
        %v1246 = vld [vmem:[#allocation2] sm:$0xff]
        %v1247 = vld [vmem:[#allocation2 + $0x8] sm:$0xff]
        %v1248 = vld [vmem:[#allocation2 + $0x10] sm:$0xff]
        %v1249 = vld [vmem:[#allocation2 + $0x18] sm:$0xff]
        %v1250 = vld [vmem:[#allocation2 + $0x20] sm:$0xff]
        %v1251 = vld [vmem:[#allocation2 + $0x28] sm:$0xff]
        %v1252 = vld [vmem:[#allocation2 + $0x30] sm:$0xff]
        %v1253 = vld [vmem:[#allocation2 + $0x38] sm:$0xff]
        %v1254 = vld [vmem:[#allocation2 + $0x40] sm:$0xff]
        %v1255 = vld [vmem:[#allocation2 + $0x48] sm:$0xff]
        %v1256 = vld [vmem:[#allocation2 + $0x50] sm:$0xff]
        %v1257 = vld [vmem:[#allocation2 + $0x58] sm:$0xff]
        %v1258 = vld [vmem:[#allocation2 + $0x60] sm:$0xff]
        %v1259 = vld [vmem:[#allocation2 + $0x68] sm:$0xff]
        %v1260 = vld [vmem:[#allocation2 + $0x70] sm:$0xff]
        %v1261 = vld [vmem:[#allocation2 + $0x78] sm:$0xff]
        %v1262 = vld [vmem:[#allocation2 + $0x80] sm:$0xff]
        %v1263 = vld [vmem:[#allocation2 + $0x88] sm:$0xff]
        %v1264 = vld [vmem:[#allocation2 + $0x90] sm:$0xff]
        %v1265 = vld [vmem:[#allocation2 + $0x98] sm:$0xff]
        %v1266 = vld [vmem:[#allocation2 + $0xa0] sm:$0xff]
        %v1267 = vld [vmem:[#allocation2 + $0xa8] sm:$0xff]
        %v1268 = vld [vmem:[#allocation2 + $0xb0] sm:$0xff]
        %v1269 = vld [vmem:[#allocation2 + $0xb8] sm:$0xff]
        %v1270 = vld [vmem:[#allocation2 + $0xc0] sm:$0xff]
        %v1271 = vld [vmem:[#allocation2 + $0xc8] sm:$0xff]
        %v1272 = vld [vmem:[#allocation2 + $0xd0] sm:$0xff]
        %v1273 = vld [vmem:[#allocation2 + $0xd8] sm:$0xff]
        %v1274 = vld [vmem:[#allocation2 + $0xe0] sm:$0xff]
        %v1275 = vld [vmem:[#allocation2 + $0xe8] sm:$0xff]
        %v1276 = vld [vmem:[#allocation2 + $0xf0] sm:$0xff]
        %v1277 = vld [vmem:[#allocation2 + $0xf8] sm:$0xff]
        %v1278 = vld [vmem:[#allocation2 + $0x100] sm:$0xff]
        %v1279 = vld [vmem:[#allocation2 + $0x108] sm:$0xff]
        %v1280 = vld [vmem:[#allocation2 + $0x110] sm:$0xff]
        %v1281 = vld [vmem:[#allocation2 + $0x118] sm:$0xff]
        %v1282 = vld [vmem:[#allocation2 + $0x120] sm:$0xff]
        %v1283 = vld [vmem:[#allocation2 + $0x128] sm:$0xff]
        %v1284 = vld [vmem:[#allocation2 + $0x130] sm:$0xff]
        %v1285 = vld [vmem:[#allocation2 + $0x138] sm:$0xff]
        %v1286 = vld [vmem:[#allocation2 + $0x140] sm:$0xff]
        %v1287 = vld [vmem:[#allocation2 + $0x148] sm:$0xff]
        %v1288 = vld [vmem:[#allocation2 + $0x150] sm:$0xff]
        %v1289 = vld [vmem:[#allocation2 + $0x158] sm:$0xff]
        %v1290 = vld [vmem:[#allocation2 + $0x160] sm:$0xff]
        %v1291 = vld [vmem:[#allocation2 + $0x168] sm:$0xff]
        %v1292 = vld [vmem:[#allocation2 + $0x170] sm:$0xff]
        %v1293 = vld [vmem:[#allocation2 + $0x178] sm:$0xff]
        %v1294 = vld [vmem:[#allocation2 + $0x180] sm:$0xff]
        %v1295 = vld [vmem:[#allocation2 + $0x188] sm:$0xff]
        %v1296 = vld [vmem:[#allocation2 + $0x190] sm:$0xff]
        %v1297 = vld [vmem:[#allocation2 + $0x198] sm:$0xff]
        %v1298 = vld [vmem:[#allocation2 + $0x1a0] sm:$0xff]
        %v1299 = vld [vmem:[#allocation2 + $0x1a8] sm:$0xff]
        %v1300 = vld [vmem:[#allocation2 + $0x1b0] sm:$0xff]
        %v1301 = vld [vmem:[#allocation2 + $0x1b8] sm:$0xff]
        %v1302 = vld [vmem:[#allocation2 + $0x1c0] sm:$0xff]
        %v1303 = vld [vmem:[#allocation2 + $0x1c8] sm:$0xff]
        %v1304 = vld [vmem:[#allocation2 + $0x1d0] sm:$0xff]
        %v1305 = vld [vmem:[#allocation2 + $0x1d8] sm:$0xff]
        %v1306 = vld [vmem:[#allocation2 + $0x1e0] sm:$0xff]
        %v1307 = vld [vmem:[#allocation2 + $0x1e8] sm:$0xff]
        %v1308 = vld [vmem:[#allocation2 + $0x1f0] sm:$0xff]
        %v1309 = vld [vmem:[#allocation2 + $0x1f8] sm:$0xff]
        %v1310 = vld [vmem:[#allocation2 + $0x200] sm:$0xff]
        %v1311 = vld [vmem:[#allocation2 + $0x208] sm:$0xff]
        %v1312 = vld [vmem:[#allocation2 + $0x210] sm:$0xff]
        %v1313 = vld [vmem:[#allocation2 + $0x218] sm:$0xff]
        %v1314 = vld [vmem:[#allocation2 + $0x220] sm:$0xff]
        %v1315 = vld [vmem:[#allocation2 + $0x228] sm:$0xff]
        %v1316 = vld [vmem:[#allocation2 + $0x230] sm:$0xff]
        %v1317 = vld [vmem:[#allocation2 + $0x238] sm:$0xff]
        %v1318 = vld [vmem:[#allocation2 + $0x240] sm:$0xff]
        %v1319 = vld [vmem:[#allocation2 + $0x248] sm:$0xff]
        %v1320 = vld [vmem:[#allocation2 + $0x250] sm:$0xff]
        %v1321 = vld [vmem:[#allocation2 + $0x258] sm:$0xff]
        %v1322 = vld [vmem:[#allocation2 + $0x260] sm:$0xff]
        %v1323 = vld [vmem:[#allocation2 + $0x268] sm:$0xff]
        %v1324 = vld [vmem:[#allocation2 + $0x270] sm:$0xff]
        %v1325 = vld [vmem:[#allocation2 + $0x278] sm:$0xff]
        %v1326 = vld [vmem:[#allocation2 + $0x280] sm:$0xff]
        %v1327 = vld [vmem:[#allocation2 + $0x288] sm:$0xff]
        %v1328 = vld [vmem:[#allocation2 + $0x290] sm:$0xff]
        %v1329 = vld [vmem:[#allocation2 + $0x298] sm:$0xff]
        %v1330 = vld [vmem:[#allocation2 + $0x2a0] sm:$0xff]
        %v1331 = vld [vmem:[#allocation2 + $0x2a8] sm:$0xff]
        %v1332 = vld [vmem:[#allocation2 + $0x2b0] sm:$0xff]
        %v1333 = vld [vmem:[#allocation2 + $0x2b8] sm:$0xff]
        %v1334 = vld [vmem:[#allocation2 + $0x2c0] sm:$0xff]
        %v1335 = vld [vmem:[#allocation2 + $0x2c8] sm:$0xff]
        %v1336 = vld [vmem:[#allocation2 + $0x2d0] sm:$0xff]
        %v1337 = vld [vmem:[#allocation2 + $0x2d8] sm:$0xff]
        %v1338 = vld [vmem:[#allocation2 + $0x2e0] sm:$0xff]
        %v1339 = vld [vmem:[#allocation2 + $0x2e8] sm:$0xff]
        %v1340 = vld [vmem:[#allocation2 + $0x2f0] sm:$0xff]
        %v1341 = vld [vmem:[#allocation2 + $0x2f8] sm:$0xff]
        %v1342 = vld [vmem:[#allocation2 + $0x300] sm:$0xff]
        %v1343 = vld [vmem:[#allocation2 + $0x308] sm:$0xff]
        %v1344 = vld [vmem:[#allocation2 + $0x310] sm:$0xff]
        %v1345 = vld [vmem:[#allocation2 + $0x318] sm:$0xff]
        %v1346 = vld [vmem:[#allocation2 + $0x320] sm:$0xff]
        %v1347 = vld [vmem:[#allocation2 + $0x328] sm:$0xff]
        %v1348 = vld [vmem:[#allocation2 + $0x330] sm:$0xff]
        %v1349 = vld [vmem:[#allocation2 + $0x338] sm:$0xff]
        %v1350 = vld [vmem:[#allocation2 + $0x340] sm:$0xff]
        %v1351 = vld [vmem:[#allocation2 + $0x348] sm:$0xff]
        %v1352 = vld [vmem:[#allocation2 + $0x350] sm:$0xff]
        %v1353 = vld [vmem:[#allocation2 + $0x358] sm:$0xff]
        %v1354 = vld [vmem:[#allocation2 + $0x360] sm:$0xff]
        %v1355 = vld [vmem:[#allocation2 + $0x368] sm:$0xff]
        %v1356 = vld [vmem:[#allocation2 + $0x370] sm:$0xff]
        %v1357 = vld [vmem:[#allocation2 + $0x378] sm:$0xff]
        %v1358 = vld [vmem:[#allocation2 + $0x380] sm:$0xff]
        %v1359 = vld [vmem:[#allocation2 + $0x388] sm:$0xff]
        %v1360 = vld [vmem:[#allocation2 + $0x390] sm:$0xff]
        %v1361 = vld [vmem:[#allocation2 + $0x398] sm:$0xff]
        %v1362 = vld [vmem:[#allocation2 + $0x3a0] sm:$0xff]
        %v1363 = vld [vmem:[#allocation2 + $0x3a8] sm:$0xff]
        %v1364 = vld [vmem:[#allocation2 + $0x3b0] sm:$0xff]
        %v1365 = vld [vmem:[#allocation2 + $0x3b8] sm:$0xff]
        %v1366 = vld [vmem:[#allocation2 + $0x3c0] sm:$0xff]
        %v1367 = vld [vmem:[#allocation2 + $0x3c8] sm:$0xff]
        %v1368 = vld [vmem:[#allocation2 + $0x3d0] sm:$0xff]
        %v1369 = vld [vmem:[#allocation2 + $0x3d8] sm:$0xff]
        %v1370 = vld [vmem:[#allocation2 + $0x3e0] sm:$0xff]
        %v1371 = vld [vmem:[#allocation2 + $0x3e8] sm:$0xff]
        %v1372 = vld [vmem:[#allocation2 + $0x3f0] sm:$0xff]
        %v1373 = vld [vmem:[#allocation2 + $0x3f8] sm:$0xff]
        %v1374 = vld [vmem:[%s4] sm:$0xf]
        %v1376 = vlaneseq
        %v1377 = vshrl.u32 %v1376, 7
        %v1378 = vsub.s32 0, %v1377
        %v1379 = vrot.slane %v1374, %v1378
        %v1380 = vlaneseq
        %v1381 = vshrl.u32 %v1380, 7
        %v1382 = vsub.s32 1, %v1381
        %v1383 = vrot.slane %v1374, %v1382
        %v1384 = vlaneseq
        %v1385 = vshrl.u32 %v1384, 7
        %v1386 = vsub.s32 2, %v1385
        %v1387 = vrot.slane %v1374, %v1386
        %v1388 = vlaneseq
        %v1389 = vshrl.u32 %v1388, 7
        %v1390 = vsub.s32 3, %v1389
        %v1391 = vrot.slane %v1374, %v1390
        %v1524 = vunpack.c.l.b16 %v1246
        %v1525 = vunpack.c.h.b16 %v1246
        %v1526 = vunpack.c.l.b16 %v1247
        %v1527 = vunpack.c.h.b16 %v1247
        %v1528 = vunpack.c.l.b16 %v1248
        %v1529 = vunpack.c.h.b16 %v1248
        %v1530 = vunpack.c.l.b16 %v1249
        %v1531 = vunpack.c.h.b16 %v1249
        %v1532 = vunpack.c.l.b16 %v1250
        %v1533 = vunpack.c.h.b16 %v1250
        %v1534 = vunpack.c.l.b16 %v1251
        %v1535 = vunpack.c.h.b16 %v1251
        %v1536 = vunpack.c.l.b16 %v1252
        %v1537 = vunpack.c.h.b16 %v1252
        %v1538 = vunpack.c.l.b16 %v1253
        %v1539 = vunpack.c.h.b16 %v1253
        %v1540 = vunpack.c.l.b16 %v1254
        %v1541 = vunpack.c.h.b16 %v1254
        %v1542 = vunpack.c.l.b16 %v1255
        %v1543 = vunpack.c.h.b16 %v1255
        %v1544 = vunpack.c.l.b16 %v1256
        %v1545 = vunpack.c.h.b16 %v1256
        %v1546 = vunpack.c.l.b16 %v1257
        %v1547 = vunpack.c.h.b16 %v1257
        %v1548 = vunpack.c.l.b16 %v1258
        %v1549 = vunpack.c.h.b16 %v1258
        %v1550 = vunpack.c.l.b16 %v1259
        %v1551 = vunpack.c.h.b16 %v1259
        %v1552 = vunpack.c.l.b16 %v1260
        %v1553 = vunpack.c.h.b16 %v1260
        %v1554 = vunpack.c.l.b16 %v1261
        %v1555 = vunpack.c.h.b16 %v1261
        %v1556 = vunpack.c.l.b16 %v1262
        %v1557 = vunpack.c.h.b16 %v1262
        %v1558 = vunpack.c.l.b16 %v1263
        %v1559 = vunpack.c.h.b16 %v1263
        %v1560 = vunpack.c.l.b16 %v1264
        %v1561 = vunpack.c.h.b16 %v1264
        %v1562 = vunpack.c.l.b16 %v1265
        %v1563 = vunpack.c.h.b16 %v1265
        %v1564 = vunpack.c.l.b16 %v1266
        %v1565 = vunpack.c.h.b16 %v1266
        %v1566 = vunpack.c.l.b16 %v1267
        %v1567 = vunpack.c.h.b16 %v1267
        %v1568 = vunpack.c.l.b16 %v1268
        %v1569 = vunpack.c.h.b16 %v1268
        %v1570 = vunpack.c.l.b16 %v1269
        %v1571 = vunpack.c.h.b16 %v1269
        %v1572 = vunpack.c.l.b16 %v1270
        %v1573 = vunpack.c.h.b16 %v1270
        %v1574 = vunpack.c.l.b16 %v1271
        %v1575 = vunpack.c.h.b16 %v1271
        %v1576 = vunpack.c.l.b16 %v1272
        %v1577 = vunpack.c.h.b16 %v1272
        %v1578 = vunpack.c.l.b16 %v1273
        %v1579 = vunpack.c.h.b16 %v1273
        %v1580 = vunpack.c.l.b16 %v1274
        %v1581 = vunpack.c.h.b16 %v1274
        %v1582 = vunpack.c.l.b16 %v1275
        %v1583 = vunpack.c.h.b16 %v1275
        %v1584 = vunpack.c.l.b16 %v1276
        %v1585 = vunpack.c.h.b16 %v1276
        %v1586 = vunpack.c.l.b16 %v1277
        %v1587 = vunpack.c.h.b16 %v1277
        %v1588 = vunpack.c.l.b16 %v1278
        %v1589 = vunpack.c.h.b16 %v1278
        %v1590 = vunpack.c.l.b16 %v1279
        %v1591 = vunpack.c.h.b16 %v1279
        %v1592 = vunpack.c.l.b16 %v1280
        %v1593 = vunpack.c.h.b16 %v1280
        %v1594 = vunpack.c.l.b16 %v1281
        %v1595 = vunpack.c.h.b16 %v1281
        %v1596 = vunpack.c.l.b16 %v1282
        %v1597 = vunpack.c.h.b16 %v1282
        %v1598 = vunpack.c.l.b16 %v1283
        %v1599 = vunpack.c.h.b16 %v1283
        %v1600 = vunpack.c.l.b16 %v1284
        %v1601 = vunpack.c.h.b16 %v1284
        %v1602 = vunpack.c.l.b16 %v1285
        %v1603 = vunpack.c.h.b16 %v1285
        %v1604 = vunpack.c.l.b16 %v1286
        %v1605 = vunpack.c.h.b16 %v1286
        %v1606 = vunpack.c.l.b16 %v1287
        %v1607 = vunpack.c.h.b16 %v1287
        %v1608 = vunpack.c.l.b16 %v1288
        %v1609 = vunpack.c.h.b16 %v1288
        %v1610 = vunpack.c.l.b16 %v1289
        %v1611 = vunpack.c.h.b16 %v1289
        %v1612 = vunpack.c.l.b16 %v1290
        %v1613 = vunpack.c.h.b16 %v1290
        %v1614 = vunpack.c.l.b16 %v1291
        %v1615 = vunpack.c.h.b16 %v1291
        %v1616 = vunpack.c.l.b16 %v1292
        %v1617 = vunpack.c.h.b16 %v1292
        %v1618 = vunpack.c.l.b16 %v1293
        %v1619 = vunpack.c.h.b16 %v1293
        %v1620 = vunpack.c.l.b16 %v1294
        %v1621 = vunpack.c.h.b16 %v1294
        %v1622 = vunpack.c.l.b16 %v1295
        %v1623 = vunpack.c.h.b16 %v1295
        %v1624 = vunpack.c.l.b16 %v1296
        %v1625 = vunpack.c.h.b16 %v1296
        %v1626 = vunpack.c.l.b16 %v1297
        %v1627 = vunpack.c.h.b16 %v1297
        %v1628 = vunpack.c.l.b16 %v1298
        %v1629 = vunpack.c.h.b16 %v1298
        %v1630 = vunpack.c.l.b16 %v1299
        %v1631 = vunpack.c.h.b16 %v1299
        %v1632 = vunpack.c.l.b16 %v1300
        %v1633 = vunpack.c.h.b16 %v1300
        %v1634 = vunpack.c.l.b16 %v1301
        %v1635 = vunpack.c.h.b16 %v1301
        %v1636 = vunpack.c.l.b16 %v1302
        %v1637 = vunpack.c.h.b16 %v1302
        %v1638 = vunpack.c.l.b16 %v1303
        %v1639 = vunpack.c.h.b16 %v1303
        %v1640 = vunpack.c.l.b16 %v1304
        %v1641 = vunpack.c.h.b16 %v1304
        %v1642 = vunpack.c.l.b16 %v1305
        %v1643 = vunpack.c.h.b16 %v1305
        %v1644 = vunpack.c.l.b16 %v1306
        %v1645 = vunpack.c.h.b16 %v1306
        %v1646 = vunpack.c.l.b16 %v1307
        %v1647 = vunpack.c.h.b16 %v1307
        %v1648 = vunpack.c.l.b16 %v1308
        %v1649 = vunpack.c.h.b16 %v1308
        %v1650 = vunpack.c.l.b16 %v1309
        %v1651 = vunpack.c.h.b16 %v1309
        %v1652 = vunpack.c.l.b16 %v1310
        %v1653 = vunpack.c.h.b16 %v1310
        %v1654 = vunpack.c.l.b16 %v1311
        %v1655 = vunpack.c.h.b16 %v1311
        %v1656 = vunpack.c.l.b16 %v1312
        %v1657 = vunpack.c.h.b16 %v1312
        %v1658 = vunpack.c.l.b16 %v1313
        %v1659 = vunpack.c.h.b16 %v1313
        %v1660 = vunpack.c.l.b16 %v1314
        %v1661 = vunpack.c.h.b16 %v1314
        %v1662 = vunpack.c.l.b16 %v1315
        %v1663 = vunpack.c.h.b16 %v1315
        %v1664 = vunpack.c.l.b16 %v1316
        %v1665 = vunpack.c.h.b16 %v1316
        %v1666 = vunpack.c.l.b16 %v1317
        %v1667 = vunpack.c.h.b16 %v1317
        %v1668 = vunpack.c.l.b16 %v1318
        %v1669 = vunpack.c.h.b16 %v1318
        %v1670 = vunpack.c.l.b16 %v1319
        %v1671 = vunpack.c.h.b16 %v1319
        %v1672 = vunpack.c.l.b16 %v1320
        %v1673 = vunpack.c.h.b16 %v1320
        %v1674 = vunpack.c.l.b16 %v1321
        %v1675 = vunpack.c.h.b16 %v1321
        %v1676 = vunpack.c.l.b16 %v1322
        %v1677 = vunpack.c.h.b16 %v1322
        %v1678 = vunpack.c.l.b16 %v1323
        %v1679 = vunpack.c.h.b16 %v1323
        %v1680 = vunpack.c.l.b16 %v1324
        %v1681 = vunpack.c.h.b16 %v1324
        %v1682 = vunpack.c.l.b16 %v1325
        %v1683 = vunpack.c.h.b16 %v1325
        %v1684 = vunpack.c.l.b16 %v1326
        %v1685 = vunpack.c.h.b16 %v1326
        %v1686 = vunpack.c.l.b16 %v1327
        %v1687 = vunpack.c.h.b16 %v1327
        %v1688 = vunpack.c.l.b16 %v1328
        %v1689 = vunpack.c.h.b16 %v1328
        %v1690 = vunpack.c.l.b16 %v1329
        %v1691 = vunpack.c.h.b16 %v1329
        %v1692 = vunpack.c.l.b16 %v1330
        %v1693 = vunpack.c.h.b16 %v1330
        %v1694 = vunpack.c.l.b16 %v1331
        %v1695 = vunpack.c.h.b16 %v1331
        %v1696 = vunpack.c.l.b16 %v1332
        %v1697 = vunpack.c.h.b16 %v1332
        %v1698 = vunpack.c.l.b16 %v1333
        %v1699 = vunpack.c.h.b16 %v1333
        %v1700 = vunpack.c.l.b16 %v1334
        %v1701 = vunpack.c.h.b16 %v1334
        %v1702 = vunpack.c.l.b16 %v1335
        %v1703 = vunpack.c.h.b16 %v1335
        %v1704 = vunpack.c.l.b16 %v1336
        %v1705 = vunpack.c.h.b16 %v1336
        %v1706 = vunpack.c.l.b16 %v1337
        %v1707 = vunpack.c.h.b16 %v1337
        %v1708 = vunpack.c.l.b16 %v1338
        %v1709 = vunpack.c.h.b16 %v1338
        %v1710 = vunpack.c.l.b16 %v1339
        %v1711 = vunpack.c.h.b16 %v1339
        %v1712 = vunpack.c.l.b16 %v1340
        %v1713 = vunpack.c.h.b16 %v1340
        %v1714 = vunpack.c.l.b16 %v1341
        %v1715 = vunpack.c.h.b16 %v1341
        %v1716 = vunpack.c.l.b16 %v1342
        %v1717 = vunpack.c.h.b16 %v1342
        %v1718 = vunpack.c.l.b16 %v1343
        %v1719 = vunpack.c.h.b16 %v1343
        %v1720 = vunpack.c.l.b16 %v1344
        %v1721 = vunpack.c.h.b16 %v1344
        %v1722 = vunpack.c.l.b16 %v1345
        %v1723 = vunpack.c.h.b16 %v1345
        %v1724 = vunpack.c.l.b16 %v1346
        %v1725 = vunpack.c.h.b16 %v1346
        %v1726 = vunpack.c.l.b16 %v1347
        %v1727 = vunpack.c.h.b16 %v1347
        %v1728 = vunpack.c.l.b16 %v1348
        %v1729 = vunpack.c.h.b16 %v1348
        %v1730 = vunpack.c.l.b16 %v1349
        %v1731 = vunpack.c.h.b16 %v1349
        %v1732 = vunpack.c.l.b16 %v1350
        %v1733 = vunpack.c.h.b16 %v1350
        %v1734 = vunpack.c.l.b16 %v1351
        %v1735 = vunpack.c.h.b16 %v1351
        %v1736 = vunpack.c.l.b16 %v1352
        %v1737 = vunpack.c.h.b16 %v1352
        %v1738 = vunpack.c.l.b16 %v1353
        %v1739 = vunpack.c.h.b16 %v1353
        %v1740 = vunpack.c.l.b16 %v1354
        %v1741 = vunpack.c.h.b16 %v1354
        %v1742 = vunpack.c.l.b16 %v1355
        %v1743 = vunpack.c.h.b16 %v1355
        %v1744 = vunpack.c.l.b16 %v1356
        %v1745 = vunpack.c.h.b16 %v1356
        %v1746 = vunpack.c.l.b16 %v1357
        %v1747 = vunpack.c.h.b16 %v1357
        %v1748 = vunpack.c.l.b16 %v1358
        %v1749 = vunpack.c.h.b16 %v1358
        %v1750 = vunpack.c.l.b16 %v1359
        %v1751 = vunpack.c.h.b16 %v1359
        %v1752 = vunpack.c.l.b16 %v1360
        %v1753 = vunpack.c.h.b16 %v1360
        %v1754 = vunpack.c.l.b16 %v1361
        %v1755 = vunpack.c.h.b16 %v1361
        %v1756 = vunpack.c.l.b16 %v1362
        %v1757 = vunpack.c.h.b16 %v1362
        %v1758 = vunpack.c.l.b16 %v1363
        %v1759 = vunpack.c.h.b16 %v1363
        %v1760 = vunpack.c.l.b16 %v1364
        %v1761 = vunpack.c.h.b16 %v1364
        %v1762 = vunpack.c.l.b16 %v1365
        %v1763 = vunpack.c.h.b16 %v1365
        %v1764 = vunpack.c.l.b16 %v1366
        %v1765 = vunpack.c.h.b16 %v1366
        %v1766 = vunpack.c.l.b16 %v1367
        %v1767 = vunpack.c.h.b16 %v1367
        %v1768 = vunpack.c.l.b16 %v1368
        %v1769 = vunpack.c.h.b16 %v1368
        %v1770 = vunpack.c.l.b16 %v1369
        %v1771 = vunpack.c.h.b16 %v1369
        %v1772 = vunpack.c.l.b16 %v1370
        %v1773 = vunpack.c.h.b16 %v1370
        %v1774 = vunpack.c.l.b16 %v1371
        %v1775 = vunpack.c.h.b16 %v1371
        %v1776 = vunpack.c.l.b16 %v1372
        %v1777 = vunpack.c.h.b16 %v1372
        %v1778 = vunpack.c.l.b16 %v1373
        %v1779 = vunpack.c.h.b16 %v1373
        %v1780 = vpack.c.b16 %v1528, %v1524
        %v1781 = vpack.c.b16 %v1529, %v1525
        %v1782 = vpack.c.b16 %v1530, %v1526
        %v1783 = vpack.c.b16 %v1531, %v1527
        %v1784 = vpack.c.b16 %v1536, %v1532
        %v1785 = vpack.c.b16 %v1537, %v1533
        %v1786 = vpack.c.b16 %v1538, %v1534
        %v1787 = vpack.c.b16 %v1539, %v1535
        %v1788 = vpack.c.b16 %v1544, %v1540
        %v1789 = vpack.c.b16 %v1545, %v1541
        %v1790 = vpack.c.b16 %v1546, %v1542
        %v1791 = vpack.c.b16 %v1547, %v1543
        %v1792 = vpack.c.b16 %v1552, %v1548
        %v1793 = vpack.c.b16 %v1553, %v1549
        %v1794 = vpack.c.b16 %v1554, %v1550
        %v1795 = vpack.c.b16 %v1555, %v1551
        %v1796 = vpack.c.b16 %v1560, %v1556
        %v1797 = vpack.c.b16 %v1561, %v1557
        %v1798 = vpack.c.b16 %v1562, %v1558
        %v1799 = vpack.c.b16 %v1563, %v1559
        %v1800 = vpack.c.b16 %v1568, %v1564
        %v1801 = vpack.c.b16 %v1569, %v1565
        %v1802 = vpack.c.b16 %v1570, %v1566
        %v1803 = vpack.c.b16 %v1571, %v1567
        %v1804 = vpack.c.b16 %v1576, %v1572
        %v1805 = vpack.c.b16 %v1577, %v1573
        %v1806 = vpack.c.b16 %v1578, %v1574
        %v1807 = vpack.c.b16 %v1579, %v1575
        %v1808 = vpack.c.b16 %v1584, %v1580
        %v1809 = vpack.c.b16 %v1585, %v1581
        %v1810 = vpack.c.b16 %v1586, %v1582
        %v1811 = vpack.c.b16 %v1587, %v1583
        %v1812 = vpack.c.b16 %v1592, %v1588
        %v1813 = vpack.c.b16 %v1593, %v1589
        %v1814 = vpack.c.b16 %v1594, %v1590
        %v1815 = vpack.c.b16 %v1595, %v1591
        %v1816 = vpack.c.b16 %v1600, %v1596
        %v1817 = vpack.c.b16 %v1601, %v1597
        %v1818 = vpack.c.b16 %v1602, %v1598
        %v1819 = vpack.c.b16 %v1603, %v1599
        %v1820 = vpack.c.b16 %v1608, %v1604
        %v1821 = vpack.c.b16 %v1609, %v1605
        %v1822 = vpack.c.b16 %v1610, %v1606
        %v1823 = vpack.c.b16 %v1611, %v1607
        %v1824 = vpack.c.b16 %v1616, %v1612
        %v1825 = vpack.c.b16 %v1617, %v1613
        %v1826 = vpack.c.b16 %v1618, %v1614
        %v1827 = vpack.c.b16 %v1619, %v1615
        %v1828 = vpack.c.b16 %v1624, %v1620
        %v1829 = vpack.c.b16 %v1625, %v1621
        %v1830 = vpack.c.b16 %v1626, %v1622
        %v1831 = vpack.c.b16 %v1627, %v1623
        %v1832 = vpack.c.b16 %v1632, %v1628
        %v1833 = vpack.c.b16 %v1633, %v1629
        %v1834 = vpack.c.b16 %v1634, %v1630
        %v1835 = vpack.c.b16 %v1635, %v1631
        %v1836 = vpack.c.b16 %v1640, %v1636
        %v1837 = vpack.c.b16 %v1641, %v1637
        %v1838 = vpack.c.b16 %v1642, %v1638
        %v1839 = vpack.c.b16 %v1643, %v1639
        %v1840 = vpack.c.b16 %v1648, %v1644
        %v1841 = vpack.c.b16 %v1649, %v1645
        %v1842 = vpack.c.b16 %v1650, %v1646
        %v1843 = vpack.c.b16 %v1651, %v1647
        %v1844 = vpack.c.b16 %v1656, %v1652
        %v1845 = vpack.c.b16 %v1657, %v1653
        %v1846 = vpack.c.b16 %v1658, %v1654
        %v1847 = vpack.c.b16 %v1659, %v1655
        %v1848 = vpack.c.b16 %v1664, %v1660
        %v1849 = vpack.c.b16 %v1665, %v1661
        %v1850 = vpack.c.b16 %v1666, %v1662
        %v1851 = vpack.c.b16 %v1667, %v1663
        %v1852 = vpack.c.b16 %v1672, %v1668
        %v1853 = vpack.c.b16 %v1673, %v1669
        %v1854 = vpack.c.b16 %v1674, %v1670
        %v1855 = vpack.c.b16 %v1675, %v1671
        %v1856 = vpack.c.b16 %v1680, %v1676
        %v1857 = vpack.c.b16 %v1681, %v1677
        %v1858 = vpack.c.b16 %v1682, %v1678
        %v1859 = vpack.c.b16 %v1683, %v1679
        %v1860 = vpack.c.b16 %v1688, %v1684
        %v1861 = vpack.c.b16 %v1689, %v1685
        %v1862 = vpack.c.b16 %v1690, %v1686
        %v1863 = vpack.c.b16 %v1691, %v1687
        %v1864 = vpack.c.b16 %v1696, %v1692
        %v1865 = vpack.c.b16 %v1697, %v1693
        %v1866 = vpack.c.b16 %v1698, %v1694
        %v1867 = vpack.c.b16 %v1699, %v1695
        %v1868 = vpack.c.b16 %v1704, %v1700
        %v1869 = vpack.c.b16 %v1705, %v1701
        %v1870 = vpack.c.b16 %v1706, %v1702
        %v1871 = vpack.c.b16 %v1707, %v1703
        %v1872 = vpack.c.b16 %v1712, %v1708
        %v1873 = vpack.c.b16 %v1713, %v1709
        %v1874 = vpack.c.b16 %v1714, %v1710
        %v1875 = vpack.c.b16 %v1715, %v1711
        %v1876 = vpack.c.b16 %v1720, %v1716
        %v1877 = vpack.c.b16 %v1721, %v1717
        %v1878 = vpack.c.b16 %v1722, %v1718
        %v1879 = vpack.c.b16 %v1723, %v1719
        %v1880 = vpack.c.b16 %v1728, %v1724
        %v1881 = vpack.c.b16 %v1729, %v1725
        %v1882 = vpack.c.b16 %v1730, %v1726
        %v1883 = vpack.c.b16 %v1731, %v1727
        %v1884 = vpack.c.b16 %v1736, %v1732
        %v1885 = vpack.c.b16 %v1737, %v1733
        %v1886 = vpack.c.b16 %v1738, %v1734
        %v1887 = vpack.c.b16 %v1739, %v1735
        %v1888 = vpack.c.b16 %v1744, %v1740
        %v1889 = vpack.c.b16 %v1745, %v1741
        %v1890 = vpack.c.b16 %v1746, %v1742
        %v1891 = vpack.c.b16 %v1747, %v1743
        %v1892 = vpack.c.b16 %v1752, %v1748
        %v1893 = vpack.c.b16 %v1753, %v1749
        %v1894 = vpack.c.b16 %v1754, %v1750
        %v1895 = vpack.c.b16 %v1755, %v1751
        %v1896 = vpack.c.b16 %v1760, %v1756
        %v1897 = vpack.c.b16 %v1761, %v1757
        %v1898 = vpack.c.b16 %v1762, %v1758
        %v1899 = vpack.c.b16 %v1763, %v1759
        %v1900 = vpack.c.b16 %v1768, %v1764
        %v1901 = vpack.c.b16 %v1769, %v1765
        %v1902 = vpack.c.b16 %v1770, %v1766
        %v1903 = vpack.c.b16 %v1771, %v1767
        %v1904 = vpack.c.b16 %v1776, %v1772
        %v1905 = vpack.c.b16 %v1777, %v1773
        %v1906 = vpack.c.b16 %v1778, %v1774
        %v1907 = vpack.c.b16 %v1779, %v1775
        %2036 = vmatprep.subr.bf16.mxu0 %v1809
        %2037 = vmatpush1.bf16.msra.mxu0 %v1808
        %2038 = vmatprep.subr.bf16.mxu0 %v1805
        %2039 = vmatpush1.bf16.msra.mxu0 %v1804
        %2040 = vmatprep.subr.bf16.mxu0 %v1801
        %2041 = vmatpush1.bf16.msra.mxu0 %v1800
        %2042 = vmatprep.subr.bf16.mxu0 %v1797
        %2043 = vmatpush1.bf16.msra.mxu0 %v1796
        %2044 = vmatprep.subr.bf16.mxu0 %v1793
        %2045 = vmatpush1.bf16.msra.mxu0 %v1792
        %2046 = vmatprep.subr.bf16.mxu0 %v1789
        %2047 = vmatpush1.bf16.msra.mxu0 %v1788
        %2048 = vmatprep.subr.bf16.mxu0 %v1785
        %2049 = vmatpush1.bf16.msra.mxu0 %v1784
        %2050 = vmatprep.subr.bf16.mxu0 %v1781
        %2051 = vmatpush1.bf16.msra.mxu0 %v1780
        %2052 = vmatprep.subr.bf16.mxu0 %v1841
        %2053 = vmatpush2.bf16.msra.mxu0 %v1840
        %2054 = vmatprep.subr.bf16.mxu0 %v1837
        %2055 = vmatpush2.bf16.msra.mxu0 %v1836
        %2056 = vmatprep.subr.bf16.mxu0 %v1833
        %2057 = vmatpush2.bf16.msra.mxu0 %v1832
        %2058 = vmatprep.subr.bf16.mxu0 %v1829
        %2059 = vmatpush2.bf16.msra.mxu0 %v1828
        %2060 = vmatprep.subr.bf16.mxu0 %v1825
        %2061 = vmatpush2.bf16.msra.mxu0 %v1824
        %2062 = vmatprep.subr.bf16.mxu0 %v1821
        %2063 = vmatpush2.bf16.msra.mxu0 %v1820
        %2064 = vmatprep.subr.bf16.mxu0 %v1817
        %2065 = vmatpush2.bf16.msra.mxu0 %v1816
        %2066 = vmatprep.subr.bf16.mxu0 %v1813
        %2067 = vmatpush2.bf16.msra.mxu0 %v1812
        %2068 = vmatprep.mubr.bf16.mxu0 %v1243
        %2069 = vmatmul.mubr.bf16.gmra.mxu0 %v1242
        %v2070 = vpop.f32.mrf.mxu0
        %v2071 = vadd.f32 %v1379, %v2070
        %v2072 = vpop.f32.mrf.mxu0
        %v2073 = vadd.f32 %v1383, %v2072
        %v2074 = vpop.f32.mrf.mxu0
        %v2075 = vadd.f32 %v1379, %v2074
        %v2076 = vpop.f32.mrf.mxu0
        %v2077 = vadd.f32 %v1383, %v2076
        %2078 = vdwg.mxu0
        %2079 = vmatprep.subr.bf16.mxu0 %v1873
        %2080 = vmatpush1.bf16.msra.mxu0 %v1872
        %2081 = vmatprep.subr.bf16.mxu0 %v1869
        %2082 = vmatpush1.bf16.msra.mxu0 %v1868
        %2083 = vmatprep.subr.bf16.mxu0 %v1865
        %2084 = vmatpush1.bf16.msra.mxu0 %v1864
        %2085 = vmatprep.subr.bf16.mxu0 %v1861
        %2086 = vmatpush1.bf16.msra.mxu0 %v1860
        %2087 = vmatprep.subr.bf16.mxu0 %v1857
        %2088 = vmatpush1.bf16.msra.mxu0 %v1856
        %2089 = vmatprep.subr.bf16.mxu0 %v1853
        %2090 = vmatpush1.bf16.msra.mxu0 %v1852
        %2091 = vmatprep.subr.bf16.mxu0 %v1849
        %2092 = vmatpush1.bf16.msra.mxu0 %v1848
        %2093 = vmatprep.subr.bf16.mxu0 %v1845
        %2094 = vmatpush1.bf16.msra.mxu0 %v1844
        %2095 = vmatprep.subr.bf16.mxu0 %v1905
        %2096 = vmatpush2.bf16.msra.mxu0 %v1904
        %2097 = vmatprep.subr.bf16.mxu0 %v1901
        %2098 = vmatpush2.bf16.msra.mxu0 %v1900
        %2099 = vmatprep.subr.bf16.mxu0 %v1897
        %2100 = vmatpush2.bf16.msra.mxu0 %v1896
        %2101 = vmatprep.subr.bf16.mxu0 %v1893
        %2102 = vmatpush2.bf16.msra.mxu0 %v1892
        %2103 = vmatprep.subr.bf16.mxu0 %v1889
        %2104 = vmatpush2.bf16.msra.mxu0 %v1888
        %2105 = vmatprep.subr.bf16.mxu0 %v1885
        %2106 = vmatpush2.bf16.msra.mxu0 %v1884
        %2107 = vmatprep.subr.bf16.mxu0 %v1881
        %2108 = vmatpush2.bf16.msra.mxu0 %v1880
        %2109 = vmatprep.subr.bf16.mxu0 %v1877
        %2110 = vmatpush2.bf16.msra.mxu0 %v1876
        %2111 = vmatprep.mubr.bf16.mxu0 %v1245
        %2112 = vmatmul.mubr.bf16.gmra.mxu0 %v1244
        %v2113 = vpop.f32.mrf.mxu0
        %v2114 = vadd.f32 %v2071, %v2113
        %v2115 = vpop.f32.mrf.mxu0
        %v2116 = vadd.f32 %v2073, %v2115
        %v2117 = vpop.f32.mrf.mxu0
        %v2118 = vadd.f32 %v2075, %v2117
        %v2119 = vpop.f32.mrf.mxu0
        %v2120 = vadd.f32 %v2077, %v2119
        %2121 = vdwg.mxu0
        %2122 = vmatprep.subr.bf16.mxu0 %v1811
        %2123 = vmatpush1.bf16.msra.mxu0 %v1810
        %2124 = vmatprep.subr.bf16.mxu0 %v1807
        %2125 = vmatpush1.bf16.msra.mxu0 %v1806
        %2126 = vmatprep.subr.bf16.mxu0 %v1803
        %2127 = vmatpush1.bf16.msra.mxu0 %v1802
        %2128 = vmatprep.subr.bf16.mxu0 %v1799
        %2129 = vmatpush1.bf16.msra.mxu0 %v1798
        %2130 = vmatprep.subr.bf16.mxu0 %v1795
        %2131 = vmatpush1.bf16.msra.mxu0 %v1794
        %2132 = vmatprep.subr.bf16.mxu0 %v1791
        %2133 = vmatpush1.bf16.msra.mxu0 %v1790
        %2134 = vmatprep.subr.bf16.mxu0 %v1787
        %2135 = vmatpush1.bf16.msra.mxu0 %v1786
        %2136 = vmatprep.subr.bf16.mxu0 %v1783
        %2137 = vmatpush1.bf16.msra.mxu0 %v1782
        %2138 = vmatprep.subr.bf16.mxu0 %v1843
        %2139 = vmatpush2.bf16.msra.mxu0 %v1842
        %2140 = vmatprep.subr.bf16.mxu0 %v1839
        %2141 = vmatpush2.bf16.msra.mxu0 %v1838
        %2142 = vmatprep.subr.bf16.mxu0 %v1835
        %2143 = vmatpush2.bf16.msra.mxu0 %v1834
        %2144 = vmatprep.subr.bf16.mxu0 %v1831
        %2145 = vmatpush2.bf16.msra.mxu0 %v1830
        %2146 = vmatprep.subr.bf16.mxu0 %v1827
        %2147 = vmatpush2.bf16.msra.mxu0 %v1826
        %2148 = vmatprep.subr.bf16.mxu0 %v1823
        %2149 = vmatpush2.bf16.msra.mxu0 %v1822
        %2150 = vmatprep.subr.bf16.mxu0 %v1819
        %2151 = vmatpush2.bf16.msra.mxu0 %v1818
        %2152 = vmatprep.subr.bf16.mxu0 %v1815
        %2153 = vmatpush2.bf16.msra.mxu0 %v1814
        %2154 = vmatprep.mubr.bf16.mxu0 %v1243
        %2155 = vmatmul.mubr.bf16.gmra.mxu0 %v1242
        %v2156 = vpop.f32.mrf.mxu0
        %v2157 = vadd.f32 %v1387, %v2156
        %v2158 = vpop.f32.mrf.mxu0
        %v2159 = vadd.f32 %v1391, %v2158
        %v2160 = vpop.f32.mrf.mxu0
        %v2161 = vadd.f32 %v1387, %v2160
        %v2162 = vpop.f32.mrf.mxu0
        %v2163 = vadd.f32 %v1391, %v2162
        %2164 = vdwg.mxu0
        %2165 = vmatprep.subr.bf16.mxu0 %v1875
        %2166 = vmatpush1.bf16.msra.mxu0 %v1874
        %2167 = vmatprep.subr.bf16.mxu0 %v1871
        %2168 = vmatpush1.bf16.msra.mxu0 %v1870
        %2169 = vmatprep.subr.bf16.mxu0 %v1867
        %2170 = vmatpush1.bf16.msra.mxu0 %v1866
        %2171 = vmatprep.subr.bf16.mxu0 %v1863
        %2172 = vmatpush1.bf16.msra.mxu0 %v1862
        %2173 = vmatprep.subr.bf16.mxu0 %v1859
        %2174 = vmatpush1.bf16.msra.mxu0 %v1858
        %2175 = vmatprep.subr.bf16.mxu0 %v1855
        %2176 = vmatpush1.bf16.msra.mxu0 %v1854
        %2177 = vmatprep.subr.bf16.mxu0 %v1851
        %2178 = vmatpush1.bf16.msra.mxu0 %v1850
        %2179 = vmatprep.subr.bf16.mxu0 %v1847
        %2180 = vmatpush1.bf16.msra.mxu0 %v1846
        %2181 = vmatprep.subr.bf16.mxu0 %v1907
        %2182 = vmatpush2.bf16.msra.mxu0 %v1906
        %2183 = vmatprep.subr.bf16.mxu0 %v1903
        %2184 = vmatpush2.bf16.msra.mxu0 %v1902
        %2185 = vmatprep.subr.bf16.mxu0 %v1899
        %2186 = vmatpush2.bf16.msra.mxu0 %v1898
        %2187 = vmatprep.subr.bf16.mxu0 %v1895
        %2188 = vmatpush2.bf16.msra.mxu0 %v1894
        %2189 = vmatprep.subr.bf16.mxu0 %v1891
        %2190 = vmatpush2.bf16.msra.mxu0 %v1890
        %2191 = vmatprep.subr.bf16.mxu0 %v1887
        %2192 = vmatpush2.bf16.msra.mxu0 %v1886
        %2193 = vmatprep.subr.bf16.mxu0 %v1883
        %2194 = vmatpush2.bf16.msra.mxu0 %v1882
        %2195 = vmatprep.subr.bf16.mxu0 %v1879
        %2196 = vmatpush2.bf16.msra.mxu0 %v1878
        %2197 = vmatprep.mubr.bf16.mxu0 %v1245
        %2198 = vmatmul.mubr.bf16.gmra.mxu0 %v1244
        %v2199 = vpop.f32.mrf.mxu0
        %v2200 = vadd.f32 %v2157, %v2199
        %v2201 = vpop.f32.mrf.mxu0
        %v2202 = vadd.f32 %v2159, %v2201
        %v2203 = vpop.f32.mrf.mxu0
        %v2204 = vadd.f32 %v2161, %v2203
        %v2205 = vpop.f32.mrf.mxu0
        %v2206 = vadd.f32 %v2163, %v2205
        %2207 = vdwg.mxu0
        %v2208 = vmax.f32 %v2114, 0.0
        %v2209 = vmax.f32 %v2116, 0.0
        %v2210 = vmax.f32 %v2200, 0.0
        %v2211 = vmax.f32 %v2202, 0.0
        %v2212 = vmax.f32 %v2118, 0.0
        %v2213 = vmax.f32 %v2120, 0.0
        %v2214 = vmax.f32 %v2204, 0.0
        %v2215 = vmax.f32 %v2206, 0.0
        %v2216 = vpack.c.bf16 %v2212, %v2208
        %v2217 = vpack.c.bf16 %v2213, %v2209
        %v2218 = vpack.c.bf16 %v2214, %v2210
        %v2219 = vpack.c.bf16 %v2215, %v2211
        %v2224 = vunpack.c.l.b16 %v2216
        %v2225 = vunpack.c.l.b16 %v2217
        %v2226 = vunpack.c.l.b16 %v2218
        %v2227 = vunpack.c.l.b16 %v2219
        %v2228 = vunpack.c.h.b16 %v2216
        %v2229 = vunpack.c.h.b16 %v2217
        %v2230 = vunpack.c.h.b16 %v2218
        %v2231 = vunpack.c.h.b16 %v2219
        %v2232 = vpack.c.b16 %v2225, %v2224
        %v2233 = vpack.c.b16 %v2227, %v2226
        %v2234 = vpack.c.b16 %v2229, %v2228
        %v2235 = vpack.c.b16 %v2231, %v2230
        %2240 = vst [vmem:[%s246] sm:$0xff] %v2232
        %2241 = vst [vmem:[%s246 + $0x8] sm:$0xff] %v2233
        %2242 = vst [vmem:[%s246 + $0x10] sm:$0xff] %v2234
        %2243 = vst [vmem:[%s246 + $0x18] sm:$0xff] %v2235
        %s2244 = smul.u32 2, %s17
        %p2245 = scmp.lt.s32.totalorder %s2244, 3
        %s2246 = scalar_select %p2245, %s2244, 3
        %s2247 = smul.addr %s2246, 4
        %s2248 = smul.addr %s2247, 4
        %s2249 = scalar_lea.vmem %s5, %s2248
        // Predicated region
        $region45: #{mff_forward.4} parent=39 // pred_check
          %p2250 = pneg %p145
        $region46: #{mff_forward.4} parent=39 // pred_check_branch
          %2252 = sbr.rel (%p2250) target = $region48
        $region47: #{mff_forward.4} parent=39 // pred_region
          %s2253 = smul.u32 2, %s17
        $region48: #{mff_forward.4} parent=39 // pred_fallthru
          _
      $region40: #{mff_forward.4} parent=5 // pred_fallthru
        _
      %p2254 = scmp.le.s32.totalorder 2, %s12
      // Predicated region
      $region49: #{mff_forward.4} parent=5 // pred_check
        %p2255 = pneg %p2254
      $region50: #{mff_forward.4} parent=5 // pred_check_branch
        %2257 = sbr.rel (%p2255) target = $region52
      $region51: #{mff_forward.4} parent=5 // pred_region
        %s2258 = ssub.s32 %s12, 2
        // Predicated region
        $region53: #{mff_forward.4} parent=51 // pred_check
          %p2259 = pneg %p151
        $region54: #{mff_forward.4} parent=51 // pred_check_branch
          %2261 = sbr.rel (%p2259) target = $region56
        $region55: #{mff_forward.4} parent=51 // pred_region
          %s2262 = smul.u32 2, %s18
          %p2263 = scmp.lt.s32.totalorder %s2262, 3
          %s2264 = scalar_select %p2263, %s2262, 3
          %s2265 = smul.addr %s2264, 4
          %s2266 = smul.addr %s2265, 4
          %s2267 = scalar_lea.vmem %s5, %s2266
        $region56: #{mff_forward.4} parent=51 // pred_fallthru
          _
      $region52: #{mff_forward.4} parent=5 // pred_fallthru
        _
    $region6: #{mff_forward.4} parent=1 // loop_footer
      %s16 = sadd.s32 1, %s12
    $region7: #{mff_forward.4} parent=1 // loop_footer_branch
      %11 = sbr.rel target = $region3
    $region8: #{mff_forward.4} parent=1 // loop_exit
      _
    %2268 = vsyncpa [#allocation3], 1
    %s2269 = scalar_lea.sflag [#allocation3], 1
    %2270 = vsyncpa %s2269, 1

// kernel: mff_forward.5
$region0: #{mff_forward.5}
  #allocation0 [shape = 'u32[]', space=smem, size = 0x4, offset = 0x4, fixed_abs, tag = 'smem constant byte address 0x4 - core index']
  #allocation1 [shape = 'u32[144,128]{1,0:T(1,128)}', space=vmem, size = 0x12000, scoped, tag = 'internal scratch']
  %s0 = inlined_call_operand.vmem [shape: bf16[128,1152], index: 0, kind: input, shape index: {}]
  %s1 = inlined_call_operand.vmem [shape: bf16[1152,128], index: 1, kind: input, shape index: {}]
  %s2 = inlined_call_operand.vmem [shape: f32[1,128], index: 2, kind: input, shape index: {}]
  %s3 = inlined_call_operand.hbm [shape: f32[128,128], index: 3, kind: output, shape index: {}]
  %s4 = sld [smem:[#allocation0]]
  $region45: #{mff_forward.5} parent=0
    _
  %s6 = ssub.s32 1, %s4
  %s7 = scalar_select 0, %s6, %s4
  $region1: #{mff_forward.5} parent=0
    #allocation2 [shape = 'u8[65536]{0}', space=vmem, size = 0x10000, scoped, tag = 'output window, operand 0']
    #allocation3 [shape = 's32[2]{0}', space=sflag, size = 0x8, scoped, tag = 'scoped memory for mff_forward.5']
    %8 = vsyncpa [#allocation3], 0
    %s9 = scalar_lea.sflag [#allocation3], 1
    %10 = vsyncpa %s9, 0
    loop: start=0, step=1, limit=4
    $region2: #{mff_forward.5} parent=1 // loop_pre_header
      _
    $region3: #{mff_forward.5} parent=1 // loop_header
      %s12 = sphi 0, %s16
      %p13 = scmp.ge.s32.totalorder %s12, 4
      %s22 = sphi 0, %s24
      %s25 = sphi 0, %s22
      %s26 = sphi 0, %s25
      %s42 = sphi 0, %s26
      %s46 = sphi 0, %s46
      %s48 = sphi 0, %s46
      %s49 = sphi 0, %s48
      %s63 = sphi 0, %s49
      %s67 = sphi 0, %s67
      %s69 = sphi 0, %s67
      %s70 = sphi 0, %s69
      %s84 = sphi 0, %s70
      %s90 = sphi 0, %s92
      %s93 = sphi 0, %s90
      %s94 = sphi 0, %s93
      %s110 = sphi 0, %s94
    $region4: #{mff_forward.5} parent=1 // loop_header_branch
      %15 = sbr.rel (%p13) target = $region8
    $region5: #{mff_forward.5} parent=1 // loop_body
      %s17 = ssub.s32 %s12, 1
      %s18 = ssub.s32 %s12, 2
      %s19 = sadd.s32 %s12, 1
      %s20 = ssub.s32 %s12, %s19
      %p21 = scmp.eq.s32.totalorder %s20, 0
      %s23 = sadd.s32 %s22, 1
      %s24 = scalar_select %p21, %s22, %s23
      %p27 = pneg %p21
      %p28 = scmp.eq.s32.totalorder %s12, 1
      %p29 = por %p27, %p28
      %p30 = scmp.ne.s32.totalorder %s22, %s25
      %p31 = scmp.eq.s32.totalorder %s12, 0
      %p32 = por %p30, %p31
      %p33 = scmp.ne.s32.totalorder %s22, %s25
      %p34 = scmp.eq.s32.totalorder %s17, 1
      %p35 = por %p33, %p34
      %p36 = scmp.ne.s32.totalorder %s25, %s26
      %p37 = scmp.eq.s32.totalorder %s17, 0
      %p38 = por %p36, %p37
      %p39 = scmp.ne.s32.totalorder %s25, %s26
      %p40 = scmp.eq.s32.totalorder %s18, 1
      %p41 = por %p39, %p40
      %p43 = scmp.ne.s32.totalorder %s26, %s42
      %p44 = scmp.eq.s32.totalorder %s18, 0
      %p45 = por %p43, %p44
      %s47 = sadd.s32 %s46, 1
      %p50 = scmp.eq.s32.totalorder %s12, 1
      %p51 = scmp.ne.s32.totalorder %s46, %s48
      %p52 = scmp.eq.s32.totalorder %s12, 0
      %p53 = por %p51, %p52
      %p54 = scmp.ne.s32.totalorder %s46, %s48
      %p55 = scmp.eq.s32.totalorder %s17, 1
      %p56 = por %p54, %p55
      %p57 = scmp.ne.s32.totalorder %s48, %s49
      %p58 = scmp.eq.s32.totalorder %s17, 0
      %p59 = por %p57, %p58
      %p60 = scmp.ne.s32.totalorder %s48, %s49
      %p61 = scmp.eq.s32.totalorder %s18, 1
      %p62 = por %p60, %p61
      %p64 = scmp.ne.s32.totalorder %s49, %s63
      %p65 = scmp.eq.s32.totalorder %s18, 0
      %p66 = por %p64, %p65
      %s68 = sadd.s32 %s67, 1
      %p71 = scmp.eq.s32.totalorder %s12, 1
      %p72 = scmp.ne.s32.totalorder %s67, %s69
      %p73 = scmp.eq.s32.totalorder %s12, 0
      %p74 = por %p72, %p73
      %p75 = scmp.ne.s32.totalorder %s67, %s69
      %p76 = scmp.eq.s32.totalorder %s17, 1
      %p77 = por %p75, %p76
      %p78 = scmp.ne.s32.totalorder %s69, %s70
      %p79 = scmp.eq.s32.totalorder %s17, 0
      %p80 = por %p78, %p79
      %p81 = scmp.ne.s32.totalorder %s69, %s70
      %p82 = scmp.eq.s32.totalorder %s18, 1
      %p83 = por %p81, %p82
      %p85 = scmp.ne.s32.totalorder %s70, %s84
      %p86 = scmp.eq.s32.totalorder %s18, 0
      %p87 = por %p85, %p86
      %s88 = ssub.s32 %s12, %s19
      %p89 = scmp.eq.s32.totalorder %s88, 0
      %s91 = sadd.s32 %s90, 1
      %s92 = scalar_select %p89, %s90, %s91
      %p95 = pneg %p89
      %p96 = scmp.eq.s32.totalorder %s12, 1
      %p97 = por %p95, %p96
      %p98 = scmp.ne.s32.totalorder %s90, %s93
      %p99 = scmp.eq.s32.totalorder %s12, 0
      %p100 = por %p98, %p99
      %p101 = scmp.ne.s32.totalorder %s90, %s93
      %p102 = scmp.eq.s32.totalorder %s17, 1
      %p103 = por %p101, %p102
      %p104 = scmp.ne.s32.totalorder %s93, %s94
      %p105 = scmp.eq.s32.totalorder %s17, 0
      %p106 = por %p104, %p105
      %p107 = scmp.ne.s32.totalorder %s93, %s94
      %p108 = scmp.eq.s32.totalorder %s18, 1
      %p109 = por %p107, %p108
      %p111 = scmp.ne.s32.totalorder %s94, %s110
      %p112 = scmp.eq.s32.totalorder %s18, 0
      %p113 = por %p111, %p112
      %p114 = scmp.le.s32.totalorder 1, %s12
      %p115 = scmp.lt.s32.totalorder %s12, 3
      %p116 = pnand %p114, %p115
      %p117 = pneg %p116
      // Predicated region
      $region9: #{mff_forward.5} parent=5 // pred_check
        _
      $region10: #{mff_forward.5} parent=5 // pred_check_branch
        %119 = sbr.rel (%p116) target = $region12
      $region11: #{mff_forward.5} parent=5 // pred_region
        %s120 = ssub.s32 %s12, 1
        // Predicated region
        $region13: #{mff_forward.5} parent=11 // pred_check
          %p121 = pneg %p59
        $region14: #{mff_forward.5} parent=11 // pred_check_branch
          %123 = sbr.rel (%p121) target = $region16
        $region15: #{mff_forward.5} parent=11 // pred_region
          _
        $region16: #{mff_forward.5} parent=11 // pred_fallthru
          _
        // Predicated region
        $region17: #{mff_forward.5} parent=11 // pred_check
          %p124 = pneg %p80
        $region18: #{mff_forward.5} parent=11 // pred_check_branch
          %126 = sbr.rel (%p124) target = $region20
        $region19: #{mff_forward.5} parent=11 // pred_region
          _
        $region20: #{mff_forward.5} parent=11 // pred_fallthru
          _
      $region12: #{mff_forward.5} parent=5 // pred_fallthru
        _
      %p127 = scmp.lt.s32.totalorder %s12, 2
      // Predicated region
      $region21: #{mff_forward.5} parent=5 // pred_check
        %p128 = pneg %p127
      $region22: #{mff_forward.5} parent=5 // pred_check_branch
        %130 = sbr.rel (%p128) target = $region24
      $region23: #{mff_forward.5} parent=5 // pred_region
        // Predicated region
        $region25: #{mff_forward.5} parent=23 // pred_check
          %p131 = pneg %p32
        $region26: #{mff_forward.5} parent=23 // pred_check_branch
          %133 = sbr.rel (%p131) target = $region28
        $region27: #{mff_forward.5} parent=23 // pred_region
          %s134 = smul.u32 8, %s12
          %p135 = scmp.lt.s32.totalorder %s134, 15
          %s136 = scalar_select %p135, %s134, 15
          %s137 = smul.addr %s136, 9
          %s138 = smul.addr %s137, 4
          %s139 = scalar_lea.vmem %s0, %s138
          %s140 = smul.u32 8, %s12
        $region28: #{mff_forward.5} parent=23 // pred_fallthru
          _
      $region24: #{mff_forward.5} parent=5 // pred_fallthru
        _
      %p141 = scmp.le.s32.totalorder 1, %s12
      %p142 = scmp.lt.s32.totalorder %s12, 3
      %p143 = pnand %p141, %p142
      %p144 = pneg %p143
      // Predicated region
      $region29: #{mff_forward.5} parent=5 // pred_check
        _
      $region30: #{mff_forward.5} parent=5 // pred_check_branch
        %146 = sbr.rel (%p143) target = $region32
      $region31: #{mff_forward.5} parent=5 // pred_region
        %s147 = ssub.s32 %s12, 1
        %s148 = smul.u32 8, %s17
        %p149 = scmp.lt.s32.totalorder %s148, 15
        %s150 = scalar_select %p149, %s148, 15
        %s151 = smul.addr %s150, 9
        %s152 = smul.addr %s151, 4
        %s153 = scalar_lea.vmem %s0, %s152
        %p154 = pneg %p38
        %p155 = pneg %p35
        %p156 = pneg %p59
        %p157 = pneg %p56
        %p158 = pneg %p80
        %p159 = pneg %p77
        %p160 = pneg %p106
        %p161 = pneg %p103
        %s162 = sand.u32 %s93, 1
        %s163 = scalar_lea.sflag [#allocation3], %s162
        %s164 = sand.u32 %s93, 1
        %s165 = smul.addr %s164, 64
        %s166 = scalar_lea.vmem [#allocation2], %s165
        %s167 = smul.u32 8, %s17
        %p168 = scmp.lt.s32.totalorder %s167, 15
        %s169 = scalar_select %p168, %s167, 15
        %s170 = smul.addr %s169, 9
        %s171 = smul.addr %s170, 4
        %s172 = scalar_lea.vmem %s0, %s171
        %s173 = smul.u32 8, %s17
        %s174 = smul.u32 8, %s17
        %v176 = vld [vmem:[%s172] sm:$0xff]
        %v177 = vld [vmem:[%s172 + $0x8] sm:$0xff]
        %v178 = vld [vmem:[%s172 + $0x10] sm:$0xff]
        %v179 = vld [vmem:[%s172 + $0x18] sm:$0xff]
        %v180 = vld [vmem:[%s172 + $0x20] sm:$0xf]
        %v181 = vld [vmem:[%s172 + $0x24] sm:$0xff]
        %v182 = vld [vmem:[%s172 + $0x2c] sm:$0xff]
        %v183 = vld [vmem:[%s172 + $0x34] sm:$0xff]
        %v184 = vld [vmem:[%s172 + $0x3c] sm:$0xff]
        %v185 = vld [vmem:[%s172 + $0x44] sm:$0xf]
        %v186 = vld [vmem:[%s172 + $0x48] sm:$0xff]
        %v187 = vld [vmem:[%s172 + $0x50] sm:$0xff]
        %v188 = vld [vmem:[%s172 + $0x58] sm:$0xff]
        %v189 = vld [vmem:[%s172 + $0x60] sm:$0xff]
        %v190 = vld [vmem:[%s172 + $0x68] sm:$0xf]
        %v191 = vld [vmem:[%s172 + $0x6c] sm:$0xff]
        %v192 = vld [vmem:[%s172 + $0x74] sm:$0xff]
        %v193 = vld [vmem:[%s172 + $0x7c] sm:$0xff]
        %v194 = vld [vmem:[%s172 + $0x84] sm:$0xff]
        %v195 = vld [vmem:[%s172 + $0x8c] sm:$0xf]
        %v196 = vld [vmem:[%s172 + $0x90] sm:$0xff]
        %v197 = vld [vmem:[%s172 + $0x98] sm:$0xff]
        %v198 = vld [vmem:[%s172 + $0xa0] sm:$0xff]
        %v199 = vld [vmem:[%s172 + $0xa8] sm:$0xff]
        %v200 = vld [vmem:[%s172 + $0xb0] sm:$0xf]
        %v201 = vld [vmem:[%s172 + $0xb4] sm:$0xff]
        %v202 = vld [vmem:[%s172 + $0xbc] sm:$0xff]
        %v203 = vld [vmem:[%s172 + $0xc4] sm:$0xff]
        %v204 = vld [vmem:[%s172 + $0xcc] sm:$0xff]
        %v205 = vld [vmem:[%s172 + $0xd4] sm:$0xf]
        %v206 = vld [vmem:[%s172 + $0xd8] sm:$0xff]
        %v207 = vld [vmem:[%s172 + $0xe0] sm:$0xff]
        %v208 = vld [vmem:[%s172 + $0xe8] sm:$0xff]
        %v209 = vld [vmem:[%s172 + $0xf0] sm:$0xff]
        %v210 = vld [vmem:[%s172 + $0xf8] sm:$0xf]
        %v211 = vld [vmem:[%s172 + $0xfc] sm:$0xff]
        %v212 = vld [vmem:[%s172 + $0x104] sm:$0xff]
        %v213 = vld [vmem:[%s172 + $0x10c] sm:$0xff]
        %v214 = vld [vmem:[%s172 + $0x114] sm:$0xff]
        %v215 = vld [vmem:[%s172 + $0x11c] sm:$0xf]
        %v216 = vld [vmem:[%s1] sm:$0xf]
        %v217 = vld [vmem:[%s1 + $0x4] sm:$0xf]
        %v218 = vld [vmem:[%s1 + $0x8] sm:$0xf]
        %v219 = vld [vmem:[%s1 + $0xc] sm:$0xf]
        %v220 = vld [vmem:[%s1 + $0x10] sm:$0xf]
        %v221 = vld [vmem:[%s1 + $0x14] sm:$0xf]
        %v222 = vld [vmem:[%s1 + $0x18] sm:$0xf]
        %v223 = vld [vmem:[%s1 + $0x1c] sm:$0xf]
        %v224 = vld [vmem:[%s1 + $0x20] sm:$0xf]
        %v225 = vld [vmem:[%s1 + $0x24] sm:$0xf]
        %v226 = vld [vmem:[%s1 + $0x28] sm:$0xf]
        %v227 = vld [vmem:[%s1 + $0x2c] sm:$0xf]
        %v228 = vld [vmem:[%s1 + $0x30] sm:$0xf]
        %v229 = vld [vmem:[%s1 + $0x34] sm:$0xf]
        %v230 = vld [vmem:[%s1 + $0x38] sm:$0xf]
        %v231 = vld [vmem:[%s1 + $0x3c] sm:$0xf]
        %v232 = vld [vmem:[%s1 + $0x40] sm:$0xf]
        %v233 = vld [vmem:[%s1 + $0x44] sm:$0xf]
        %v234 = vld [vmem:[%s1 + $0x48] sm:$0xf]
        %v235 = vld [vmem:[%s1 + $0x4c] sm:$0xf]
        %v236 = vld [vmem:[%s1 + $0x50] sm:$0xf]
        %v237 = vld [vmem:[%s1 + $0x54] sm:$0xf]
        %v238 = vld [vmem:[%s1 + $0x58] sm:$0xf]
        %v239 = vld [vmem:[%s1 + $0x5c] sm:$0xf]
        %v240 = vld [vmem:[%s1 + $0x60] sm:$0xf]
        %v241 = vld [vmem:[%s1 + $0x64] sm:$0xf]
        %v242 = vld [vmem:[%s1 + $0x68] sm:$0xf]
        %v243 = vld [vmem:[%s1 + $0x6c] sm:$0xf]
        %v244 = vld [vmem:[%s1 + $0x70] sm:$0xf]
        %v245 = vld [vmem:[%s1 + $0x74] sm:$0xf]
        %v246 = vld [vmem:[%s1 + $0x78] sm:$0xf]
        %v247 = vld [vmem:[%s1 + $0x7c] sm:$0xf]
        %v248 = vld [vmem:[%s1 + $0x80] sm:$0xf]
        %v249 = vld [vmem:[%s1 + $0x84] sm:$0xf]
        %v250 = vld [vmem:[%s1 + $0x88] sm:$0xf]
        %v251 = vld [vmem:[%s1 + $0x8c] sm:$0xf]
        %v252 = vld [vmem:[%s1 + $0x90] sm:$0xf]
        %v253 = vld [vmem:[%s1 + $0x94] sm:$0xf]
        %v254 = vld [vmem:[%s1 + $0x98] sm:$0xf]
        %v255 = vld [vmem:[%s1 + $0x9c] sm:$0xf]
        %v256 = vld [vmem:[%s1 + $0xa0] sm:$0xf]
        %v257 = vld [vmem:[%s1 + $0xa4] sm:$0xf]
        %v258 = vld [vmem:[%s1 + $0xa8] sm:$0xf]
        %v259 = vld [vmem:[%s1 + $0xac] sm:$0xf]
        %v260 = vld [vmem:[%s1 + $0xb0] sm:$0xf]
        %v261 = vld [vmem:[%s1 + $0xb4] sm:$0xf]
        %v262 = vld [vmem:[%s1 + $0xb8] sm:$0xf]
        %v263 = vld [vmem:[%s1 + $0xbc] sm:$0xf]
        %v264 = vld [vmem:[%s1 + $0xc0] sm:$0xf]
        %v265 = vld [vmem:[%s1 + $0xc4] sm:$0xf]
        %v266 = vld [vmem:[%s1 + $0xc8] sm:$0xf]
        %v267 = vld [vmem:[%s1 + $0xcc] sm:$0xf]
        %v268 = vld [vmem:[%s1 + $0xd0] sm:$0xf]
        %v269 = vld [vmem:[%s1 + $0xd4] sm:$0xf]
        %v270 = vld [vmem:[%s1 + $0xd8] sm:$0xf]
        %v271 = vld [vmem:[%s1 + $0xdc] sm:$0xf]
        %v272 = vld [vmem:[%s1 + $0xe0] sm:$0xf]
        %v273 = vld [vmem:[%s1 + $0xe4] sm:$0xf]
        %v274 = vld [vmem:[%s1 + $0xe8] sm:$0xf]
        %v275 = vld [vmem:[%s1 + $0xec] sm:$0xf]
        %v276 = vld [vmem:[%s1 + $0xf0] sm:$0xf]
        %v277 = vld [vmem:[%s1 + $0xf4] sm:$0xf]
        %v278 = vld [vmem:[%s1 + $0xf8] sm:$0xf]
        %v279 = vld [vmem:[%s1 + $0xfc] sm:$0xf]
        %v280 = vld [vmem:[%s1 + $0x100] sm:$0xf]
        %v281 = vld [vmem:[%s1 + $0x104] sm:$0xf]
        %v282 = vld [vmem:[%s1 + $0x108] sm:$0xf]
        %v283 = vld [vmem:[%s1 + $0x10c] sm:$0xf]
        %v284 = vld [vmem:[%s1 + $0x110] sm:$0xf]
        %v285 = vld [vmem:[%s1 + $0x114] sm:$0xf]
        %v286 = vld [vmem:[%s1 + $0x118] sm:$0xf]
        %v287 = vld [vmem:[%s1 + $0x11c] sm:$0xf]
        %v288 = vld [vmem:[%s1 + $0x120] sm:$0xf]
        %v289 = vld [vmem:[%s1 + $0x124] sm:$0xf]
        %v290 = vld [vmem:[%s1 + $0x128] sm:$0xf]
        %v291 = vld [vmem:[%s1 + $0x12c] sm:$0xf]
        %v292 = vld [vmem:[%s1 + $0x130] sm:$0xf]
        %v293 = vld [vmem:[%s1 + $0x134] sm:$0xf]
        %v294 = vld [vmem:[%s1 + $0x138] sm:$0xf]
        %v295 = vld [vmem:[%s1 + $0x13c] sm:$0xf]
        %v296 = vld [vmem:[%s1 + $0x140] sm:$0xf]
        %v297 = vld [vmem:[%s1 + $0x144] sm:$0xf]
        %v298 = vld [vmem:[%s1 + $0x148] sm:$0xf]
        %v299 = vld [vmem:[%s1 + $0x14c] sm:$0xf]
        %v300 = vld [vmem:[%s1 + $0x150] sm:$0xf]
        %v301 = vld [vmem:[%s1 + $0x154] sm:$0xf]
        %v302 = vld [vmem:[%s1 + $0x158] sm:$0xf]
        %v303 = vld [vmem:[%s1 + $0x15c] sm:$0xf]
        %v304 = vld [vmem:[%s1 + $0x160] sm:$0xf]
        %v305 = vld [vmem:[%s1 + $0x164] sm:$0xf]
        %v306 = vld [vmem:[%s1 + $0x168] sm:$0xf]
        %v307 = vld [vmem:[%s1 + $0x16c] sm:$0xf]
        %v308 = vld [vmem:[%s1 + $0x170] sm:$0xf]
        %v309 = vld [vmem:[%s1 + $0x174] sm:$0xf]
        %v310 = vld [vmem:[%s1 + $0x178] sm:$0xf]
        %v311 = vld [vmem:[%s1 + $0x17c] sm:$0xf]
        %v312 = vld [vmem:[%s1 + $0x180] sm:$0xf]
        %v313 = vld [vmem:[%s1 + $0x184] sm:$0xf]
        %v314 = vld [vmem:[%s1 + $0x188] sm:$0xf]
        %v315 = vld [vmem:[%s1 + $0x18c] sm:$0xf]
        %v316 = vld [vmem:[%s1 + $0x190] sm:$0xf]
        %v317 = vld [vmem:[%s1 + $0x194] sm:$0xf]
        %v318 = vld [vmem:[%s1 + $0x198] sm:$0xf]
        %v319 = vld [vmem:[%s1 + $0x19c] sm:$0xf]
        %v320 = vld [vmem:[%s1 + $0x1a0] sm:$0xf]
        %v321 = vld [vmem:[%s1 + $0x1a4] sm:$0xf]
        %v322 = vld [vmem:[%s1 + $0x1a8] sm:$0xf]
        %v323 = vld [vmem:[%s1 + $0x1ac] sm:$0xf]
        %v324 = vld [vmem:[%s1 + $0x1b0] sm:$0xf]
        %v325 = vld [vmem:[%s1 + $0x1b4] sm:$0xf]
        %v326 = vld [vmem:[%s1 + $0x1b8] sm:$0xf]
        %v327 = vld [vmem:[%s1 + $0x1bc] sm:$0xf]
        %v328 = vld [vmem:[%s1 + $0x1c0] sm:$0xf]
        %v329 = vld [vmem:[%s1 + $0x1c4] sm:$0xf]
        %v330 = vld [vmem:[%s1 + $0x1c8] sm:$0xf]
        %v331 = vld [vmem:[%s1 + $0x1cc] sm:$0xf]
        %v332 = vld [vmem:[%s1 + $0x1d0] sm:$0xf]
        %v333 = vld [vmem:[%s1 + $0x1d4] sm:$0xf]
        %v334 = vld [vmem:[%s1 + $0x1d8] sm:$0xf]
        %v335 = vld [vmem:[%s1 + $0x1dc] sm:$0xf]
        %v336 = vld [vmem:[%s1 + $0x1e0] sm:$0xf]
        %v337 = vld [vmem:[%s1 + $0x1e4] sm:$0xf]
        %v338 = vld [vmem:[%s1 + $0x1e8] sm:$0xf]
        %v339 = vld [vmem:[%s1 + $0x1ec] sm:$0xf]
        %v340 = vld [vmem:[%s1 + $0x1f0] sm:$0xf]
        %v341 = vld [vmem:[%s1 + $0x1f4] sm:$0xf]
        %v342 = vld [vmem:[%s1 + $0x1f8] sm:$0xf]
        %v343 = vld [vmem:[%s1 + $0x1fc] sm:$0xf]
        %v344 = vld [vmem:[%s1 + $0x200] sm:$0xf]
        %v345 = vld [vmem:[%s1 + $0x204] sm:$0xf]
        %v346 = vld [vmem:[%s1 + $0x208] sm:$0xf]
        %v347 = vld [vmem:[%s1 + $0x20c] sm:$0xf]
        %v348 = vld [vmem:[%s1 + $0x210] sm:$0xf]
        %v349 = vld [vmem:[%s1 + $0x214] sm:$0xf]
        %v350 = vld [vmem:[%s1 + $0x218] sm:$0xf]
        %v351 = vld [vmem:[%s1 + $0x21c] sm:$0xf]
        %v352 = vld [vmem:[%s1 + $0x220] sm:$0xf]
        %v353 = vld [vmem:[%s1 + $0x224] sm:$0xf]
        %v354 = vld [vmem:[%s1 + $0x228] sm:$0xf]
        %v355 = vld [vmem:[%s1 + $0x22c] sm:$0xf]
        %v356 = vld [vmem:[%s1 + $0x230] sm:$0xf]
        %v357 = vld [vmem:[%s1 + $0x234] sm:$0xf]
        %v358 = vld [vmem:[%s1 + $0x238] sm:$0xf]
        %v359 = vld [vmem:[%s1 + $0x23c] sm:$0xf]
        %v360 = vld [vmem:[%s2] sm:$0x1]
        %v362 = vlaneseq
        %v363 = vshrl.u32 %v362, 7
        %v364 = vsub.s32 0, %v363
        %v365 = vrot.slane %v360, %v364
        %v407 = vunpack.c.l.b16 %v176
        %v408 = vunpack.c.h.b16 %v176
        %v409 = vunpack.c.l.b16 %v177
        %v410 = vunpack.c.h.b16 %v177
        %v411 = vunpack.c.l.b16 %v178
        %v412 = vunpack.c.h.b16 %v178
        %v413 = vunpack.c.l.b16 %v179
        %v414 = vunpack.c.h.b16 %v179
        %v415 = vunpack.c.l.b16 %v180
        %v416 = vunpack.c.l.b16 %v181
        %v417 = vunpack.c.h.b16 %v181
        %v418 = vunpack.c.l.b16 %v182
        %v419 = vunpack.c.h.b16 %v182
        %v420 = vunpack.c.l.b16 %v183
        %v421 = vunpack.c.h.b16 %v183
        %v422 = vunpack.c.l.b16 %v184
        %v423 = vunpack.c.h.b16 %v184
        %v424 = vunpack.c.l.b16 %v185
        %v425 = vunpack.c.l.b16 %v186
        %v426 = vunpack.c.h.b16 %v186
        %v427 = vunpack.c.l.b16 %v187
        %v428 = vunpack.c.h.b16 %v187
        %v429 = vunpack.c.l.b16 %v188
        %v430 = vunpack.c.h.b16 %v188
        %v431 = vunpack.c.l.b16 %v189
        %v432 = vunpack.c.h.b16 %v189
        %v433 = vunpack.c.l.b16 %v190
        %v434 = vunpack.c.l.b16 %v191
        %v435 = vunpack.c.h.b16 %v191
        %v436 = vunpack.c.l.b16 %v192
        %v437 = vunpack.c.h.b16 %v192
        %v438 = vunpack.c.l.b16 %v193
        %v439 = vunpack.c.h.b16 %v193
        %v440 = vunpack.c.l.b16 %v194
        %v441 = vunpack.c.h.b16 %v194
        %v442 = vunpack.c.l.b16 %v195
        %v443 = vunpack.c.l.b16 %v196
        %v444 = vunpack.c.h.b16 %v196
        %v445 = vunpack.c.l.b16 %v197
        %v446 = vunpack.c.h.b16 %v197
        %v447 = vunpack.c.l.b16 %v198
        %v448 = vunpack.c.h.b16 %v198
        %v449 = vunpack.c.l.b16 %v199
        %v450 = vunpack.c.h.b16 %v199
        %v451 = vunpack.c.l.b16 %v200
        %v452 = vunpack.c.l.b16 %v201
        %v453 = vunpack.c.h.b16 %v201
        %v454 = vunpack.c.l.b16 %v202
        %v455 = vunpack.c.h.b16 %v202
        %v456 = vunpack.c.l.b16 %v203
        %v457 = vunpack.c.h.b16 %v203
        %v458 = vunpack.c.l.b16 %v204
        %v459 = vunpack.c.h.b16 %v204
        %v460 = vunpack.c.l.b16 %v205
        %v461 = vunpack.c.l.b16 %v206
        %v462 = vunpack.c.h.b16 %v206
        %v463 = vunpack.c.l.b16 %v207
        %v464 = vunpack.c.h.b16 %v207
        %v465 = vunpack.c.l.b16 %v208
        %v466 = vunpack.c.h.b16 %v208
        %v467 = vunpack.c.l.b16 %v209
        %v468 = vunpack.c.h.b16 %v209
        %v469 = vunpack.c.l.b16 %v210
        %v470 = vunpack.c.l.b16 %v211
        %v471 = vunpack.c.h.b16 %v211
        %v472 = vunpack.c.l.b16 %v212
        %v473 = vunpack.c.h.b16 %v212
        %v474 = vunpack.c.l.b16 %v213
        %v475 = vunpack.c.h.b16 %v213
        %v476 = vunpack.c.l.b16 %v214
        %v477 = vunpack.c.h.b16 %v214
        %v478 = vunpack.c.l.b16 %v215
        %v479 = vpack.c.b16 %v416, %v407
        %v480 = vpack.c.b16 %v417, %v408
        %v481 = vpack.c.b16 %v418, %v409
        %v482 = vpack.c.b16 %v419, %v410
        %v483 = vpack.c.b16 %v420, %v411
        %v484 = vpack.c.b16 %v421, %v412
        %v485 = vpack.c.b16 %v422, %v413
        %v486 = vpack.c.b16 %v423, %v414
        %v487 = vpack.c.b16 %v424, %v415
        %v488 = vpack.c.b16 %v434, %v425
        %v489 = vpack.c.b16 %v435, %v426
        %v490 = vpack.c.b16 %v436, %v427
        %v491 = vpack.c.b16 %v437, %v428
        %v492 = vpack.c.b16 %v438, %v429
        %v493 = vpack.c.b16 %v439, %v430
        %v494 = vpack.c.b16 %v440, %v431
        %v495 = vpack.c.b16 %v441, %v432
        %v496 = vpack.c.b16 %v442, %v433
        %v497 = vpack.c.b16 %v452, %v443
        %v498 = vpack.c.b16 %v453, %v444
        %v499 = vpack.c.b16 %v454, %v445
        %v500 = vpack.c.b16 %v455, %v446
        %v501 = vpack.c.b16 %v456, %v447
        %v502 = vpack.c.b16 %v457, %v448
        %v503 = vpack.c.b16 %v458, %v449
        %v504 = vpack.c.b16 %v459, %v450
        %v505 = vpack.c.b16 %v460, %v451
        %v506 = vpack.c.b16 %v470, %v461
        %v507 = vpack.c.b16 %v471, %v462
        %v508 = vpack.c.b16 %v472, %v463
        %v509 = vpack.c.b16 %v473, %v464
        %v510 = vpack.c.b16 %v474, %v465
        %v511 = vpack.c.b16 %v475, %v466
        %v512 = vpack.c.b16 %v476, %v467
        %v513 = vpack.c.b16 %v477, %v468
        %v514 = vpack.c.b16 %v478, %v469
        %v695 = vunpack.c.l.b16 %v216
        %v696 = vunpack.c.l.b16 %v217
        %v697 = vunpack.c.l.b16 %v218
        %v698 = vunpack.c.l.b16 %v219
        %v699 = vunpack.c.l.b16 %v220
        %v700 = vunpack.c.l.b16 %v221
        %v701 = vunpack.c.l.b16 %v222
        %v702 = vunpack.c.l.b16 %v223
        %v703 = vunpack.c.l.b16 %v224
        %v704 = vunpack.c.l.b16 %v225
        %v705 = vunpack.c.l.b16 %v226
        %v706 = vunpack.c.l.b16 %v227
        %v707 = vunpack.c.l.b16 %v228
        %v708 = vunpack.c.l.b16 %v229
        %v709 = vunpack.c.l.b16 %v230
        %v710 = vunpack.c.l.b16 %v231
        %v711 = vunpack.c.l.b16 %v232
        %v712 = vunpack.c.l.b16 %v233
        %v713 = vunpack.c.l.b16 %v234
        %v714 = vunpack.c.l.b16 %v235
        %v715 = vunpack.c.l.b16 %v236
        %v716 = vunpack.c.l.b16 %v237
        %v717 = vunpack.c.l.b16 %v238
        %v718 = vunpack.c.l.b16 %v239
        %v719 = vunpack.c.l.b16 %v240
        %v720 = vunpack.c.l.b16 %v241
        %v721 = vunpack.c.l.b16 %v242
        %v722 = vunpack.c.l.b16 %v243
        %v723 = vunpack.c.l.b16 %v244
        %v724 = vunpack.c.l.b16 %v245
        %v725 = vunpack.c.l.b16 %v246
        %v726 = vunpack.c.l.b16 %v247
        %v727 = vunpack.c.l.b16 %v248
        %v728 = vunpack.c.l.b16 %v249
        %v729 = vunpack.c.l.b16 %v250
        %v730 = vunpack.c.l.b16 %v251
        %v731 = vunpack.c.l.b16 %v252
        %v732 = vunpack.c.l.b16 %v253
        %v733 = vunpack.c.l.b16 %v254
        %v734 = vunpack.c.l.b16 %v255
        %v735 = vunpack.c.l.b16 %v256
        %v736 = vunpack.c.l.b16 %v257
        %v737 = vunpack.c.l.b16 %v258
        %v738 = vunpack.c.l.b16 %v259
        %v739 = vunpack.c.l.b16 %v260
        %v740 = vunpack.c.l.b16 %v261
        %v741 = vunpack.c.l.b16 %v262
        %v742 = vunpack.c.l.b16 %v263
        %v743 = vunpack.c.l.b16 %v264
        %v744 = vunpack.c.l.b16 %v265
        %v745 = vunpack.c.l.b16 %v266
        %v746 = vunpack.c.l.b16 %v267
        %v747 = vunpack.c.l.b16 %v268
        %v748 = vunpack.c.l.b16 %v269
        %v749 = vunpack.c.l.b16 %v270
        %v750 = vunpack.c.l.b16 %v271
        %v751 = vunpack.c.l.b16 %v272
        %v752 = vunpack.c.l.b16 %v273
        %v753 = vunpack.c.l.b16 %v274
        %v754 = vunpack.c.l.b16 %v275
        %v755 = vunpack.c.l.b16 %v276
        %v756 = vunpack.c.l.b16 %v277
        %v757 = vunpack.c.l.b16 %v278
        %v758 = vunpack.c.l.b16 %v279
        %v759 = vunpack.c.l.b16 %v280
        %v760 = vunpack.c.l.b16 %v281
        %v761 = vunpack.c.l.b16 %v282
        %v762 = vunpack.c.l.b16 %v283
        %v763 = vunpack.c.l.b16 %v284
        %v764 = vunpack.c.l.b16 %v285
        %v765 = vunpack.c.l.b16 %v286
        %v766 = vunpack.c.l.b16 %v287
        %v767 = vunpack.c.l.b16 %v288
        %v768 = vunpack.c.l.b16 %v289
        %v769 = vunpack.c.l.b16 %v290
        %v770 = vunpack.c.l.b16 %v291
        %v771 = vunpack.c.l.b16 %v292
        %v772 = vunpack.c.l.b16 %v293
        %v773 = vunpack.c.l.b16 %v294
        %v774 = vunpack.c.l.b16 %v295
        %v775 = vunpack.c.l.b16 %v296
        %v776 = vunpack.c.l.b16 %v297
        %v777 = vunpack.c.l.b16 %v298
        %v778 = vunpack.c.l.b16 %v299
        %v779 = vunpack.c.l.b16 %v300
        %v780 = vunpack.c.l.b16 %v301
        %v781 = vunpack.c.l.b16 %v302
        %v782 = vunpack.c.l.b16 %v303
        %v783 = vunpack.c.l.b16 %v304
        %v784 = vunpack.c.l.b16 %v305
        %v785 = vunpack.c.l.b16 %v306
        %v786 = vunpack.c.l.b16 %v307
        %v787 = vunpack.c.l.b16 %v308
        %v788 = vunpack.c.l.b16 %v309
        %v789 = vunpack.c.l.b16 %v310
        %v790 = vunpack.c.l.b16 %v311
        %v791 = vunpack.c.l.b16 %v312
        %v792 = vunpack.c.l.b16 %v313
        %v793 = vunpack.c.l.b16 %v314
        %v794 = vunpack.c.l.b16 %v315
        %v795 = vunpack.c.l.b16 %v316
        %v796 = vunpack.c.l.b16 %v317
        %v797 = vunpack.c.l.b16 %v318
        %v798 = vunpack.c.l.b16 %v319
        %v799 = vunpack.c.l.b16 %v320
        %v800 = vunpack.c.l.b16 %v321
        %v801 = vunpack.c.l.b16 %v322
        %v802 = vunpack.c.l.b16 %v323
        %v803 = vunpack.c.l.b16 %v324
        %v804 = vunpack.c.l.b16 %v325
        %v805 = vunpack.c.l.b16 %v326
        %v806 = vunpack.c.l.b16 %v327
        %v807 = vunpack.c.l.b16 %v328
        %v808 = vunpack.c.l.b16 %v329
        %v809 = vunpack.c.l.b16 %v330
        %v810 = vunpack.c.l.b16 %v331
        %v811 = vunpack.c.l.b16 %v332
        %v812 = vunpack.c.l.b16 %v333
        %v813 = vunpack.c.l.b16 %v334
        %v814 = vunpack.c.l.b16 %v335
        %v815 = vunpack.c.l.b16 %v336
        %v816 = vunpack.c.l.b16 %v337
        %v817 = vunpack.c.l.b16 %v338
        %v818 = vunpack.c.l.b16 %v339
        %v819 = vunpack.c.l.b16 %v340
        %v820 = vunpack.c.l.b16 %v341
        %v821 = vunpack.c.l.b16 %v342
        %v822 = vunpack.c.l.b16 %v343
        %v823 = vunpack.c.l.b16 %v344
        %v824 = vunpack.c.l.b16 %v345
        %v825 = vunpack.c.l.b16 %v346
        %v826 = vunpack.c.l.b16 %v347
        %v827 = vunpack.c.l.b16 %v348
        %v828 = vunpack.c.l.b16 %v349
        %v829 = vunpack.c.l.b16 %v350
        %v830 = vunpack.c.l.b16 %v351
        %v831 = vunpack.c.l.b16 %v352
        %v832 = vunpack.c.l.b16 %v353
        %v833 = vunpack.c.l.b16 %v354
        %v834 = vunpack.c.l.b16 %v355
        %v835 = vunpack.c.l.b16 %v356
        %v836 = vunpack.c.l.b16 %v357
        %v837 = vunpack.c.l.b16 %v358
        %v838 = vunpack.c.l.b16 %v359
        %v839 = vpack.c.b16 %v696, %v695
        %v840 = vpack.c.b16 %v698, %v697
        %v841 = vpack.c.b16 %v700, %v699
        %v842 = vpack.c.b16 %v702, %v701
        %v843 = vpack.c.b16 %v704, %v703
        %v844 = vpack.c.b16 %v706, %v705
        %v845 = vpack.c.b16 %v708, %v707
        %v846 = vpack.c.b16 %v710, %v709
        %v847 = vpack.c.b16 %v712, %v711
        %v848 = vpack.c.b16 %v714, %v713
        %v849 = vpack.c.b16 %v716, %v715
        %v850 = vpack.c.b16 %v718, %v717
        %v851 = vpack.c.b16 %v720, %v719
        %v852 = vpack.c.b16 %v722, %v721
        %v853 = vpack.c.b16 %v724, %v723
        %v854 = vpack.c.b16 %v726, %v725
        %v855 = vpack.c.b16 %v728, %v727
        %v856 = vpack.c.b16 %v730, %v729
        %v857 = vpack.c.b16 %v732, %v731
        %v858 = vpack.c.b16 %v734, %v733
        %v859 = vpack.c.b16 %v736, %v735
        %v860 = vpack.c.b16 %v738, %v737
        %v861 = vpack.c.b16 %v740, %v739
        %v862 = vpack.c.b16 %v742, %v741
        %v863 = vpack.c.b16 %v744, %v743
        %v864 = vpack.c.b16 %v746, %v745
        %v865 = vpack.c.b16 %v748, %v747
        %v866 = vpack.c.b16 %v750, %v749
        %v867 = vpack.c.b16 %v752, %v751
        %v868 = vpack.c.b16 %v754, %v753
        %v869 = vpack.c.b16 %v756, %v755
        %v870 = vpack.c.b16 %v758, %v757
        %v871 = vpack.c.b16 %v760, %v759
        %v872 = vpack.c.b16 %v762, %v761
        %v873 = vpack.c.b16 %v764, %v763
        %v874 = vpack.c.b16 %v766, %v765
        %v875 = vpack.c.b16 %v768, %v767
        %v876 = vpack.c.b16 %v770, %v769
        %v877 = vpack.c.b16 %v772, %v771
        %v878 = vpack.c.b16 %v774, %v773
        %v879 = vpack.c.b16 %v776, %v775
        %v880 = vpack.c.b16 %v778, %v777
        %v881 = vpack.c.b16 %v780, %v779
        %v882 = vpack.c.b16 %v782, %v781
        %v883 = vpack.c.b16 %v784, %v783
        %v884 = vpack.c.b16 %v786, %v785
        %v885 = vpack.c.b16 %v788, %v787
        %v886 = vpack.c.b16 %v790, %v789
        %v887 = vpack.c.b16 %v792, %v791
        %v888 = vpack.c.b16 %v794, %v793
        %v889 = vpack.c.b16 %v796, %v795
        %v890 = vpack.c.b16 %v798, %v797
        %v891 = vpack.c.b16 %v800, %v799
        %v892 = vpack.c.b16 %v802, %v801
        %v893 = vpack.c.b16 %v804, %v803
        %v894 = vpack.c.b16 %v806, %v805
        %v895 = vpack.c.b16 %v808, %v807
        %v896 = vpack.c.b16 %v810, %v809
        %v897 = vpack.c.b16 %v812, %v811
        %v898 = vpack.c.b16 %v814, %v813
        %v899 = vpack.c.b16 %v816, %v815
        %v900 = vpack.c.b16 %v818, %v817
        %v901 = vpack.c.b16 %v820, %v819
        %v902 = vpack.c.b16 %v822, %v821
        %v903 = vpack.c.b16 %v824, %v823
        %v904 = vpack.c.b16 %v826, %v825
        %v905 = vpack.c.b16 %v828, %v827
        %v906 = vpack.c.b16 %v830, %v829
        %v907 = vpack.c.b16 %v832, %v831
        %v908 = vpack.c.b16 %v834, %v833
        %v909 = vpack.c.b16 %v836, %v835
        %v910 = vpack.c.b16 %v838, %v837
        %983 = vmatprep.subr.bf16.mxu0 0
        %984 = vmatpush1.bf16.msra.mxu0 %v846
        %985 = vmatprep.subr.bf16.mxu0 0
        %986 = vmatpush1.bf16.msra.mxu0 %v845
        %987 = vmatprep.subr.bf16.mxu0 0
        %988 = vmatpush1.bf16.msra.mxu0 %v844
        %989 = vmatprep.subr.bf16.mxu0 0
        %990 = vmatpush1.bf16.msra.mxu0 %v843
        %991 = vmatprep.subr.bf16.mxu0 0
        %992 = vmatpush1.bf16.msra.mxu0 %v842
        %993 = vmatprep.subr.bf16.mxu0 0
        %994 = vmatpush1.bf16.msra.mxu0 %v841
        %995 = vmatprep.subr.bf16.mxu0 0
        %996 = vmatpush1.bf16.msra.mxu0 %v840
        %997 = vmatprep.subr.bf16.mxu0 0
        %998 = vmatpush1.bf16.msra.mxu0 %v839
        %999 = vmatprep.subr.bf16.mxu0 0
        %1000 = vmatpush2.bf16.msra.mxu0 %v854
        %1001 = vmatprep.subr.bf16.mxu0 0
        %1002 = vmatpush2.bf16.msra.mxu0 %v853
        %1003 = vmatprep.subr.bf16.mxu0 0
        %1004 = vmatpush2.bf16.msra.mxu0 %v852
        %1005 = vmatprep.subr.bf16.mxu0 0
        %1006 = vmatpush2.bf16.msra.mxu0 %v851
        %1007 = vmatprep.subr.bf16.mxu0 0
        %1008 = vmatpush2.bf16.msra.mxu0 %v850
        %1009 = vmatprep.subr.bf16.mxu0 0
        %1010 = vmatpush2.bf16.msra.mxu0 %v849
        %1011 = vmatprep.subr.bf16.mxu0 0
        %1012 = vmatpush2.bf16.msra.mxu0 %v848
        %1013 = vmatprep.subr.bf16.mxu0 0
        %1014 = vmatpush2.bf16.msra.mxu0 %v847
        %1015 = vmatprep.mubr.bf16.mxu0 %v480
        %1016 = vmatmul.mubr.bf16.gmra.mxu0 %v479
        %v1017 = vpop.f32.mrf.mxu0
        %v1018 = vadd.f32 %v365, %v1017
        %v1019 = vpop.f32.mrf.mxu0
        %v1020 = vpop.f32.mrf.mxu0
        %v1021 = vadd.f32 %v365, %v1020
        %v1022 = vpop.f32.mrf.mxu0
        %1023 = vmatprep.mubr.bf16.mxu0 %v489
        %1024 = vmatmul.mubr.bf16.gmra.mxu0 %v488
        %v1025 = vpop.f32.mrf.mxu0
        %v1026 = vadd.f32 %v365, %v1025
        %v1027 = vpop.f32.mrf.mxu0
        %v1028 = vpop.f32.mrf.mxu0
        %v1029 = vadd.f32 %v365, %v1028
        %v1030 = vpop.f32.mrf.mxu0
        %1031 = vmatprep.mubr.bf16.mxu0 %v498
        %1032 = vmatmul.mubr.bf16.gmra.mxu0 %v497
        %v1033 = vpop.f32.mrf.mxu0
        %v1034 = vadd.f32 %v365, %v1033
        %v1035 = vpop.f32.mrf.mxu0
        %v1036 = vpop.f32.mrf.mxu0
        %v1037 = vadd.f32 %v365, %v1036
        %v1038 = vpop.f32.mrf.mxu0
        %1039 = vmatprep.mubr.bf16.mxu0 %v507
        %1040 = vmatmul.mubr.bf16.gmra.mxu0 %v506
        %v1041 = vpop.f32.mrf.mxu0
        %v1042 = vadd.f32 %v365, %v1041
        %v1043 = vpop.f32.mrf.mxu0
        %v1044 = vpop.f32.mrf.mxu0
        %v1045 = vadd.f32 %v365, %v1044
        %v1046 = vpop.f32.mrf.mxu0
        %1047 = vdwg.mxu0
        %1048 = vmatprep.subr.bf16.mxu0 0
        %1049 = vmatpush1.bf16.msra.mxu0 %v862
        %1050 = vmatprep.subr.bf16.mxu0 0
        %1051 = vmatpush1.bf16.msra.mxu0 %v861
        %1052 = vmatprep.subr.bf16.mxu0 0
        %1053 = vmatpush1.bf16.msra.mxu0 %v860
        %1054 = vmatprep.subr.bf16.mxu0 0
        %1055 = vmatpush1.bf16.msra.mxu0 %v859
        %1056 = vmatprep.subr.bf16.mxu0 0
        %1057 = vmatpush1.bf16.msra.mxu0 %v858
        %1058 = vmatprep.subr.bf16.mxu0 0
        %1059 = vmatpush1.bf16.msra.mxu0 %v857
        %1060 = vmatprep.subr.bf16.mxu0 0
        %1061 = vmatpush1.bf16.msra.mxu0 %v856
        %1062 = vmatprep.subr.bf16.mxu0 0
        %1063 = vmatpush1.bf16.msra.mxu0 %v855
        %1064 = vmatprep.subr.bf16.mxu0 0
        %1065 = vmatpush2.bf16.msra.mxu0 %v870
        %1066 = vmatprep.subr.bf16.mxu0 0
        %1067 = vmatpush2.bf16.msra.mxu0 %v869
        %1068 = vmatprep.subr.bf16.mxu0 0
        %1069 = vmatpush2.bf16.msra.mxu0 %v868
        %1070 = vmatprep.subr.bf16.mxu0 0
        %1071 = vmatpush2.bf16.msra.mxu0 %v867
        %1072 = vmatprep.subr.bf16.mxu0 0
        %1073 = vmatpush2.bf16.msra.mxu0 %v866
        %1074 = vmatprep.subr.bf16.mxu0 0
        %1075 = vmatpush2.bf16.msra.mxu0 %v865
        %1076 = vmatprep.subr.bf16.mxu0 0
        %1077 = vmatpush2.bf16.msra.mxu0 %v864
        %1078 = vmatprep.subr.bf16.mxu0 0
        %1079 = vmatpush2.bf16.msra.mxu0 %v863
        %1080 = vmatprep.mubr.bf16.mxu0 %v482
        %1081 = vmatmul.mubr.bf16.gmra.mxu0 %v481
        %v1082 = vpop.f32.mrf.mxu0
        %v1083 = vadd.f32 %v1018, %v1082
        %v1084 = vpop.f32.mrf.mxu0
        %v1085 = vpop.f32.mrf.mxu0
        %v1086 = vadd.f32 %v1021, %v1085
        %v1087 = vpop.f32.mrf.mxu0
        %1088 = vmatprep.mubr.bf16.mxu0 %v491
        %1089 = vmatmul.mubr.bf16.gmra.mxu0 %v490
        %v1090 = vpop.f32.mrf.mxu0
        %v1091 = vadd.f32 %v1026, %v1090
        %v1092 = vpop.f32.mrf.mxu0
        %v1093 = vpop.f32.mrf.mxu0
        %v1094 = vadd.f32 %v1029, %v1093
        %v1095 = vpop.f32.mrf.mxu0
        %1096 = vmatprep.mubr.bf16.mxu0 %v500
        %1097 = vmatmul.mubr.bf16.gmra.mxu0 %v499
        %v1098 = vpop.f32.mrf.mxu0
        %v1099 = vadd.f32 %v1034, %v1098
        %v1100 = vpop.f32.mrf.mxu0
        %v1101 = vpop.f32.mrf.mxu0
        %v1102 = vadd.f32 %v1037, %v1101
        %v1103 = vpop.f32.mrf.mxu0
        %1104 = vmatprep.mubr.bf16.mxu0 %v509
        %1105 = vmatmul.mubr.bf16.gmra.mxu0 %v508
        %v1106 = vpop.f32.mrf.mxu0
        %v1107 = vadd.f32 %v1042, %v1106
        %v1108 = vpop.f32.mrf.mxu0
        %v1109 = vpop.f32.mrf.mxu0
        %v1110 = vadd.f32 %v1045, %v1109
        %v1111 = vpop.f32.mrf.mxu0
        %1112 = vdwg.mxu0
        %1113 = vmatprep.subr.bf16.mxu0 0
        %1114 = vmatpush1.bf16.msra.mxu0 %v878
        %1115 = vmatprep.subr.bf16.mxu0 0
        %1116 = vmatpush1.bf16.msra.mxu0 %v877
        %1117 = vmatprep.subr.bf16.mxu0 0
        %1118 = vmatpush1.bf16.msra.mxu0 %v876
        %1119 = vmatprep.subr.bf16.mxu0 0
        %1120 = vmatpush1.bf16.msra.mxu0 %v875
        %1121 = vmatprep.subr.bf16.mxu0 0
        %1122 = vmatpush1.bf16.msra.mxu0 %v874
        %1123 = vmatprep.subr.bf16.mxu0 0
        %1124 = vmatpush1.bf16.msra.mxu0 %v873
        %1125 = vmatprep.subr.bf16.mxu0 0
        %1126 = vmatpush1.bf16.msra.mxu0 %v872
        %1127 = vmatprep.subr.bf16.mxu0 0
        %1128 = vmatpush1.bf16.msra.mxu0 %v871
        %1129 = vmatprep.subr.bf16.mxu0 0
        %1130 = vmatpush2.bf16.msra.mxu0 %v886
        %1131 = vmatprep.subr.bf16.mxu0 0
        %1132 = vmatpush2.bf16.msra.mxu0 %v885
        %1133 = vmatprep.subr.bf16.mxu0 0
        %1134 = vmatpush2.bf16.msra.mxu0 %v884
        %1135 = vmatprep.subr.bf16.mxu0 0
        %1136 = vmatpush2.bf16.msra.mxu0 %v883
        %1137 = vmatprep.subr.bf16.mxu0 0
        %1138 = vmatpush2.bf16.msra.mxu0 %v882
        %1139 = vmatprep.subr.bf16.mxu0 0
        %1140 = vmatpush2.bf16.msra.mxu0 %v881
        %1141 = vmatprep.subr.bf16.mxu0 0
        %1142 = vmatpush2.bf16.msra.mxu0 %v880
        %1143 = vmatprep.subr.bf16.mxu0 0
        %1144 = vmatpush2.bf16.msra.mxu0 %v879
        %1145 = vmatprep.mubr.bf16.mxu0 %v484
        %1146 = vmatmul.mubr.bf16.gmra.mxu0 %v483
        %v1147 = vpop.f32.mrf.mxu0
        %v1148 = vadd.f32 %v1083, %v1147
        %v1149 = vpop.f32.mrf.mxu0
        %v1150 = vpop.f32.mrf.mxu0
        %v1151 = vadd.f32 %v1086, %v1150
        %v1152 = vpop.f32.mrf.mxu0
        %1153 = vmatprep.mubr.bf16.mxu0 %v493
        %1154 = vmatmul.mubr.bf16.gmra.mxu0 %v492
        %v1155 = vpop.f32.mrf.mxu0
        %v1156 = vadd.f32 %v1091, %v1155
        %v1157 = vpop.f32.mrf.mxu0
        %v1158 = vpop.f32.mrf.mxu0
        %v1159 = vadd.f32 %v1094, %v1158
        %v1160 = vpop.f32.mrf.mxu0
        %1161 = vmatprep.mubr.bf16.mxu0 %v502
        %1162 = vmatmul.mubr.bf16.gmra.mxu0 %v501
        %v1163 = vpop.f32.mrf.mxu0
        %v1164 = vadd.f32 %v1099, %v1163
        %v1165 = vpop.f32.mrf.mxu0
        %v1166 = vpop.f32.mrf.mxu0
        %v1167 = vadd.f32 %v1102, %v1166
        %v1168 = vpop.f32.mrf.mxu0
        %1169 = vmatprep.mubr.bf16.mxu0 %v511
        %1170 = vmatmul.mubr.bf16.gmra.mxu0 %v510
        %v1171 = vpop.f32.mrf.mxu0
        %v1172 = vadd.f32 %v1107, %v1171
        %v1173 = vpop.f32.mrf.mxu0
        %v1174 = vpop.f32.mrf.mxu0
        %v1175 = vadd.f32 %v1110, %v1174
        %v1176 = vpop.f32.mrf.mxu0
        %1177 = vdwg.mxu0
        %1178 = vmatprep.subr.bf16.mxu0 0
        %1179 = vmatpush1.bf16.msra.mxu0 %v894
        %1180 = vmatprep.subr.bf16.mxu0 0
        %1181 = vmatpush1.bf16.msra.mxu0 %v893
        %1182 = vmatprep.subr.bf16.mxu0 0
        %1183 = vmatpush1.bf16.msra.mxu0 %v892
        %1184 = vmatprep.subr.bf16.mxu0 0
        %1185 = vmatpush1.bf16.msra.mxu0 %v891
        %1186 = vmatprep.subr.bf16.mxu0 0
        %1187 = vmatpush1.bf16.msra.mxu0 %v890
        %1188 = vmatprep.subr.bf16.mxu0 0
        %1189 = vmatpush1.bf16.msra.mxu0 %v889
        %1190 = vmatprep.subr.bf16.mxu0 0
        %1191 = vmatpush1.bf16.msra.mxu0 %v888
        %1192 = vmatprep.subr.bf16.mxu0 0
        %1193 = vmatpush1.bf16.msra.mxu0 %v887
        %1194 = vmatprep.subr.bf16.mxu0 0
        %1195 = vmatpush2.bf16.msra.mxu0 %v902
        %1196 = vmatprep.subr.bf16.mxu0 0
        %1197 = vmatpush2.bf16.msra.mxu0 %v901
        %1198 = vmatprep.subr.bf16.mxu0 0
        %1199 = vmatpush2.bf16.msra.mxu0 %v900
        %1200 = vmatprep.subr.bf16.mxu0 0
        %1201 = vmatpush2.bf16.msra.mxu0 %v899
        %1202 = vmatprep.subr.bf16.mxu0 0
        %1203 = vmatpush2.bf16.msra.mxu0 %v898
        %1204 = vmatprep.subr.bf16.mxu0 0
        %1205 = vmatpush2.bf16.msra.mxu0 %v897
        %1206 = vmatprep.subr.bf16.mxu0 0
        %1207 = vmatpush2.bf16.msra.mxu0 %v896
        %1208 = vmatprep.subr.bf16.mxu0 0
        %1209 = vmatpush2.bf16.msra.mxu0 %v895
        %1210 = vmatprep.mubr.bf16.mxu0 %v486
        %1211 = vmatmul.mubr.bf16.gmra.mxu0 %v485
        %v1212 = vpop.f32.mrf.mxu0
        %v1213 = vadd.f32 %v1148, %v1212
        %v1214 = vpop.f32.mrf.mxu0
        %v1215 = vpop.f32.mrf.mxu0
        %v1216 = vadd.f32 %v1151, %v1215
        %v1217 = vpop.f32.mrf.mxu0
        %1218 = vmatprep.mubr.bf16.mxu0 %v495
        %1219 = vmatmul.mubr.bf16.gmra.mxu0 %v494
        %v1220 = vpop.f32.mrf.mxu0
        %v1221 = vadd.f32 %v1156, %v1220
        %v1222 = vpop.f32.mrf.mxu0
        %v1223 = vpop.f32.mrf.mxu0
        %v1224 = vadd.f32 %v1159, %v1223
        %v1225 = vpop.f32.mrf.mxu0
        %1226 = vmatprep.mubr.bf16.mxu0 %v504
        %1227 = vmatmul.mubr.bf16.gmra.mxu0 %v503
        %v1228 = vpop.f32.mrf.mxu0
        %v1229 = vadd.f32 %v1164, %v1228
        %v1230 = vpop.f32.mrf.mxu0
        %v1231 = vpop.f32.mrf.mxu0
        %v1232 = vadd.f32 %v1167, %v1231
        %v1233 = vpop.f32.mrf.mxu0
        %1234 = vmatprep.mubr.bf16.mxu0 %v513
        %1235 = vmatmul.mubr.bf16.gmra.mxu0 %v512
        %v1236 = vpop.f32.mrf.mxu0
        %v1237 = vadd.f32 %v1172, %v1236
        %v1238 = vpop.f32.mrf.mxu0
        %v1239 = vpop.f32.mrf.mxu0
        %v1240 = vadd.f32 %v1175, %v1239
        %v1241 = vpop.f32.mrf.mxu0
        %1242 = vdwg.mxu0
        %1243 = vmatprep.subr.bf16.mxu0 0
        %1244 = vmatpush1.bf16.msra.mxu0 %v910
        %1245 = vmatprep.subr.bf16.mxu0 0
        %1246 = vmatpush1.bf16.msra.mxu0 %v909
        %1247 = vmatprep.subr.bf16.mxu0 0
        %1248 = vmatpush1.bf16.msra.mxu0 %v908
        %1249 = vmatprep.subr.bf16.mxu0 0
        %1250 = vmatpush1.bf16.msra.mxu0 %v907
        %1251 = vmatprep.subr.bf16.mxu0 0
        %1252 = vmatpush1.bf16.msra.mxu0 %v906
        %1253 = vmatprep.subr.bf16.mxu0 0
        %1254 = vmatpush1.bf16.msra.mxu0 %v905
        %1255 = vmatprep.subr.bf16.mxu0 0
        %1256 = vmatpush1.bf16.msra.mxu0 %v904
        %1257 = vmatprep.subr.bf16.mxu0 0
        %1258 = vmatpush1.bf16.msra.mxu0 %v903
        %1259 = vmatprep.subr.bf16.mxu0 0
        %1260 = vmatpush2.bf16.msra.mxu0 0
        %1261 = vmatprep.subr.bf16.mxu0 0
        %1262 = vmatpush2.bf16.msra.mxu0 0
        %1263 = vmatprep.subr.bf16.mxu0 0
        %1264 = vmatpush2.bf16.msra.mxu0 0
        %1265 = vmatprep.subr.bf16.mxu0 0
        %1266 = vmatpush2.bf16.msra.mxu0 0
        %1267 = vmatprep.subr.bf16.mxu0 0
        %1268 = vmatpush2.bf16.msra.mxu0 0
        %1269 = vmatprep.subr.bf16.mxu0 0
        %1270 = vmatpush2.bf16.msra.mxu0 0
        %1271 = vmatprep.subr.bf16.mxu0 0
        %1272 = vmatpush2.bf16.msra.mxu0 0
        %1273 = vmatprep.subr.bf16.mxu0 0
        %1274 = vmatpush2.bf16.msra.mxu0 0
        %1275 = vmatprep.mubr.bf16.mxu0 0
        %1276 = vmatmul.mubr.bf16.gmra.mxu0 %v487
        %v1277 = vpop.f32.mrf.mxu0
        %v1278 = vadd.f32 %v1213, %v1277
        %v1279 = vpop.f32.mrf.mxu0
        %v1280 = vpop.f32.mrf.mxu0
        %v1281 = vadd.f32 %v1216, %v1280
        %v1282 = vpop.f32.mrf.mxu0
        %1283 = vmatprep.mubr.bf16.mxu0 0
        %1284 = vmatmul.mubr.bf16.gmra.mxu0 %v496
        %v1285 = vpop.f32.mrf.mxu0
        %v1286 = vadd.f32 %v1221, %v1285
        %v1287 = vpop.f32.mrf.mxu0
        %v1288 = vpop.f32.mrf.mxu0
        %v1289 = vadd.f32 %v1224, %v1288
        %v1290 = vpop.f32.mrf.mxu0
        %1291 = vmatprep.mubr.bf16.mxu0 0
        %1292 = vmatmul.mubr.bf16.gmra.mxu0 %v505
        %v1293 = vpop.f32.mrf.mxu0
        %v1294 = vadd.f32 %v1229, %v1293
        %v1295 = vpop.f32.mrf.mxu0
        %v1296 = vpop.f32.mrf.mxu0
        %v1297 = vadd.f32 %v1232, %v1296
        %v1298 = vpop.f32.mrf.mxu0
        %1299 = vmatprep.mubr.bf16.mxu0 0
        %1300 = vmatmul.mubr.bf16.gmra.mxu0 %v514
        %v1301 = vpop.f32.mrf.mxu0
        %v1302 = vadd.f32 %v1237, %v1301
        %v1303 = vpop.f32.mrf.mxu0
        %v1304 = vpop.f32.mrf.mxu0
        %v1305 = vadd.f32 %v1240, %v1304
        %v1306 = vpop.f32.mrf.mxu0
        %1307 = vdwg.mxu0
        %v1308 = vmax.f32 %v1278, 0.0
        %v1309 = vmax.f32 %v1281, 0.0
        %v1310 = vmax.f32 %v1286, 0.0
        %v1311 = vmax.f32 %v1289, 0.0
        %v1312 = vmax.f32 %v1294, 0.0
        %v1313 = vmax.f32 %v1297, 0.0
        %v1314 = vmax.f32 %v1302, 0.0
        %v1315 = vmax.f32 %v1305, 0.0
        %v1316 = vlaneseq
        %v1317 = vand.u32 %v1316, 127
        %vm1318 = vcmp.lt.s32.totalorder %v1317, 32
        %v1319 = vsel %vm1318, %v1308, -1e+30
        %v1320 = vsel %vm1318, %v1309, -1e+30
        %v1321 = vsel %vm1318, %v1310, -1e+30
        %v1322 = vsel %vm1318, %v1311, -1e+30
        %v1323 = vsel %vm1318, %v1312, -1e+30
        %v1324 = vsel %vm1318, %v1313, -1e+30
        %v1325 = vsel %vm1318, %v1314, -1e+30
        %v1326 = vsel %vm1318, %v1315, -1e+30
        %1327 = vmax.xlane.f32.xlu0 %v1319
        %v1328 = vpop.xlane.xlu0 %1327
        %1329 = vmax.xlane.f32.xlu0 %v1320
        %v1330 = vpop.xlane.xlu0 %1329
        %1331 = vmax.xlane.f32.xlu0 %v1321
        %v1332 = vpop.xlane.xlu0 %1331
        %1333 = vmax.xlane.f32.xlu0 %v1322
        %v1334 = vpop.xlane.xlu0 %1333
        %1335 = vmax.xlane.f32.xlu0 %v1323
        %v1336 = vpop.xlane.xlu0 %1335
        %1337 = vmax.xlane.f32.xlu0 %v1324
        %v1338 = vpop.xlane.xlu0 %1337
        %1339 = vmax.xlane.f32.xlu0 %v1325
        %v1340 = vpop.xlane.xlu0 %1339
        %1341 = vmax.xlane.f32.xlu0 %v1326
        %v1342 = vpop.xlane.xlu0 %1341
        %v1343 = vsub.f32 %v1319, %v1328
        %v1344 = vsub.f32 %v1320, %v1330
        %v1345 = vsub.f32 %v1321, %v1332
        %v1346 = vsub.f32 %v1322, %v1334
        %v1347 = vsub.f32 %v1323, %v1336
        %v1348 = vsub.f32 %v1324, %v1338
        %v1349 = vsub.f32 %v1325, %v1340
        %v1350 = vsub.f32 %v1326, %v1342
        %v1351 = vmul.f32 %v1343, 1.442695
        %v1352 = vpow.pop %v1351
        %v1353 = vmul.f32 %v1344, 1.442695
        %v1354 = vpow.pop %v1353
        %v1355 = vmul.f32 %v1345, 1.442695
        %v1356 = vpow.pop %v1355
        %v1357 = vmul.f32 %v1346, 1.442695
        %v1358 = vpow.pop %v1357
        %v1359 = vmul.f32 %v1347, 1.442695
        %v1360 = vpow.pop %v1359
        %v1361 = vmul.f32 %v1348, 1.442695
        %v1362 = vpow.pop %v1361
        %v1363 = vmul.f32 %v1349, 1.442695
        %v1364 = vpow.pop %v1363
        %v1365 = vmul.f32 %v1350, 1.442695
        %v1366 = vpow.pop %v1365
        %1367 = vadd.xlane.f32.xlu0 %v1352
        %v1368 = vpop.xlane.xlu0 %1367
        %1369 = vadd.xlane.f32.xlu0 %v1354
        %v1370 = vpop.xlane.xlu0 %1369
        %1371 = vadd.xlane.f32.xlu0 %v1356
        %v1372 = vpop.xlane.xlu0 %1371
        %1373 = vadd.xlane.f32.xlu0 %v1358
        %v1374 = vpop.xlane.xlu0 %1373
        %1375 = vadd.xlane.f32.xlu0 %v1360
        %v1376 = vpop.xlane.xlu0 %1375
        %1377 = vadd.xlane.f32.xlu0 %v1362
        %v1378 = vpop.xlane.xlu0 %1377
        %1379 = vadd.xlane.f32.xlu0 %v1364
        %v1380 = vpop.xlane.xlu0 %1379
        %1381 = vadd.xlane.f32.xlu0 %v1366
        %v1382 = vpop.xlane.xlu0 %1381
        %v1383 = vlog2.pop %v1368
        %v1384 = vmul.f32 %v1383, 0.6931472
        %v1385 = vlog2.pop %v1370
        %v1386 = vmul.f32 %v1385, 0.6931472
        %v1387 = vlog2.pop %v1372
        %v1388 = vmul.f32 %v1387, 0.6931472
        %v1389 = vlog2.pop %v1374
        %v1390 = vmul.f32 %v1389, 0.6931472
        %v1391 = vlog2.pop %v1376
        %v1392 = vmul.f32 %v1391, 0.6931472
        %v1393 = vlog2.pop %v1378
        %v1394 = vmul.f32 %v1393, 0.6931472
        %v1395 = vlog2.pop %v1380
        %v1396 = vmul.f32 %v1395, 0.6931472
        %v1397 = vlog2.pop %v1382
        %v1398 = vmul.f32 %v1397, 0.6931472
        %v1399 = vsub.f32 %v1343, %v1384
        %v1400 = vsub.f32 %v1344, %v1386
        %v1401 = vsub.f32 %v1345, %v1388
        %v1402 = vsub.f32 %v1346, %v1390
        %v1403 = vsub.f32 %v1347, %v1392
        %v1404 = vsub.f32 %v1348, %v1394
        %v1405 = vsub.f32 %v1349, %v1396
        %v1406 = vsub.f32 %v1350, %v1398
        %1407 = vst [vmem:[%s166] sm:$0xff] %v1399
        %1408 = vst [vmem:[%s166 + $0x8] sm:$0xff] %v1400
        %1409 = vst [vmem:[%s166 + $0x10] sm:$0xff] %v1401
        %1410 = vst [vmem:[%s166 + $0x18] sm:$0xff] %v1402
        %1411 = vst [vmem:[%s166 + $0x20] sm:$0xff] %v1403
        %1412 = vst [vmem:[%s166 + $0x28] sm:$0xff] %v1404
        %1413 = vst [vmem:[%s166 + $0x30] sm:$0xff] %v1405
        %1414 = vst [vmem:[%s166 + $0x38] sm:$0xff] %v1406
        %s1415 = sand.u32 %s93, 1
        %s1416 = scalar_lea.sflag [#allocation3], %s1415
        %s1417 = sand.u32 %s93, 1
        %s1418 = smul.addr %s1417, 64
        %s1419 = scalar_lea.vmem [#allocation2], %s1418
        // Predicated region
        $region33: #{mff_forward.5} parent=31 // pred_check
          %p1420 = pneg %p103
        $region34: #{mff_forward.5} parent=31 // pred_check_branch
          %1422 = sbr.rel (%p1420) target = $region36
        $region35: #{mff_forward.5} parent=31 // pred_region
          %s1423 = smul.u32 8, %s17
          %s1425 = ssub.s32 1024, 1024
          %1426 = vsyncadd %s1416, %s1425
          %s1427 = smul.addr %s1423, 128
          %s1428 = scalar_lea.hbm %s3, %s1427
          %s1429 = sshll.u32 %s1419, 4
          %s1430 = int_to_ptr.vmem [resolvable:$true] %s1429
          %1435 = dma.vmem_to_hbm [thread:$0]  %s1430, 1024, %s1428, %s1416, 128, 128, 8
        $region36: #{mff_forward.5} parent=31 // pred_fallthru
          _
      $region32: #{mff_forward.5} parent=5 // pred_fallthru
        _
      %p1436 = scmp.le.s32.totalorder 2, %s12
      // Predicated region
      $region37: #{mff_forward.5} parent=5 // pred_check
        %p1437 = pneg %p1436
      $region38: #{mff_forward.5} parent=5 // pred_check_branch
        %1439 = sbr.rel (%p1437) target = $region40
      $region39: #{mff_forward.5} parent=5 // pred_region
        %s1440 = ssub.s32 %s12, 2
        // Predicated region
        $region41: #{mff_forward.5} parent=39 // pred_check
          %p1441 = pneg %p109
        $region42: #{mff_forward.5} parent=39 // pred_check_branch
          %1443 = sbr.rel (%p1441) target = $region44
        $region43: #{mff_forward.5} parent=39 // pred_region
          %s1444 = sand.u32 %s94, 1
          %s1445 = scalar_lea.sflag [#allocation3], %s1444
          %s1446 = sand.u32 %s94, 1
          %s1447 = smul.addr %s1446, 64
          %s1448 = scalar_lea.vmem [#allocation2], %s1447
          %1449 = dma.done %s1445, 1024
        $region44: #{mff_forward.5} parent=39 // pred_fallthru
          _
      $region40: #{mff_forward.5} parent=5 // pred_fallthru
        _
    $region6: #{mff_forward.5} parent=1 // loop_footer
      %s16 = sadd.s32 1, %s12
    $region7: #{mff_forward.5} parent=1 // loop_footer_branch
      %11 = sbr.rel target = $region3
    $region8: #{mff_forward.5} parent=1 // loop_exit
      _
    %1450 = vsyncpa [#allocation3], 1
    %s1451 = scalar_lea.sflag [#allocation3], 1
    %1452 = vsyncpa %s1451, 1

</llo_original>
